<compile_context>
chip_gen: v5e
topology: v5e:2x2
jax: 0.10.0
libtpu: 0.0.40
codegen_flags: <defaults>
</compile_context>

<pallas_src>
from functools import partial

import jax
import jax.numpy as jnp
from jax.experimental import pallas as pl
from jax.experimental.pallas import tpu as pltpu

EPS = 1e-5                               # nn.BatchNorm2d default eps
_VMEM_LIMIT = 48 * 1024 * 1024           # safe on v5e/v6e (128 MiB) and v7x (64 MiB)
_BLOCK_BUDGET = 24 * 1024 * 1024         # budget for double-buffered in/out blocks


def _round_up(x, m):
    return ((x + m - 1) // m) * m


def _pick_batch_tile(n_images, per_image_bytes, budget=_BLOCK_BUDGET, cap=8):
    """Largest divisor of n_images (<= cap) whose double-buffered blocks fit."""
    best = 1
    for b in range(1, min(n_images, cap) + 1):
        if n_images % b == 0 and 2 * b * per_image_bytes <= budget:
            best = b
    return best


def _ncore_split(n_images):
    # Leading "parallel" grid axis so v7x megacore shards the batch across its
    # two TensorCores; on single-core chips it is just a small outer loop.
    return 2 if (n_images % 2 == 0 and n_images >= 2) else 1


# ---------------------------------------------------------------------------
# Stage 1: conv1 (1x1) -> y1 (bf16) + per-core per-channel (sum, sumsq) for BN1
# ---------------------------------------------------------------------------
def _make_conv1_kernel(B, H, W, Cin, Cmid):
    M = B * H * W

    def kernel(x_ref, w1_ref, y1_ref, s1_ref):
        @pl.when(pl.program_id(1) == 0)
        def _init():
            s1_ref[...] = jnp.zeros_like(s1_ref)

        # One whole-tile matmul over all B images (bigger M on the MXU).
        x = x_ref[...].reshape(M, Cin).astype(jnp.bfloat16)
        y = jnp.dot(x, w1_ref[...], preferred_element_type=jnp.float32)

        s = jnp.sum(y, axis=0, keepdims=True)
        sq = jnp.sum(y * y, axis=0, keepdims=True)
        s1_ref[0] += jnp.concatenate([s, sq], axis=0)

        y1_ref[...] = y.reshape(B, H, W, Cmid).astype(y1_ref.dtype)

    return kernel


def conv1_stage(x, w1_bf16, ncore):
    N, H, W, Cin = x.shape
    Cmid = w1_bf16.shape[1]
    n_per_core = N // ncore
    per_img = H * W * (Cin * 4 + Cmid * 2)
    B = _pick_batch_tile(n_per_core, per_img)
    nb = n_per_core // B

    return pl.pallas_call(
        _make_conv1_kernel(B, H, W, Cin, Cmid),
        grid=(ncore, nb),
        in_specs=[
            pl.BlockSpec((B, H, W, Cin), lambda c, n: (c * nb + n, 0, 0, 0)),
            pl.BlockSpec((Cin, Cmid), lambda c, n: (0, 0)),            # resident
        ],
        out_specs=(
            pl.BlockSpec((B, H, W, Cmid), lambda c, n: (c * nb + n, 0, 0, 0)),
            pl.BlockSpec((1, 2, Cmid), lambda c, n: (c, 0, 0)),        # per-core stats
        ),
        out_shape=(
            jax.ShapeDtypeStruct((N, H, W, Cmid), jnp.bfloat16),
            jax.ShapeDtypeStruct((ncore, 2, Cmid), jnp.float32),
        ),
        compiler_params=pltpu.CompilerParams(
            dimension_semantics=("parallel", "arbitrary"),
            vmem_limit_bytes=_VMEM_LIMIT),
    )(x, w1_bf16)


# ---------------------------------------------------------------------------
# Stage 2: fused BN1+ReLU prologue, 3x3 conv via in-VMEM im2col + one K=9C matmul
# ---------------------------------------------------------------------------
def _make_conv2_kernel(B, H, W, C, Wp):
    HWp = H * Wp

    def kernel(y1_ref, sc1_ref, sh1_ref, w2_ref, y2_ref, s2_ref, pad_ref, col_ref):
        @pl.when(pl.program_id(1) == 0)
        def _init():
            pad_ref[...] = jnp.zeros_like(pad_ref)   # zero pad ring; never rewritten
            s2_ref[...] = jnp.zeros_like(s2_ref)

        sc1 = sc1_ref[0, :]
        sh1 = sh1_ref[0, :]
        w2 = w2_ref[...]                              # (9C, C) bf16, resident

        sum_acc = jnp.zeros((1, C), jnp.float32)
        sq_acc = jnp.zeros((1, C), jnp.float32)

        for b in range(B):                            # static unroll over tile images
            # BN1 + ReLU prologue (f32 math); single bf16 cast at the scratch store.
            a1 = jnp.maximum(y1_ref[b].astype(jnp.float32) * sc1 + sh1, 0.0)
            pad_ref[1:H + 1, 1:W + 1, :] = a1.astype(pad_ref.dtype)

            # Gather the 9 taps as contiguous row-windows of the flattened,
            # width-padded image (Wp % 8 == 0 => layout-free reshape; dw=1,2 need
            # only a sublane rotate, no per-tap strided slice+reshape relayout).
            for dh in range(3):
                rows = pad_ref[dh:dh + H + 1, :, :].reshape((H + 1) * Wp, C)
                for dw in range(3):
                    t = dh * 3 + dw
                    col_ref[:, t * C:(t + 1) * C] = rows[dw:dw + HWp, :]

            # One K=9C MXU matmul instead of nine underfilled K=C matmuls.
            y2p = jnp.dot(col_ref[...], w2, preferred_element_type=jnp.float32)
            y2v = y2p.reshape(H, Wp, C)[:, :W, :]     # drop garbage pad columns once

            sum_acc = sum_acc + jnp.sum(y2v, axis=(0, 1)).reshape(1, C)
            sq_acc = sq_acc + jnp.sum(y2v * y2v, axis=(0, 1)).reshape(1, C)
            y2_ref[b] = y2v.astype(y2_ref.dtype)

        s2_ref[0] += jnp.concatenate([sum_acc, sq_acc], axis=0)

    return kernel


def conv2_stage(y1, sc1, sh1, w2_flat_bf16, ncore):
    N, H, W, C = y1.shape
    Wp = _round_up(W + 2, 8)
    n_per_core = N // ncore
    per_img = H * W * C * (2 + 2)                     # bf16 in + bf16 out
    B = _pick_batch_tile(n_per_core, per_img)
    nb = n_per_core // B

    return pl.pallas_call(
        _make_conv2_kernel(B, H, W, C, Wp),
        grid=(ncore, nb),
        in_specs=[
            pl.BlockSpec((B, H, W, C), lambda c, n: (c * nb + n, 0, 0, 0)),
            pl.BlockSpec((1, C), lambda c, n: (0, 0)),
            pl.BlockSpec((1, C), lambda c, n: (0, 0)),
            pl.BlockSpec((9 * C, C), lambda c, n: (0, 0)),             # resident
        ],
        out_specs=(
            pl.BlockSpec((B, H, W, C), lambda c, n: (c * nb + n, 0, 0, 0)),
            pl.BlockSpec((1, 2, C), lambda c, n: (c, 0, 0)),
        ),
        out_shape=(
            jax.ShapeDtypeStruct((N, H, W, C), jnp.bfloat16),
            jax.ShapeDtypeStruct((ncore, 2, C), jnp.float32),
        ),
        scratch_shapes=[
            pltpu.VMEM((H + 3, Wp, C), jnp.bfloat16),       # zero-padded image (bf16)
            pltpu.VMEM((H * Wp, 9 * C), jnp.bfloat16),      # in-VMEM im2col buffer
        ],
        compiler_params=pltpu.CompilerParams(
            dimension_semantics=("parallel", "arbitrary"),
            vmem_limit_bytes=_VMEM_LIMIT),
    )(y1, sc1, sh1, w2_flat_bf16)


# ---------------------------------------------------------------------------
# Stage 3: BN2+ReLU + conv3 (1x1) -> BN3 statistics only (y3 never hits HBM)
# ---------------------------------------------------------------------------
def _make_conv3_stats_kernel(B, H, W, C, Cout):
    M = B * H * W

    def kernel(y2_ref, sc2_ref, sh2_ref, w3_ref, s3_ref):
        @pl.when(pl.program_id(1) == 0)
        def _init():
            s3_ref[...] = jnp.zeros_like(s3_ref)

        a2 = jnp.maximum(
            y2_ref[...].astype(jnp.float32) * sc2_ref[0, :] + sh2_ref[0, :], 0.0)
        a2 = a2.reshape(M, C).astype(jnp.bfloat16)
        y3 = jnp.dot(a2, w3_ref[...], preferred_element_type=jnp.float32)

        s = jnp.sum(y3, axis=0, keepdims=True)
        sq = jnp.sum(y3 * y3, axis=0, keepdims=True)
        s3_ref[0] += jnp.concatenate([s, sq], axis=0)

    return kernel


def conv3_stats_stage(y2, sc2, sh2, w3_bf16, ncore):
    N, H, W, C = y2.shape
    Cout = w3_bf16.shape[1]
    n_per_core = N // ncore
    per_img = H * W * C * 2
    B = _pick_batch_tile(n_per_core, per_img)
    nb = n_per_core // B

    return pl.pallas_call(
        _make_conv3_stats_kernel(B, H, W, C, Cout),
        grid=(ncore, nb),
        in_specs=[
            pl.BlockSpec((B, H, W, C), lambda c, n: (c * nb + n, 0, 0, 0)),
            pl.BlockSpec((1, C), lambda c, n: (0, 0)),
            pl.BlockSpec((1, C), lambda c, n: (0, 0)),
            pl.BlockSpec((C, Cout), lambda c, n: (0, 0)),
        ],
        out_specs=pl.BlockSpec((1, 2, Cout), lambda c, n: (c, 0, 0)),
        out_shape=jax.ShapeDtypeStruct((ncore, 2, Cout), jnp.float32),
        compiler_params=pltpu.CompilerParams(
            dimension_semantics=("parallel", "arbitrary"),
            vmem_limit_bytes=_VMEM_LIMIT),
    )(y2, sc2, sh2, w3_bf16)


# ---------------------------------------------------------------------------
# Stage 4: recompute conv3, apply BN3, add residual, final ReLU (bf16 output)
# ---------------------------------------------------------------------------
def _make_final_kernel(B, H, W, C, Cout):
    M = B * H * W

    def kernel(y2_ref, x_ref, sc2_ref, sh2_ref, w3_ref, sc3_ref, sh3_ref, o_ref):
        a2 = jnp.maximum(
            y2_ref[...].astype(jnp.float32) * sc2_ref[0, :] + sh2_ref[0, :], 0.0)
        a2 = a2.reshape(M, C).astype(jnp.bfloat16)
        y3 = jnp.dot(a2, w3_ref[...], preferred_element_type=jnp.float32)

        res = x_ref[...].reshape(M, Cout).astype(jnp.float32)
        out = jnp.maximum(y3 * sc3_ref[0, :] + sh3_ref[0, :] + res, 0.0)
        o_ref[...] = out.reshape(B, H, W, Cout).astype(o_ref.dtype)

    return kernel


def final_stage(y2, x, sc2, sh2, w3_bf16, sc3, sh3):
    N, H, W, C = y2.shape
    Cout = w3_bf16.shape[1]
    per_img = H * W * (C * 2 + Cout * 4 + Cout * 2)
    B = _pick_batch_tile(N, per_img)
    nb = N // B

    return pl.pallas_call(
        _make_final_kernel(B, H, W, C, Cout),
        grid=(nb,),
        in_specs=[
            pl.BlockSpec((B, H, W, C), lambda i: (i, 0, 0, 0)),
            pl.BlockSpec((B, H, W, Cout), lambda i: (i, 0, 0, 0)),
            pl.BlockSpec((1, C), lambda i: (0, 0)),
            pl.BlockSpec((1, C), lambda i: (0, 0)),
            pl.BlockSpec((C, Cout), lambda i: (0, 0)),
            pl.BlockSpec((1, Cout), lambda i: (0, 0)),
            pl.BlockSpec((1, Cout), lambda i: (0, 0)),
        ],
        out_specs=pl.BlockSpec((B, H, W, Cout), lambda i: (i, 0, 0, 0)),
        out_shape=jax.ShapeDtypeStruct((N, H, W, Cout), jnp.bfloat16),
        compiler_params=pltpu.CompilerParams(
            dimension_semantics=("parallel",),          # no cross-step state
            vmem_limit_bytes=_VMEM_LIMIT),
    )(y2, x, sc2, sh2, w3_bf16, sc3, sh3)


# ---------------------------------------------------------------------------
# Per-channel BN finalisation (tiny, plain JAX): scale/shift from per-core stats
# ---------------------------------------------------------------------------
def _bn_scale_shift(stats, gamma, beta, count):
    st = jnp.sum(stats, axis=0)                     # sum per-core partials -> (2, C)
    mean = st[0:1, :] / count
    var = st[1:2, :] / count - mean * mean          # f32 accumulation upstream
    var = jnp.maximum(var, 0.0)                     # guard tiny negative values
    scale = gamma * jax.lax.rsqrt(var + EPS)
    shift = beta - mean * scale
    return scale.astype(jnp.float32), shift.astype(jnp.float32)


# ---------------------------------------------------------------------------
# Full bottleneck forward (identity_downsample=None path)
# ---------------------------------------------------------------------------
@partial(jax.jit, static_argnames=("stride",))
def residual_template_forward(x, params, stride=1):
    w1, g1, b1, w2, g2, b2, w3, g3, b3 = params
    N, H, W, Cin = x.shape
    Cmid = w1.shape[1]
    Cout = w3.shape[1]
    assert stride == 1 and Cin == Cout, "identity_downsample=None path only"
    # TODO(synk): stride>1 / identity_downsample conv+BN branch not implemented.

    count = float(N * H * W)
    ncore = _ncore_split(N)

    w1b = w1.astype(jnp.bfloat16)
    w2b = w2.reshape(9 * Cmid, Cmid).astype(jnp.bfloat16)   # (dh,dw,cin)-major rows
    w3b = w3.astype(jnp.bfloat16)

    # conv1 + BN1 batch statistics
    y1, stats1 = conv1_stage(x, w1b, ncore)
    sc1, sh1 = _bn_scale_shift(stats1, g1, b1, count)

    # BN1+ReLU prologue + 3x3 conv (in-VMEM im2col, one K=9C matmul) + BN2 stats
    y2, stats2 = conv2_stage(y1, sc1, sh1, w2b, ncore)
    sc2, sh2 = _bn_scale_shift(stats2, g2, b2, count)

    # BN2+ReLU + conv3: statistics for BN3 only (y3 never hits HBM)
    stats3 = conv3_stats_stage(y2, sc2, sh2, w3b, ncore)
    sc3, sh3 = _bn_scale_shift(stats3, g3, b3, count)

    # recompute conv3, apply BN3, residual add, final ReLU (bf16 output)
    return final_stage(y2, x, sc2, sh2, w3b, sc3, sh3)


# ---------------------------------------------------------------------------
# Pure-JAX f32 reference (PyTorch training-mode semantics) for validation
# ---------------------------------------------------------------------------
def _reference_forward(x, params, stride=1):
    w1, g1, b1, w2, g2, b2, w3, g3, b3 = params

    def bn(y, g, b):
        mean = jnp.mean(y, axis=(0, 1, 2), keepdims=True)
        var = jnp.mean((y - mean) ** 2, axis=(0, 1, 2), keepdims=True)
        return ((y - mean) * jax.lax.rsqrt(var + EPS) * g.reshape(1, 1, 1, -1)
                + b.reshape(1, 1, 1, -1))

    y1 = jnp.einsum("nhwc,cd->nhwd", x, w1)
    a1 = jnp.maximum(bn(y1, g1, b1), 0.0)
    y2 = jax.lax.conv_general_dilated(
        a1, w2, window_strides=(stride, stride), padding="SAME",
        dimension_numbers=("NHWC", "HWIO", "NHWC"))
    a2 = jnp.maximum(bn(y2, g2, b2), 0.0)
    y3 = jnp.einsum("nhwc,cd->nhwd", a2, w3)
    return jnp.maximum(bn(y3, g3, b3) + x, 0.0)


# ---------------------------------------------------------------------------
if __name__ == "__main__":
    N, H, W = 2, 8, 8
    Cmid = 4                        # out_channels
    expansion = 4
    Cin = Cout = Cmid * expansion   # 16
    stride = 1

    key = jax.random.PRNGKey(0)
    ks = jax.random.split(key, 10)

    x = jax.random.normal(ks[0], (N, H, W, Cin), jnp.float32)

    # conv weights (no bias) stored in matmul layout; w2 is HWIO
    w1 = jax.random.normal(ks[1], (Cin, Cmid), jnp.float32) * 0.1
    w2 = jax.random.normal(ks[2], (3, 3, Cmid, Cmid), jnp.float32) * 0.1
    w3 = jax.random.normal(ks[3], (Cmid, Cout), jnp.float32) * 0.1

    # BatchNorm affine params as (1, C) rows
    g1 = 1.0 + 0.1 * jax.random.normal(ks[4], (1, Cmid), jnp.float32)
    b1 = 0.1 * jax.random.normal(ks[5], (1, Cmid), jnp.float32)
    g2 = 1.0 + 0.1 * jax.random.normal(ks[6], (1, Cmid), jnp.float32)
    b2 = 0.1 * jax.random.normal(ks[7], (1, Cmid), jnp.float32)
    g3 = 1.0 + 0.1 * jax.random.normal(ks[8], (1, Cout), jnp.float32)
    b3 = 0.1 * jax.random.normal(ks[9], (1, Cout), jnp.float32)

    params = (w1, g1, b1, w2, g2, b2, w3, g3, b3)

    out = residual_template_forward(x, params, stride=stride)
    out = jax.block_until_ready(out)

    assert out.shape == (N, H, W, Cout)
    assert bool(jnp.all(out >= 0.0))            # final ReLU

    # validate against f32 reference (bf16 matmuls/activations => loose tol)
    ref = _reference_forward(x, params, stride=stride)
    max_err = float(jnp.max(jnp.abs(out.astype(jnp.float32) - ref)))
    assert max_err < 0.25, f"mismatch vs f32 reference: {max_err}"

    print("KERNEL_OK")
</pallas_src>

<mosaic_0001>
module attributes {stable_mosaic.version = 11 : i64} {
  func.func @kernel(%arg0: i32, %arg1: i32, %arg2: memref<1x8x8x16xf32, #tpu.memory_space<vmem>>, %arg3: memref<16x4xbf16, #tpu.memory_space<vmem>>, %arg4: memref<1x8x8x4xbf16, #tpu.memory_space<vmem>>, %arg5: memref<1x2x4xf32, #tpu.memory_space<vmem>>) attributes {dimension_semantics = [#tpu.dimension_semantics<parallel>, #tpu.dimension_semantics<arbitrary>], iteration_bounds = array<i64: 2, 1>, scalar_prefetch = 0 : i64, scratch_operands = 0 : i64, tpu.core_type = #tpu.core_type<tc>, window_params = [{transform_indices = @transform_0, window_bounds = array<i64: 1, 8, 8, 16>}, {pipeline_mode = #tpu.pipeline_mode<synchronous>, transform_indices = @transform_1, window_bounds = array<i64: 16, 4>}, {transform_indices = @transform_2, window_bounds = array<i64: 1, 8, 8, 4>}, {transform_indices = @transform_3, window_bounds = array<i64: 1, 2, 4>}]} {
    %c0_i32 = arith.constant 0 : i32
    %0 = arith.cmpi eq, %arg1, %c0_i32 : i32
    %1 = arith.extui %0 : i1 to i32
    %c0_i32_0 = arith.constant 0 : i32
    %2 = arith.cmpi ne, %1, %c0_i32_0 : i32
    scf.if %2 {
      %cst_18 = arith.constant 0.000000e+00 : f32
      %23 = vector.broadcast %cst_18 : f32 to vector<1x2x4xf32>
      %c0_19 = arith.constant 0 : index
      %c0_20 = arith.constant 0 : index
      %c0_21 = arith.constant 0 : index
      %24 = vector.load %arg5[%c0_19, %c0_20, %c0_21] : memref<1x2x4xf32, #tpu.memory_space<vmem>>, vector<1x2x4xf32>
      tpu.vector_store %arg5[%c0_19, %c0_20, %c0_21], %23 {strides = array<i32>} : memref<1x2x4xf32, #tpu.memory_space<vmem>>, vector<1x2x4xf32>,
    } else {
    }
    %c0 = arith.constant 0 : index
    %c0_1 = arith.constant 0 : index
    %c0_2 = arith.constant 0 : index
    %c0_3 = arith.constant 0 : index
    %3 = vector.load %arg2[%c0, %c0_1, %c0_2, %c0_3] : memref<1x8x8x16xf32, #tpu.memory_space<vmem>>, vector<1x8x8x16xf32>
    %4 = vector.shape_cast %3 : vector<1x8x8x16xf32> to vector<64x16xf32>
    %5 = arith.truncf %4 : vector<64x16xf32> to vector<64x16xbf16>
    %c0_4 = arith.constant 0 : index
    %c0_5 = arith.constant 0 : index
    %6 = vector.load %arg3[%c0_4, %c0_5] : memref<16x4xbf16, #tpu.memory_space<vmem>>, vector<16x4xbf16>
    %cst = arith.constant dense<0.000000e+00> : vector<64x4xf32>
    %7 = tpu.matmul %5, %6, %cst {dimension_numbers = #tpu.dot_dimension_numbers<[1], [0], [0], [1], [0, 0, 1, 1], [], []>} : vector<64x16xbf16>, vector<16x4xbf16>, vector<64x4xf32> -> vector<64x4xf32>
    %cst_6 = arith.constant dense<0.000000e+00> : vector<4xf32>
    %8 = vector.multi_reduction <add>, %7, %cst_6 [0] : vector<64x4xf32> to vector<4xf32>
    %9 = vector.shape_cast %8 : vector<4xf32> to vector<1x4xf32>
    %10 = arith.mulf %7, %7 : vector<64x4xf32>
    %cst_7 = arith.constant dense<0.000000e+00> : vector<4xf32>
    %11 = vector.multi_reduction <add>, %10, %cst_7 [0] : vector<64x4xf32> to vector<4xf32>
    %12 = vector.shape_cast %11 : vector<4xf32> to vector<1x4xf32>
    %c0_8 = arith.constant 0 : index
    %c0_9 = arith.constant 0 : index
    %c0_10 = arith.constant 0 : index
    %13 = vector.load %arg5[%c0_8, %c0_9, %c0_10] : memref<1x2x4xf32, #tpu.memory_space<vmem>>, vector<1x2x4xf32>
    %14 = vector.shape_cast %13 : vector<1x2x4xf32> to vector<2x4xf32>
    %15 = tpu.concatenate %9, %12 in 0 : vector<1x4xf32>, vector<1x4xf32> -> vector<2x4xf32>
    %16 = arith.addf %14, %15 : vector<2x4xf32>
    %c0_11 = arith.constant 0 : index
    %c0_12 = arith.constant 0 : index
    %c0_13 = arith.constant 0 : index
    %17 = vector.load %arg5[%c0_11, %c0_12, %c0_13] : memref<1x2x4xf32, #tpu.memory_space<vmem>>, vector<1x2x4xf32>
    %18 = vector.shape_cast %17 : vector<1x2x4xf32> to vector<2x4xf32>
    %19 = vector.shape_cast %16 : vector<2x4xf32> to vector<1x2x4xf32>
    tpu.vector_store %arg5[%c0_11, %c0_12, %c0_13], %19 {strides = array<i32>} : memref<1x2x4xf32, #tpu.memory_space<vmem>>, vector<1x2x4xf32>,
    %20 = vector.shape_cast %7 : vector<64x4xf32> to vector<1x8x8x4xf32>
    %21 = arith.truncf %20 : vector<1x8x8x4xf32> to vector<1x8x8x4xbf16>
    %c0_14 = arith.constant 0 : index
    %c0_15 = arith.constant 0 : index
    %c0_16 = arith.constant 0 : index
    %c0_17 = arith.constant 0 : index
    %22 = vector.load %arg4[%c0_14, %c0_15, %c0_16, %c0_17] : memref<1x8x8x4xbf16, #tpu.memory_space<vmem>>, vector<1x8x8x4xbf16>
    tpu.vector_store %arg4[%c0_14, %c0_15, %c0_16, %c0_17], %21 {strides = array<i32>} : memref<1x8x8x4xbf16, #tpu.memory_space<vmem>>, vector<1x8x8x4xbf16>,
    return
  }
  func.func @transform_0(%arg0: i32, %arg1: i32) -> (i32, i32, i32, i32) {
    %c1_i32 = arith.constant 1 : i32
    %0 = arith.muli %arg0, %c1_i32 : i32
    %1 = arith.addi %0, %arg1 : i32
    %c0_i32 = arith.constant 0 : i32
    %c0_i32_0 = arith.constant 0 : i32
    %c0_i32_1 = arith.constant 0 : i32
    %c0_i32_2 = arith.constant 0 : i32
    return %1, %c0_i32, %c0_i32_0, %c0_i32_1 : i32, i32, i32, i32
  }
  func.func @transform_1(%arg0: i32, %arg1: i32) -> (i32, i32) {
    %c0_i32 = arith.constant 0 : i32
    %c0_i32_0 = arith.constant 0 : i32
    %c0_i32_1 = arith.constant 0 : i32
    return %c0_i32, %c0_i32_0 : i32, i32
  }
  func.func @transform_2(%arg0: i32, %arg1: i32) -> (i32, i32, i32, i32) {
    %c1_i32 = arith.constant 1 : i32
    %0 = arith.muli %arg0, %c1_i32 : i32
    %1 = arith.addi %0, %arg1 : i32
    %c0_i32 = arith.constant 0 : i32
    %c0_i32_0 = arith.constant 0 : i32
    %c0_i32_1 = arith.constant 0 : i32
    %c0_i32_2 = arith.constant 0 : i32
    return %1, %c0_i32, %c0_i32_0, %c0_i32_1 : i32, i32, i32, i32
  }
  func.func @transform_3(%arg0: i32, %arg1: i32) -> (i32, i32, i32) {
    %c0_i32 = arith.constant 0 : i32
    %c0_i32_0 = arith.constant 0 : i32
    %c0_i32_1 = arith.constant 0 : i32
    return %arg0, %c0_i32, %c0_i32_0 : i32, i32, i32
  }
}

module attributes {stable_mosaic.version = 11 : i64} {
  func.func @kernel(%arg0: i32, %arg1: i32, %arg2: memref<1x8x8x4xbf16, #tpu.memory_space<vmem>>, %arg3: memref<1x4xf32, #tpu.memory_space<vmem>>, %arg4: memref<1x4xf32, #tpu.memory_space<vmem>>, %arg5: memref<36x4xbf16, #tpu.memory_space<vmem>>, %arg6: memref<1x8x8x4xbf16, #tpu.memory_space<vmem>>, %arg7: memref<1x2x4xf32, #tpu.memory_space<vmem>>, %arg8: memref<11x16x4xbf16, #tpu.memory_space<vmem>>, %arg9: memref<128x36xbf16, #tpu.memory_space<vmem>>) attributes {dimension_semantics = [#tpu.dimension_semantics<parallel>, #tpu.dimension_semantics<arbitrary>], iteration_bounds = array<i64: 2, 1>, scalar_prefetch = 0 : i64, scratch_operands = 2 : i64, tpu.core_type = #tpu.core_type<tc>, window_params = [{transform_indices = @transform_0, window_bounds = array<i64: 1, 8, 8, 4>}, {pipeline_mode = #tpu.pipeline_mode<synchronous>, transform_indices = @transform_1, window_bounds = array<i64: 1, 4>}, {pipeline_mode = #tpu.pipeline_mode<synchronous>, transform_indices = @transform_2, window_bounds = array<i64: 1, 4>}, {pipeline_mode = #tpu.pipeline_mode<synchronous>, transform_indices = @transform_3, window_bounds = array<i64: 36, 4>}, {transform_indices = @transform_4, window_bounds = array<i64: 1, 8, 8, 4>}, {transform_indices = @transform_5, window_bounds = array<i64: 1, 2, 4>}]} {
    %c0_i32 = arith.constant 0 : i32
    %0 = arith.cmpi eq, %arg1, %c0_i32 : i32
    %1 = arith.extui %0 : i1 to i32
    %c0_i32_0 = arith.constant 0 : i32
    %2 = arith.cmpi ne, %1, %c0_i32_0 : i32
    scf.if %2 {
      %cst_47 = arith.constant 0.000000e+00 : bf16
      %69 = vector.broadcast %cst_47 : bf16 to vector<11x16x4xbf16>
      %c0_48 = arith.constant 0 : index
      %c0_49 = arith.constant 0 : index
      %c0_50 = arith.constant 0 : index
      %70 = vector.load %arg8[%c0_48, %c0_49, %c0_50] : memref<11x16x4xbf16, #tpu.memory_space<vmem>>, vector<11x16x4xbf16>
      tpu.vector_store %arg8[%c0_48, %c0_49, %c0_50], %69 {strides = array<i32>} : memref<11x16x4xbf16, #tpu.memory_space<vmem>>, vector<11x16x4xbf16>,
      %cst_51 = arith.constant 0.000000e+00 : f32
      %71 = vector.broadcast %cst_51 : f32 to vector<1x2x4xf32>
      %c0_52 = arith.constant 0 : index
      %c0_53 = arith.constant 0 : index
      %c0_54 = arith.constant 0 : index
      %72 = vector.load %arg7[%c0_52, %c0_53, %c0_54] : memref<1x2x4xf32, #tpu.memory_space<vmem>>, vector<1x2x4xf32>
      tpu.vector_store %arg7[%c0_52, %c0_53, %c0_54], %71 {strides = array<i32>} : memref<1x2x4xf32, #tpu.memory_space<vmem>>, vector<1x2x4xf32>,
    } else {
    }
    %c0 = arith.constant 0 : index
    %c0_1 = arith.constant 0 : index
    %3 = vector.load %arg3[%c0, %c0_1] : memref<1x4xf32, #tpu.memory_space<vmem>>, vector<1x4xf32>
    %4 = vector.shape_cast %3 : vector<1x4xf32> to vector<4xf32>
    %c0_2 = arith.constant 0 : index
    %c0_3 = arith.constant 0 : index
    %5 = vector.load %arg4[%c0_2, %c0_3] : memref<1x4xf32, #tpu.memory_space<vmem>>, vector<1x4xf32>
    %6 = vector.shape_cast %5 : vector<1x4xf32> to vector<4xf32>
    %c0_4 = arith.constant 0 : index
    %c0_5 = arith.constant 0 : index
    %7 = vector.load %arg5[%c0_4, %c0_5] : memref<36x4xbf16, #tpu.memory_space<vmem>>, vector<36x4xbf16>
    %cst = arith.constant 0.000000e+00 : f32
    %8 = vector.broadcast %cst : f32 to vector<1x4xf32>
    %cst_6 = arith.constant 0.000000e+00 : f32
    %9 = vector.broadcast %cst_6 : f32 to vector<1x4xf32>
    %c0_7 = arith.constant 0 : index
    %c0_8 = arith.constant 0 : index
    %c0_9 = arith.constant 0 : index
    %c0_10 = arith.constant 0 : index
    %10 = vector.load %arg2[%c0_7, %c0_8, %c0_9, %c0_10] : memref<1x8x8x4xbf16, #tpu.memory_space<vmem>>, vector<1x8x8x4xbf16>
    %11 = vector.shape_cast %10 : vector<1x8x8x4xbf16> to vector<8x8x4xbf16>
    %12 = arith.extf %11 : vector<8x8x4xbf16> to vector<8x8x4xf32>
    %13 = vector.shape_cast %4 : vector<4xf32> to vector<1x1x4xf32>
    %14 = vector.broadcast %13 : vector<1x1x4xf32> to vector<8x8x4xf32>
    %15 = arith.mulf %12, %14 : vector<8x8x4xf32>
    %16 = vector.shape_cast %6 : vector<4xf32> to vector<1x1x4xf32>
    %17 = vector.broadcast %16 : vector<1x1x4xf32> to vector<8x8x4xf32>
    %18 = arith.addf %15, %17 : vector<8x8x4xf32>
    %cst_11 = arith.constant 0.000000e+00 : f32
    %19 = vector.broadcast %cst_11 : f32 to vector<8x8x4xf32>
    %20 = arith.maximumf %18, %19 : vector<8x8x4xf32>
    %21 = arith.truncf %20 : vector<8x8x4xf32> to vector<8x8x4xbf16>
    %c1 = arith.constant 1 : index
    %c1_12 = arith.constant 1 : index
    %c0_13 = arith.constant 0 : index
    %22 = vector.load %arg8[%c1, %c1_12, %c0_13] : memref<11x16x4xbf16, #tpu.memory_space<vmem>>, vector<8x8x4xbf16>
    tpu.vector_store %arg8[%c1, %c1_12, %c0_13], %21 {strides = array<i32>} : memref<11x16x4xbf16, #tpu.memory_space<vmem>>, vector<8x8x4xbf16>,
    %c0_14 = arith.constant 0 : index
    %c0_15 = arith.constant 0 : index
    %c0_16 = arith.constant 0 : index
    %23 = vector.load %arg8[%c0_14, %c0_15, %c0_16] : memref<11x16x4xbf16, #tpu.memory_space<vmem>>, vector<9x16x4xbf16>
    %24 = vector.shape_cast %23 : vector<9x16x4xbf16> to vector<144x4xbf16>
    %25 = vector.extract_strided_slice %24 {offsets = [0, 0], sizes = [128, 4], strides = [1, 1]} : vector<144x4xbf16> to vector<128x4xbf16>
    %c0_17 = arith.constant 0 : index
    %c0_18 = arith.constant 0 : index
    %26 = vector.load %arg9[%c0_17, %c0_18] : memref<128x36xbf16, #tpu.memory_space<vmem>>, vector<128x4xbf16>
    tpu.vector_store %arg9[%c0_17, %c0_18], %25 {strides = array<i32>} : memref<128x36xbf16, #tpu.memory_space<vmem>>, vector<128x4xbf16>,
    %27 = vector.extract_strided_slice %24 {offsets = [1, 0], sizes = [128, 4], strides = [1, 1]} : vector<144x4xbf16> to vector<128x4xbf16>
    %c0_19 = arith.constant 0 : index
    %c4 = arith.constant 4 : index
    %28 = vector.load %arg9[%c0_19, %c4] : memref<128x36xbf16, #tpu.memory_space<vmem>>, vector<128x4xbf16>
    tpu.vector_store %arg9[%c0_19, %c4], %27 {strides = array<i32>} : memref<128x36xbf16, #tpu.memory_space<vmem>>, vector<128x4xbf16>,
    %29 = vector.extract_strided_slice %24 {offsets = [2, 0], sizes = [128, 4], strides = [1, 1]} : vector<144x4xbf16> to vector<128x4xbf16>
    %c0_20 = arith.constant 0 : index
    %c8 = arith.constant 8 : index
    %30 = vector.load %arg9[%c0_20, %c8] : memref<128x36xbf16, #tpu.memory_space<vmem>>, vector<128x4xbf16>
    tpu.vector_store %arg9[%c0_20, %c8], %29 {strides = array<i32>} : memref<128x36xbf16, #tpu.memory_space<vmem>>, vector<128x4xbf16>,
    %c1_21 = arith.constant 1 : index
    %c0_22 = arith.constant 0 : index
    %c0_23 = arith.constant 0 : index
    %31 = vector.load %arg8[%c1_21, %c0_22, %c0_23] : memref<11x16x4xbf16, #tpu.memory_space<vmem>>, vector<9x16x4xbf16>
    %32 = vector.shape_cast %31 : vector<9x16x4xbf16> to vector<144x4xbf16>
    %33 = vector.extract_strided_slice %32 {offsets = [0, 0], sizes = [128, 4], strides = [1, 1]} : vector<144x4xbf16> to vector<128x4xbf16>
    %c0_24 = arith.constant 0 : index
    %c12 = arith.constant 12 : index
    %34 = vector.load %arg9[%c0_24, %c12] : memref<128x36xbf16, #tpu.memory_space<vmem>>, vector<128x4xbf16>
    tpu.vector_store %arg9[%c0_24, %c12], %33 {strides = array<i32>} : memref<128x36xbf16, #tpu.memory_space<vmem>>, vector<128x4xbf16>,
    %35 = vector.extract_strided_slice %32 {offsets = [1, 0], sizes = [128, 4], strides = [1, 1]} : vector<144x4xbf16> to vector<128x4xbf16>
    %c0_25 = arith.constant 0 : index
    %c16 = arith.constant 16 : index
    %36 = vector.load %arg9[%c0_25, %c16] : memref<128x36xbf16, #tpu.memory_space<vmem>>, vector<128x4xbf16>
    tpu.vector_store %arg9[%c0_25, %c16], %35 {strides = array<i32>} : memref<128x36xbf16, #tpu.memory_space<vmem>>, vector<128x4xbf16>,
    %37 = vector.extract_strided_slice %32 {offsets = [2, 0], sizes = [128, 4], strides = [1, 1]} : vector<144x4xbf16> to vector<128x4xbf16>
    %c0_26 = arith.constant 0 : index
    %c20 = arith.constant 20 : index
    %38 = vector.load %arg9[%c0_26, %c20] : memref<128x36xbf16, #tpu.memory_space<vmem>>, vector<128x4xbf16>
    tpu.vector_store %arg9[%c0_26, %c20], %37 {strides = array<i32>} : memref<128x36xbf16, #tpu.memory_space<vmem>>, vector<128x4xbf16>,
    %c2 = arith.constant 2 : index
    %c0_27 = arith.constant 0 : index
    %c0_28 = arith.constant 0 : index
    %39 = vector.load %arg8[%c2, %c0_27, %c0_28] : memref<11x16x4xbf16, #tpu.memory_space<vmem>>, vector<9x16x4xbf16>
    %40 = vector.shape_cast %39 : vector<9x16x4xbf16> to vector<144x4xbf16>
    %41 = vector.extract_strided_slice %40 {offsets = [0, 0], sizes = [128, 4], strides = [1, 1]} : vector<144x4xbf16> to vector<128x4xbf16>
    %c0_29 = arith.constant 0 : index
    %c24 = arith.constant 24 : index
    %42 = vector.load %arg9[%c0_29, %c24] : memref<128x36xbf16, #tpu.memory_space<vmem>>, vector<128x4xbf16>
    tpu.vector_store %arg9[%c0_29, %c24], %41 {strides = array<i32>} : memref<128x36xbf16, #tpu.memory_space<vmem>>, vector<128x4xbf16>,
    %43 = vector.extract_strided_slice %40 {offsets = [1, 0], sizes = [128, 4], strides = [1, 1]} : vector<144x4xbf16> to vector<128x4xbf16>
    %c0_30 = arith.constant 0 : index
    %c28 = arith.constant 28 : index
    %44 = vector.load %arg9[%c0_30, %c28] : memref<128x36xbf16, #tpu.memory_space<vmem>>, vector<128x4xbf16>
    tpu.vector_store %arg9[%c0_30, %c28], %43 {strides = array<i32>} : memref<128x36xbf16, #tpu.memory_space<vmem>>, vector<128x4xbf16>,
    %45 = vector.extract_strided_slice %40 {offsets = [2, 0], sizes = [128, 4], strides = [1, 1]} : vector<144x4xbf16> to vector<128x4xbf16>
    %c0_31 = arith.constant 0 : index
    %c32 = arith.constant 32 : index
    %46 = vector.load %arg9[%c0_31, %c32] : memref<128x36xbf16, #tpu.memory_space<vmem>>, vector<128x4xbf16>
    tpu.vector_store %arg9[%c0_31, %c32], %45 {strides = array<i32>} : memref<128x36xbf16, #tpu.memory_space<vmem>>, vector<128x4xbf16>,
    %c0_32 = arith.constant 0 : index
    %c0_33 = arith.constant 0 : index
    %47 = vector.load %arg9[%c0_32, %c0_33] : memref<128x36xbf16, #tpu.memory_space<vmem>>, vector<128x36xbf16>
    %cst_34 = arith.constant dense<0.000000e+00> : vector<128x4xf32>
    %48 = tpu.matmul %47, %7, %cst_34 {dimension_numbers = #tpu.dot_dimension_numbers<[1], [0], [0], [1], [0, 0, 1, 1], [], []>} : vector<128x36xbf16>, vector<36x4xbf16>, vector<128x4xf32> -> vector<128x4xf32>
    %49 = vector.shape_cast %48 : vector<128x4xf32> to vector<8x16x4xf32>
    %50 = vector.extract_strided_slice %49 {offsets = [0, 0, 0], sizes = [8, 8, 4], strides = [1, 1, 1]} : vector<8x16x4xf32> to vector<8x8x4xf32>
    %cst_35 = arith.constant dense<0.000000e+00> : vector<4xf32>
    %51 = vector.multi_reduction <add>, %50, %cst_35 [0, 1] : vector<8x8x4xf32> to vector<4xf32>
    %52 = vector.shape_cast %51 : vector<4xf32> to vector<1x4xf32>
    %53 = arith.addf %8, %52 : vector<1x4xf32>
    %54 = arith.mulf %50, %50 : vector<8x8x4xf32>
    %cst_36 = arith.constant dense<0.000000e+00> : vector<4xf32>
    %55 = vector.multi_reduction <add>, %54, %cst_36 [0, 1] : vector<8x8x4xf32> to vector<4xf32>
    %56 = vector.shape_cast %55 : vector<4xf32> to vector<1x4xf32>
    %57 = arith.addf %9, %56 : vector<1x4xf32>
    %58 = arith.truncf %50 : vector<8x8x4xf32> to vector<8x8x4xbf16>
    %c0_37 = arith.constant 0 : index
    %c0_38 = arith.constant 0 : index
    %c0_39 = arith.constant 0 : index
    %c0_40 = arith.constant 0 : index
    %59 = vector.load %arg6[%c0_37, %c0_38, %c0_39, %c0_40] : memref<1x8x8x4xbf16, #tpu.memory_space<vmem>>, vector<1x8x8x4xbf16>
    %60 = vector.shape_cast %59 : vector<1x8x8x4xbf16> to vector<8x8x4xbf16>
    %61 = vector.shape_cast %58 : vector<8x8x4xbf16> to vector<1x8x8x4xbf16>
    tpu.vector_store %arg6[%c0_37, %c0_38, %c0_39, %c0_40], %61 {strides = array<i32>} : memref<1x8x8x4xbf16, #tpu.memory_space<vmem>>, vector<1x8x8x4xbf16>,
    %c0_41 = arith.constant 0 : index
    %c0_42 = arith.constant 0 : index
    %c0_43 = arith.constant 0 : index
    %62 = vector.load %arg7[%c0_41, %c0_42, %c0_43] : memref<1x2x4xf32, #tpu.memory_space<vmem>>, vector<1x2x4xf32>
    %63 = vector.shape_cast %62 : vector<1x2x4xf32> to vector<2x4xf32>
    %64 = tpu.concatenate %53, %57 in 0 : vector<1x4xf32>, vector<1x4xf32> -> vector<2x4xf32>
    %65 = arith.addf %63, %64 : vector<2x4xf32>
    %c0_44 = arith.constant 0 : index
    %c0_45 = arith.constant 0 : index
    %c0_46 = arith.constant 0 : index
    %66 = vector.load %arg7[%c0_44, %c0_45, %c0_46] : memref<1x2x4xf32, #tpu.memory_space<vmem>>, vector<1x2x4xf32>
    %67 = vector.shape_cast %66 : vector<1x2x4xf32> to vector<2x4xf32>
    %68 = vector.shape_cast %65 : vector<2x4xf32> to vector<1x2x4xf32>
    tpu.vector_store %arg7[%c0_44, %c0_45, %c0_46], %68 {strides = array<i32>} : memref<1x2x4xf32, #tpu.memory_space<vmem>>, vector<1x2x4xf32>,
    return
  }
  func.func @transform_0(%arg0: i32, %arg1: i32) -> (i32, i32, i32, i32) {
    %c1_i32 = arith.constant 1 : i32
    %0 = arith.muli %arg0, %c1_i32 : i32
    %1 = arith.addi %0, %arg1 : i32
    %c0_i32 = arith.constant 0 : i32
    %c0_i32_0 = arith.constant 0 : i32
    %c0_i32_1 = arith.constant 0 : i32
    %c0_i32_2 = arith.constant 0 : i32
    return %1, %c0_i32, %c0_i32_0, %c0_i32_1 : i32, i32, i32, i32
  }
  func.func @transform_1(%arg0: i32, %arg1: i32) -> (i32, i32) {
    %c0_i32 = arith.constant 0 : i32
    %c0_i32_0 = arith.constant 0 : i32
    %c0_i32_1 = arith.constant 0 : i32
    return %c0_i32, %c0_i32_0 : i32, i32
  }
  func.func @transform_2(%arg0: i32, %arg1: i32) -> (i32, i32) {
    %c0_i32 = arith.constant 0 : i32
    %c0_i32_0 = arith.constant 0 : i32
    %c0_i32_1 = arith.constant 0 : i32
    return %c0_i32, %c0_i32_0 : i32, i32
  }
  func.func @transform_3(%arg0: i32, %arg1: i32) -> (i32, i32) {
    %c0_i32 = arith.constant 0 : i32
    %c0_i32_0 = arith.constant 0 : i32
    %c0_i32_1 = arith.constant 0 : i32
    return %c0_i32, %c0_i32_0 : i32, i32
  }
  func.func @transform_4(%arg0: i32, %arg1: i32) -> (i32, i32, i32, i32) {
    %c1_i32 = arith.constant 1 : i32
    %0 = arith.muli %arg0, %c1_i32 : i32
    %1 = arith.addi %0, %arg1 : i32
    %c0_i32 = arith.constant 0 : i32
    %c0_i32_0 = arith.constant 0 : i32
    %c0_i32_1 = arith.constant 0 : i32
    %c0_i32_2 = arith.constant 0 : i32
    return %1, %c0_i32, %c0_i32_0, %c0_i32_1 : i32, i32, i32, i32
  }
  func.func @transform_5(%arg0: i32, %arg1: i32) -> (i32, i32, i32) {
    %c0_i32 = arith.constant 0 : i32
    %c0_i32_0 = arith.constant 0 : i32
    %c0_i32_1 = arith.constant 0 : i32
    return %arg0, %c0_i32, %c0_i32_0 : i32, i32, i32
  }
}

module attributes {stable_mosaic.version = 11 : i64} {
  func.func @kernel(%arg0: i32, %arg1: i32, %arg2: memref<1x8x8x4xbf16, #tpu.memory_space<vmem>>, %arg3: memref<1x4xf32, #tpu.memory_space<vmem>>, %arg4: memref<1x4xf32, #tpu.memory_space<vmem>>, %arg5: memref<4x16xbf16, #tpu.memory_space<vmem>>, %arg6: memref<1x2x16xf32, #tpu.memory_space<vmem>>) attributes {dimension_semantics = [#tpu.dimension_semantics<parallel>, #tpu.dimension_semantics<arbitrary>], iteration_bounds = array<i64: 2, 1>, scalar_prefetch = 0 : i64, scratch_operands = 0 : i64, tpu.core_type = #tpu.core_type<tc>, window_params = [{transform_indices = @transform_0, window_bounds = array<i64: 1, 8, 8, 4>}, {pipeline_mode = #tpu.pipeline_mode<synchronous>, transform_indices = @transform_1, window_bounds = array<i64: 1, 4>}, {pipeline_mode = #tpu.pipeline_mode<synchronous>, transform_indices = @transform_2, window_bounds = array<i64: 1, 4>}, {pipeline_mode = #tpu.pipeline_mode<synchronous>, transform_indices = @transform_3, window_bounds = array<i64: 4, 16>}, {transform_indices = @transform_4, window_bounds = array<i64: 1, 2, 16>}]} {
    %c0_i32 = arith.constant 0 : i32
    %0 = arith.cmpi eq, %arg1, %c0_i32 : i32
    %1 = arith.extui %0 : i1 to i32
    %c0_i32_0 = arith.constant 0 : i32
    %2 = arith.cmpi ne, %1, %c0_i32_0 : i32
    scf.if %2 {
      %cst_19 = arith.constant 0.000000e+00 : f32
      %33 = vector.broadcast %cst_19 : f32 to vector<1x2x16xf32>
      %c0_20 = arith.constant 0 : index
      %c0_21 = arith.constant 0 : index
      %c0_22 = arith.constant 0 : index
      %34 = vector.load %arg6[%c0_20, %c0_21, %c0_22] : memref<1x2x16xf32, #tpu.memory_space<vmem>>, vector<1x2x16xf32>
      tpu.vector_store %arg6[%c0_20, %c0_21, %c0_22], %33 {strides = array<i32>} : memref<1x2x16xf32, #tpu.memory_space<vmem>>, vector<1x2x16xf32>,
    } else {
    }
    %c0 = arith.constant 0 : index
    %c0_1 = arith.constant 0 : index
    %c0_2 = arith.constant 0 : index
    %c0_3 = arith.constant 0 : index
    %3 = vector.load %arg2[%c0, %c0_1, %c0_2, %c0_3] : memref<1x8x8x4xbf16, #tpu.memory_space<vmem>>, vector<1x8x8x4xbf16>
    %4 = arith.extf %3 : vector<1x8x8x4xbf16> to vector<1x8x8x4xf32>
    %c0_4 = arith.constant 0 : index
    %c0_5 = arith.constant 0 : index
    %5 = vector.load %arg3[%c0_4, %c0_5] : memref<1x4xf32, #tpu.memory_space<vmem>>, vector<1x4xf32>
    %6 = vector.shape_cast %5 : vector<1x4xf32> to vector<4xf32>
    %7 = vector.shape_cast %6 : vector<4xf32> to vector<1x1x1x4xf32>
    %8 = vector.broadcast %7 : vector<1x1x1x4xf32> to vector<1x8x8x4xf32>
    %9 = arith.mulf %4, %8 : vector<1x8x8x4xf32>
    %c0_6 = arith.constant 0 : index
    %c0_7 = arith.constant 0 : index
    %10 = vector.load %arg4[%c0_6, %c0_7] : memref<1x4xf32, #tpu.memory_space<vmem>>, vector<1x4xf32>
    %11 = vector.shape_cast %10 : vector<1x4xf32> to vector<4xf32>
    %12 = vector.shape_cast %11 : vector<4xf32> to vector<1x1x1x4xf32>
    %13 = vector.broadcast %12 : vector<1x1x1x4xf32> to vector<1x8x8x4xf32>
    %14 = arith.addf %9, %13 : vector<1x8x8x4xf32>
    %cst = arith.constant 0.000000e+00 : f32
    %15 = vector.broadcast %cst : f32 to vector<1x8x8x4xf32>
    %16 = arith.maximumf %14, %15 : vector<1x8x8x4xf32>
    %17 = vector.shape_cast %16 : vector<1x8x8x4xf32> to vector<64x4xf32>
    %18 = arith.truncf %17 : vector<64x4xf32> to vector<64x4xbf16>
    %c0_8 = arith.constant 0 : index
    %c0_9 = arith.constant 0 : index
    %19 = vector.load %arg5[%c0_8, %c0_9] : memref<4x16xbf16, #tpu.memory_space<vmem>>, vector<4x16xbf16>
    %cst_10 = arith.constant dense<0.000000e+00> : vector<64x16xf32>
    %20 = tpu.matmul %18, %19, %cst_10 {dimension_numbers = #tpu.dot_dimension_numbers<[1], [0], [0], [1], [0, 0, 1, 1], [], []>} : vector<64x4xbf16>, vector<4x16xbf16>, vector<64x16xf32> -> vector<64x16xf32>
    %cst_11 = arith.constant dense<0.000000e+00> : vector<16xf32>
    %21 = vector.multi_reduction <add>, %20, %cst_11 [0] : vector<64x16xf32> to vector<16xf32>
    %22 = vector.shape_cast %21 : vector<16xf32> to vector<1x16xf32>
    %23 = arith.mulf %20, %20 : vector<64x16xf32>
    %cst_12 = arith.constant dense<0.000000e+00> : vector<16xf32>
    %24 = vector.multi_reduction <add>, %23, %cst_12 [0] : vector<64x16xf32> to vector<16xf32>
    %25 = vector.shape_cast %24 : vector<16xf32> to vector<1x16xf32>
    %c0_13 = arith.constant 0 : index
    %c0_14 = arith.constant 0 : index
    %c0_15 = arith.constant 0 : index
    %26 = vector.load %arg6[%c0_13, %c0_14, %c0_15] : memref<1x2x16xf32, #tpu.memory_space<vmem>>, vector<1x2x16xf32>
    %27 = vector.shape_cast %26 : vector<1x2x16xf32> to vector<2x16xf32>
    %28 = tpu.concatenate %22, %25 in 0 : vector<1x16xf32>, vector<1x16xf32> -> vector<2x16xf32>
    %29 = arith.addf %27, %28 : vector<2x16xf32>
    %c0_16 = arith.constant 0 : index
    %c0_17 = arith.constant 0 : index
    %c0_18 = arith.constant 0 : index
    %30 = vector.load %arg6[%c0_16, %c0_17, %c0_18] : memref<1x2x16xf32, #tpu.memory_space<vmem>>, vector<1x2x16xf32>
    %31 = vector.shape_cast %30 : vector<1x2x16xf32> to vector<2x16xf32>
    %32 = vector.shape_cast %29 : vector<2x16xf32> to vector<1x2x16xf32>
    tpu.vector_store %arg6[%c0_16, %c0_17, %c0_18], %32 {strides = array<i32>} : memref<1x2x16xf32, #tpu.memory_space<vmem>>, vector<1x2x16xf32>,
    return
  }
  func.func @transform_0(%arg0: i32, %arg1: i32) -> (i32, i32, i32, i32) {
    %c1_i32 = arith.constant 1 : i32
    %0 = arith.muli %arg0, %c1_i32 : i32
    %1 = arith.addi %0, %arg1 : i32
    %c0_i32 = arith.constant 0 : i32
    %c0_i32_0 = arith.constant 0 : i32
    %c0_i32_1 = arith.constant 0 : i32
    %c0_i32_2 = arith.constant 0 : i32
    return %1, %c0_i32, %c0_i32_0, %c0_i32_1 : i32, i32, i32, i32
  }
  func.func @transform_1(%arg0: i32, %arg1: i32) -> (i32, i32) {
    %c0_i32 = arith.constant 0 : i32
    %c0_i32_0 = arith.constant 0 : i32
    %c0_i32_1 = arith.constant 0 : i32
    return %c0_i32, %c0_i32_0 : i32, i32
  }
  func.func @transform_2(%arg0: i32, %arg1: i32) -> (i32, i32) {
    %c0_i32 = arith.constant 0 : i32
    %c0_i32_0 = arith.constant 0 : i32
    %c0_i32_1 = arith.constant 0 : i32
    return %c0_i32, %c0_i32_0 : i32, i32
  }
  func.func @transform_3(%arg0: i32, %arg1: i32) -> (i32, i32) {
    %c0_i32 = arith.constant 0 : i32
    %c0_i32_0 = arith.constant 0 : i32
    %c0_i32_1 = arith.constant 0 : i32
    return %c0_i32, %c0_i32_0 : i32, i32
  }
  func.func @transform_4(%arg0: i32, %arg1: i32) -> (i32, i32, i32) {
    %c0_i32 = arith.constant 0 : i32
    %c0_i32_0 = arith.constant 0 : i32
    %c0_i32_1 = arith.constant 0 : i32
    return %arg0, %c0_i32, %c0_i32_0 : i32, i32, i32
  }
}

module attributes {stable_mosaic.version = 11 : i64} {
  func.func @kernel(%arg0: i32, %arg1: memref<2x8x8x4xbf16, #tpu.memory_space<vmem>>, %arg2: memref<2x8x8x16xf32, #tpu.memory_space<vmem>>, %arg3: memref<1x4xf32, #tpu.memory_space<vmem>>, %arg4: memref<1x4xf32, #tpu.memory_space<vmem>>, %arg5: memref<4x16xbf16, #tpu.memory_space<vmem>>, %arg6: memref<1x16xf32, #tpu.memory_space<vmem>>, %arg7: memref<1x16xf32, #tpu.memory_space<vmem>>, %arg8: memref<2x8x8x16xbf16, #tpu.memory_space<vmem>>) attributes {dimension_semantics = [#tpu.dimension_semantics<parallel>], iteration_bounds = array<i64: 1>, scalar_prefetch = 0 : i64, scratch_operands = 0 : i64, tpu.core_type = #tpu.core_type<tc>, window_params = [{transform_indices = @transform_0, window_bounds = array<i64: 2, 8, 8, 4>}, {transform_indices = @transform_1, window_bounds = array<i64: 2, 8, 8, 16>}, {pipeline_mode = #tpu.pipeline_mode<synchronous>, transform_indices = @transform_2, window_bounds = array<i64: 1, 4>}, {pipeline_mode = #tpu.pipeline_mode<synchronous>, transform_indices = @transform_3, window_bounds = array<i64: 1, 4>}, {pipeline_mode = #tpu.pipeline_mode<synchronous>, transform_indices = @transform_4, window_bounds = array<i64: 4, 16>}, {pipeline_mode = #tpu.pipeline_mode<synchronous>, transform_indices = @transform_5, window_bounds = array<i64: 1, 16>}, {pipeline_mode = #tpu.pipeline_mode<synchronous>, transform_indices = @transform_6, window_bounds = array<i64: 1, 16>}, {transform_indices = @transform_7, window_bounds = array<i64: 2, 8, 8, 16>}]} {
    %c0 = arith.constant 0 : index
    %c0_0 = arith.constant 0 : index
    %c0_1 = arith.constant 0 : index
    %c0_2 = arith.constant 0 : index
    %0 = vector.load %arg1[%c0, %c0_0, %c0_1, %c0_2] : memref<2x8x8x4xbf16, #tpu.memory_space<vmem>>, vector<2x8x8x4xbf16>
    %1 = arith.extf %0 : vector<2x8x8x4xbf16> to vector<2x8x8x4xf32>
    %c0_3 = arith.constant 0 : index
    %c0_4 = arith.constant 0 : index
    %2 = vector.load %arg3[%c0_3, %c0_4] : memref<1x4xf32, #tpu.memory_space<vmem>>, vector<1x4xf32>
    %3 = vector.shape_cast %2 : vector<1x4xf32> to vector<4xf32>
    %4 = vector.shape_cast %3 : vector<4xf32> to vector<1x1x1x4xf32>
    %5 = vector.broadcast %4 : vector<1x1x1x4xf32> to vector<2x8x8x4xf32>
    %6 = arith.mulf %1, %5 : vector<2x8x8x4xf32>
    %c0_5 = arith.constant 0 : index
    %c0_6 = arith.constant 0 : index
    %7 = vector.load %arg4[%c0_5, %c0_6] : memref<1x4xf32, #tpu.memory_space<vmem>>, vector<1x4xf32>
    %8 = vector.shape_cast %7 : vector<1x4xf32> to vector<4xf32>
    %9 = vector.shape_cast %8 : vector<4xf32> to vector<1x1x1x4xf32>
    %10 = vector.broadcast %9 : vector<1x1x1x4xf32> to vector<2x8x8x4xf32>
    %11 = arith.addf %6, %10 : vector<2x8x8x4xf32>
    %cst = arith.constant 0.000000e+00 : f32
    %12 = vector.broadcast %cst : f32 to vector<2x8x8x4xf32>
    %13 = arith.maximumf %11, %12 : vector<2x8x8x4xf32>
    %14 = vector.shape_cast %13 : vector<2x8x8x4xf32> to vector<128x4xf32>
    %15 = arith.truncf %14 : vector<128x4xf32> to vector<128x4xbf16>
    %c0_7 = arith.constant 0 : index
    %c0_8 = arith.constant 0 : index
    %16 = vector.load %arg5[%c0_7, %c0_8] : memref<4x16xbf16, #tpu.memory_space<vmem>>, vector<4x16xbf16>
    %cst_9 = arith.constant dense<0.000000e+00> : vector<128x16xf32>
    %17 = tpu.matmul %15, %16, %cst_9 {dimension_numbers = #tpu.dot_dimension_numbers<[1], [0], [0], [1], [0, 0, 1, 1], [], []>} : vector<128x4xbf16>, vector<4x16xbf16>, vector<128x16xf32> -> vector<128x16xf32>
    %c0_10 = arith.constant 0 : index
    %c0_11 = arith.constant 0 : index
    %c0_12 = arith.constant 0 : index
    %c0_13 = arith.constant 0 : index
    %18 = vector.load %arg2[%c0_10, %c0_11, %c0_12, %c0_13] : memref<2x8x8x16xf32, #tpu.memory_space<vmem>>, vector<2x8x8x16xf32>
    %19 = vector.shape_cast %18 : vector<2x8x8x16xf32> to vector<128x16xf32>
    %c0_14 = arith.constant 0 : index
    %c0_15 = arith.constant 0 : index
    %20 = vector.load %arg6[%c0_14, %c0_15] : memref<1x16xf32, #tpu.memory_space<vmem>>, vector<1x16xf32>
    %21 = vector.shape_cast %20 : vector<1x16xf32> to vector<16xf32>
    %22 = vector.shape_cast %21 : vector<16xf32> to vector<1x16xf32>
    %23 = vector.broadcast %22 : vector<1x16xf32> to vector<128x16xf32>
    %24 = arith.mulf %17, %23 : vector<128x16xf32>
    %c0_16 = arith.constant 0 : index
    %c0_17 = arith.constant 0 : index
    %25 = vector.load %arg7[%c0_16, %c0_17] : memref<1x16xf32, #tpu.memory_space<vmem>>, vector<1x16xf32>
    %26 = vector.shape_cast %25 : vector<1x16xf32> to vector<16xf32>
    %27 = vector.shape_cast %26 : vector<16xf32> to vector<1x16xf32>
    %28 = vector.broadcast %27 : vector<1x16xf32> to vector<128x16xf32>
    %29 = arith.addf %24, %28 : vector<128x16xf32>
    %30 = arith.addf %29, %19 : vector<128x16xf32>
    %cst_18 = arith.constant 0.000000e+00 : f32
    %31 = vector.broadcast %cst_18 : f32 to vector<128x16xf32>
    %32 = arith.maximumf %30, %31 : vector<128x16xf32>
    %33 = vector.shape_cast %32 : vector<128x16xf32> to vector<2x8x8x16xf32>
    %34 = arith.truncf %33 : vector<2x8x8x16xf32> to vector<2x8x8x16xbf16>
    %c0_19 = arith.constant 0 : index
    %c0_20 = arith.constant 0 : index
    %c0_21 = arith.constant 0 : index
    %c0_22 = arith.constant 0 : index
    %35 = vector.load %arg8[%c0_19, %c0_20, %c0_21, %c0_22] : memref<2x8x8x16xbf16, #tpu.memory_space<vmem>>, vector<2x8x8x16xbf16>
    tpu.vector_store %arg8[%c0_19, %c0_20, %c0_21, %c0_22], %34 {strides = array<i32>} : memref<2x8x8x16xbf16, #tpu.memory_space<vmem>>, vector<2x8x8x16xbf16>,
    return
  }
  func.func @transform_0(%arg0: i32) -> (i32, i32, i32, i32) {
    %c0_i32 = arith.constant 0 : i32
    %c0_i32_0 = arith.constant 0 : i32
    %c0_i32_1 = arith.constant 0 : i32
    %c0_i32_2 = arith.constant 0 : i32
    return %arg0, %c0_i32, %c0_i32_0, %c0_i32_1 : i32, i32, i32, i32
  }
  func.func @transform_1(%arg0: i32) -> (i32, i32, i32, i32) {
    %c0_i32 = arith.constant 0 : i32
    %c0_i32_0 = arith.constant 0 : i32
    %c0_i32_1 = arith.constant 0 : i32
    %c0_i32_2 = arith.constant 0 : i32
    return %arg0, %c0_i32, %c0_i32_0, %c0_i32_1 : i32, i32, i32, i32
  }
  func.func @transform_2(%arg0: i32) -> (i32, i32) {
    %c0_i32 = arith.constant 0 : i32
    %c0_i32_0 = arith.constant 0 : i32
    %c0_i32_1 = arith.constant 0 : i32
    return %c0_i32, %c0_i32_0 : i32, i32
  }
  func.func @transform_3(%arg0: i32) -> (i32, i32) {
    %c0_i32 = arith.constant 0 : i32
    %c0_i32_0 = arith.constant 0 : i32
    %c0_i32_1 = arith.constant 0 : i32
    return %c0_i32, %c0_i32_0 : i32, i32
  }
  func.func @transform_4(%arg0: i32) -> (i32, i32) {
    %c0_i32 = arith.constant 0 : i32
    %c0_i32_0 = arith.constant 0 : i32
    %c0_i32_1 = arith.constant 0 : i32
    return %c0_i32, %c0_i32_0 : i32, i32
  }
  func.func @transform_5(%arg0: i32) -> (i32, i32) {
    %c0_i32 = arith.constant 0 : i32
    %c0_i32_0 = arith.constant 0 : i32
    %c0_i32_1 = arith.constant 0 : i32
    return %c0_i32, %c0_i32_0 : i32, i32
  }
  func.func @transform_6(%arg0: i32) -> (i32, i32) {
    %c0_i32 = arith.constant 0 : i32
    %c0_i32_0 = arith.constant 0 : i32
    %c0_i32_1 = arith.constant 0 : i32
    return %c0_i32, %c0_i32_0 : i32, i32
  }
  func.func @transform_7(%arg0: i32) -> (i32, i32, i32, i32) {
    %c0_i32 = arith.constant 0 : i32
    %c0_i32_0 = arith.constant 0 : i32
    %c0_i32_1 = arith.constant 0 : i32
    %c0_i32_2 = arith.constant 0 : i32
    return %arg0, %c0_i32, %c0_i32_0, %c0_i32_1 : i32, i32, i32, i32
  }
}

</mosaic_0001>

<llo_original>
// kernel: residual_template_forward.4
$region0: #{residual_template_forward.4}
  #allocation0 [shape = 'u32[]', space=smem, size = 0x4, offset = 0x4, fixed_abs, tag = 'smem constant byte address 0x4 - core index']
  #allocation1 [shape = 'u32[72,128]{1,0:T(1,128)}', space=vmem, size = 0x9000, scoped, tag = 'internal scratch']
  %s0 = inlined_call_operand.hbm [shape: f32[2,8,8,16], index: 0, kind: input, shape index: {}]
  %s1 = inlined_call_operand.vmem [shape: bf16[16,4], index: 1, kind: input, shape index: {}]
  %s2 = inlined_call_operand.vmem [shape: bf16[2,8,8,4], index: 2, kind: output, shape index: {0}]
  %s3 = inlined_call_operand.vmem [shape: f32[2,2,4], index: 3, kind: output, shape index: {1}]
  %4 = xla_tuple %s2, %s3
  %s5 = sld [smem:[#allocation0]]
  $region57: #{residual_template_forward.4} parent=0
    _
  %s7 = ssub.s32 1, %s5
  %s8 = scalar_select 0, %s7, %s5
  $region1: #{residual_template_forward.4} parent=0
    #allocation2 [shape = 'u8[65536]{0}', space=vmem, size = 0x10000, scoped, tag = 'input window, operand 0']
    #allocation3 [shape = 's32[2]{0}', space=sflag, size = 0x8, scoped, tag = 'scoped memory for residual_template_forward.4']
    %9 = vsyncpa [#allocation3], 0
    %s10 = scalar_lea.sflag [#allocation3], 1
    %11 = vsyncpa %s10, 0
    loop: start=0, step=1, limit=4
    $region2: #{residual_template_forward.4} parent=1 // loop_pre_header
      _
    $region3: #{residual_template_forward.4} parent=1 // loop_header
      %s13 = sphi 0, %s17
      %p14 = scmp.ge.s32.totalorder %s13, 4
      %s20 = sphi 0, %s32
      %s21 = sphi 0, %s28
      %s22 = sphi 0, %s20
      %s23 = sphi 0, %s21
      %s24 = sphi 0, %s22
      %s25 = sphi 0, %s23
      %s37 = sphi 0, %s39
      %s40 = sphi 0, %s37
      %s41 = sphi 0, %s40
      %s57 = sphi 0, %s41
      %s61 = sphi 0, %s61
      %s63 = sphi 0, %s61
      %s64 = sphi 0, %s63
      %s78 = sphi 0, %s64
      %s86 = sphi 0, %s88
      %s89 = sphi 0, %s86
      %s90 = sphi 0, %s89
      %s106 = sphi 0, %s90
      %s112 = sphi 0, %s114
      %s115 = sphi 0, %s112
      %s116 = sphi 0, %s115
      %s132 = sphi 0, %s116
    $region4: #{residual_template_forward.4} parent=1 // loop_header_branch
      %16 = sbr.rel (%p14) target = $region8
    $region5: #{residual_template_forward.4} parent=1 // loop_body
      %s18 = ssub.s32 %s13, 1
      %s19 = ssub.s32 %s13, 2
      %s26 = sadd.s32 1, %s21
      %p27 = scmp.ge.s32.totalorder %s26, 1
      %s28 = scalar_select %p27, 0, %s26
      %s29 = sadd.s32 1, %s20
      %s30 = scalar_select %p27, %s29, %s20
      %p31 = scmp.ge.s32.totalorder %s30, 2
      %s32 = scalar_select %p31, 0, %s30
      %s33 = sadd.s32 %s20, %s21
      %s34 = sadd.s32 %s32, %s28
      %s35 = ssub.s32 %s33, %s34
      %p36 = scmp.eq.s32.totalorder %s35, 0
      %s38 = sadd.s32 %s37, 1
      %s39 = scalar_select %p36, %s37, %s38
      %p42 = pneg %p36
      %p43 = scmp.eq.s32.totalorder %s13, 1
      %p44 = por %p42, %p43
      %p45 = scmp.ne.s32.totalorder %s37, %s40
      %p46 = scmp.eq.s32.totalorder %s13, 0
      %p47 = por %p45, %p46
      %p48 = scmp.ne.s32.totalorder %s37, %s40
      %p49 = scmp.eq.s32.totalorder %s18, 1
      %p50 = por %p48, %p49
      %p51 = scmp.ne.s32.totalorder %s40, %s41
      %p52 = scmp.eq.s32.totalorder %s18, 0
      %p53 = por %p51, %p52
      %p54 = scmp.ne.s32.totalorder %s40, %s41
      %p55 = scmp.eq.s32.totalorder %s19, 1
      %p56 = por %p54, %p55
      %p58 = scmp.ne.s32.totalorder %s41, %s57
      %p59 = scmp.eq.s32.totalorder %s19, 0
      %p60 = por %p58, %p59
      %s62 = sadd.s32 %s61, 1
      %p65 = scmp.eq.s32.totalorder %s13, 1
      %p66 = scmp.ne.s32.totalorder %s61, %s63
      %p67 = scmp.eq.s32.totalorder %s13, 0
      %p68 = por %p66, %p67
      %p69 = scmp.ne.s32.totalorder %s61, %s63
      %p70 = scmp.eq.s32.totalorder %s18, 1
      %p71 = por %p69, %p70
      %p72 = scmp.ne.s32.totalorder %s63, %s64
      %p73 = scmp.eq.s32.totalorder %s18, 0
      %p74 = por %p72, %p73
      %p75 = scmp.ne.s32.totalorder %s63, %s64
      %p76 = scmp.eq.s32.totalorder %s19, 1
      %p77 = por %p75, %p76
      %p79 = scmp.ne.s32.totalorder %s64, %s78
      %p80 = scmp.eq.s32.totalorder %s19, 0
      %p81 = por %p79, %p80
      %s82 = sadd.s32 %s20, %s21
      %s83 = sadd.s32 %s32, %s28
      %s84 = ssub.s32 %s82, %s83
      %p85 = scmp.eq.s32.totalorder %s84, 0
      %s87 = sadd.s32 %s86, 1
      %s88 = scalar_select %p85, %s86, %s87
      %p91 = pneg %p85
      %p92 = scmp.eq.s32.totalorder %s13, 1
      %p93 = por %p91, %p92
      %p94 = scmp.ne.s32.totalorder %s86, %s89
      %p95 = scmp.eq.s32.totalorder %s13, 0
      %p96 = por %p94, %p95
      %p97 = scmp.ne.s32.totalorder %s86, %s89
      %p98 = scmp.eq.s32.totalorder %s18, 1
      %p99 = por %p97, %p98
      %p100 = scmp.ne.s32.totalorder %s89, %s90
      %p101 = scmp.eq.s32.totalorder %s18, 0
      %p102 = por %p100, %p101
      %p103 = scmp.ne.s32.totalorder %s89, %s90
      %p104 = scmp.eq.s32.totalorder %s19, 1
      %p105 = por %p103, %p104
      %p107 = scmp.ne.s32.totalorder %s90, %s106
      %p108 = scmp.eq.s32.totalorder %s19, 0
      %p109 = por %p107, %p108
      %s110 = ssub.s32 %s20, %s32
      %p111 = scmp.eq.s32.totalorder %s110, 0
      %s113 = sadd.s32 %s112, 1
      %s114 = scalar_select %p111, %s112, %s113
      %p117 = pneg %p111
      %p118 = scmp.eq.s32.totalorder %s13, 1
      %p119 = por %p117, %p118
      %p120 = scmp.ne.s32.totalorder %s112, %s115
      %p121 = scmp.eq.s32.totalorder %s13, 0
      %p122 = por %p120, %p121
      %p123 = scmp.ne.s32.totalorder %s112, %s115
      %p124 = scmp.eq.s32.totalorder %s18, 1
      %p125 = por %p123, %p124
      %p126 = scmp.ne.s32.totalorder %s115, %s116
      %p127 = scmp.eq.s32.totalorder %s18, 0
      %p128 = por %p126, %p127
      %p129 = scmp.ne.s32.totalorder %s115, %s116
      %p130 = scmp.eq.s32.totalorder %s19, 1
      %p131 = por %p129, %p130
      %p133 = scmp.ne.s32.totalorder %s116, %s132
      %p134 = scmp.eq.s32.totalorder %s19, 0
      %p135 = por %p133, %p134
      %p136 = scmp.le.s32.totalorder 1, %s13
      %p137 = scmp.lt.s32.totalorder %s13, 3
      %p138 = pnand %p136, %p137
      %p139 = pneg %p138
      // Predicated region
      $region9: #{residual_template_forward.4} parent=5 // pred_check
        _
      $region10: #{residual_template_forward.4} parent=5 // pred_check_branch
        %141 = sbr.rel (%p138) target = $region12
      $region11: #{residual_template_forward.4} parent=5 // pred_region
        %s142 = ssub.s32 %s13, 1
        // Predicated region
        $region13: #{residual_template_forward.4} parent=11 // pred_check
          %p143 = pneg %p74
        $region14: #{residual_template_forward.4} parent=11 // pred_check_branch
          %145 = sbr.rel (%p143) target = $region16
        $region15: #{residual_template_forward.4} parent=11 // pred_region
          _
        $region16: #{residual_template_forward.4} parent=11 // pred_fallthru
          _
      $region12: #{residual_template_forward.4} parent=5 // pred_fallthru
        _
      %p146 = scmp.lt.s32.totalorder %s13, 2
      // Predicated region
      $region17: #{residual_template_forward.4} parent=5 // pred_check
        %p147 = pneg %p146
      $region18: #{residual_template_forward.4} parent=5 // pred_check_branch
        %149 = sbr.rel (%p147) target = $region20
      $region19: #{residual_template_forward.4} parent=5 // pred_region
        // Predicated region
        $region21: #{residual_template_forward.4} parent=19 // pred_check
          %p150 = pneg %p47
        $region22: #{residual_template_forward.4} parent=19 // pred_check_branch
          %152 = sbr.rel (%p150) target = $region24
        $region23: #{residual_template_forward.4} parent=19 // pred_region
          %s153 = sand.u32 %s37, 1
          %s154 = scalar_lea.sflag [#allocation3], %s153
          %s155 = sand.u32 %s37, 1
          %s156 = smul.addr %s155, 64
          %s157 = scalar_lea.vmem [#allocation2], %s156
          %s158 = sadd.s32 %s20, %s21
          %160 = vsyncadd %s154, 0
          %s161 = smul.addr %s158, 8
          %s162 = smul.addr %s161, 8
          %s163 = scalar_lea.hbm %s0, %s162
          %s164 = sshll.u32 %s163, 4
          %s165 = int_to_ptr.hbm [resolvable:$true] %s164
          %s166 = sshll.u32 %s157, 4
          %s167 = int_to_ptr.vmem [resolvable:$true] %s166
          %172 = dma.hbm_to_vmem [thread:$0]  %s165, 1024, %s167, %s154, 128, 128, 8
        $region24: #{residual_template_forward.4} parent=19 // pred_fallthru
          _
      $region20: #{residual_template_forward.4} parent=5 // pred_fallthru
        _
      %p173 = scmp.le.s32.totalorder 1, %s13
      %p174 = scmp.lt.s32.totalorder %s13, 3
      %p175 = pnand %p173, %p174
      %p176 = pneg %p175
      // Predicated region
      $region25: #{residual_template_forward.4} parent=5 // pred_check
        _
      $region26: #{residual_template_forward.4} parent=5 // pred_check_branch
        %178 = sbr.rel (%p175) target = $region28
      $region27: #{residual_template_forward.4} parent=5 // pred_region
        %s179 = ssub.s32 %s13, 1
        %s180 = sand.u32 %s40, 1
        %s181 = scalar_lea.sflag [#allocation3], %s180
        %s182 = sand.u32 %s40, 1
        %s183 = smul.addr %s182, 64
        %s184 = scalar_lea.vmem [#allocation2], %s183
        // Predicated region
        $region29: #{residual_template_forward.4} parent=27 // pred_check
          %p185 = pneg %p53
        $region30: #{residual_template_forward.4} parent=27 // pred_check_branch
          %187 = sbr.rel (%p185) target = $region32
        $region31: #{residual_template_forward.4} parent=27 // pred_region
          %189 = dma.done %s181, 1024
        $region32: #{residual_template_forward.4} parent=27 // pred_fallthru
          _
        %s190 = sand.u32 %s40, 1
        %s191 = scalar_lea.sflag [#allocation3], %s190
        %s192 = sand.u32 %s40, 1
        %s193 = smul.addr %s192, 64
        %s194 = scalar_lea.vmem [#allocation2], %s193
        %p195 = pneg %p53
        %p196 = pneg %p50
        %p197 = pneg %p74
        %p198 = pneg %p71
        %p199 = pneg %p102
        %p200 = pneg %p99
        %s201 = sadd.s32 %s22, %s23
        %p202 = scmp.lt.s32.totalorder %s201, 1
        %s203 = scalar_select %p202, %s201, 1
        %s204 = smul.addr %s203, 8
        %s205 = smul.addr %s204, 4
        %s206 = scalar_lea.vmem %s2, %s205
        %p207 = pneg %p128
        %p208 = pneg %p125
        %p209 = scmp.lt.s32.totalorder %s22, 1
        %s210 = scalar_select %p209, %s22, 1
        %s211 = smul.addr %s210, 2
        %s212 = scalar_lea.vmem %s3, %s211
        %s213 = sadd.s32 %s22, %s23
        %s214 = sadd.s32 %s22, %s23
        %p215 = scmp.lt.s32.totalorder %s214, 1
        %s216 = scalar_select %p215, %s214, 1
        %s217 = smul.addr %s216, 8
        %s218 = smul.addr %s217, 4
        %s219 = scalar_lea.vmem %s2, %s218
        %s220 = sadd.s32 %s22, %s23
        %p221 = scmp.lt.s32.totalorder %s22, 1
        %s222 = scalar_select %p221, %s22, 1
        %s223 = smul.addr %s222, 2
        %s224 = scalar_lea.vmem %s3, %s223
        %p226 = scmp.eq.s32.totalorder %s23, 0
        // Predicated region
        $region33: #{residual_template_forward.4} parent=27 // pred_check
          %p227 = pneg %p226
        $region34: #{residual_template_forward.4} parent=27 // pred_check_branch
          %229 = sbr.rel (%p227) target = $region36
        $region35: #{residual_template_forward.4} parent=27 // pred_region
          %vm230 = vcmask 25600
          %231 = vst.msk [vmem:[%s224] sm:$0x3] %vm230, 0.0
        $region36: #{residual_template_forward.4} parent=27 // pred_fallthru
          _
        %v232 = vld [vmem:[%s184] sm:$0xff]
        %v233 = vld [vmem:[%s184 + $0x8] sm:$0xff]
        %v234 = vld [vmem:[%s184 + $0x10] sm:$0xff]
        %v235 = vld [vmem:[%s184 + $0x18] sm:$0xff]
        %v236 = vld [vmem:[%s184 + $0x20] sm:$0xff]
        %v237 = vld [vmem:[%s184 + $0x28] sm:$0xff]
        %v238 = vld [vmem:[%s184 + $0x30] sm:$0xff]
        %v239 = vld [vmem:[%s184 + $0x38] sm:$0xff]
        %v240 = vpack.c.bf16 %v233, %v232
        %v241 = vpack.c.bf16 %v235, %v234
        %v242 = vpack.c.bf16 %v237, %v236
        %v243 = vpack.c.bf16 %v239, %v238
        %v244 = vld [vmem:[%s1] sm:$0xf]
        %v245 = vld [vmem:[%s1 + $0x4] sm:$0xf]
        %v248 = vunpack.c.l.b16 %v244
        %v249 = vunpack.c.l.b16 %v245
        %v250 = vpack.c.b16 %v249, %v248
        %vm252 = vcmask 130048
        %v254 = vsel %vm252, %v240, 0
        %v257 = vsel %vm252, %v241, 0
        %v260 = vsel %vm252, %v242, 0
        %v263 = vsel %vm252, %v243, 0
        %265 = vmatpush.bf16.msra.mxu0 0
        %266 = vmatpush.bf16.msra.mxu0 0
        %267 = vmatpush.bf16.msra.mxu0 0
        %268 = vmatpush.bf16.msra.mxu0 0
        %269 = vmatpush.bf16.msra.mxu0 0
        %270 = vmatpush.bf16.msra.mxu0 0
        %271 = vmatpush.bf16.msra.mxu0 0
        %272 = vmatpush.bf16.msra.mxu0 %v250
        %273 = vmatmul.bf16.gmra.mxu0 %v254
        %v274 = vpop.f32.mrf.mxu0
        %v275 = vadd.f32 0.0, %v274
        %v276 = vpop.f32.mrf.mxu0
        %v277 = vadd.f32 0.0, %v276
        %278 = vmatmul.bf16.gmra.mxu0 %v257
        %v279 = vpop.f32.mrf.mxu0
        %v280 = vadd.f32 0.0, %v279
        %v281 = vpop.f32.mrf.mxu0
        %v282 = vadd.f32 0.0, %v281
        %283 = vmatmul.bf16.gmra.mxu0 %v260
        %v284 = vpop.f32.mrf.mxu0
        %v285 = vadd.f32 0.0, %v284
        %v286 = vpop.f32.mrf.mxu0
        %v287 = vadd.f32 0.0, %v286
        %288 = vmatmul.bf16.gmra.mxu0 %v263
        %v289 = vpop.f32.mrf.mxu0
        %v290 = vadd.f32 0.0, %v289
        %v291 = vpop.f32.mrf.mxu0
        %v292 = vadd.f32 0.0, %v291
        %293 = vdwg.mxu0
        %vm294 = vcmask 31744
        %v295 = vsel %vm294, %v275, 0.0
        %v296 = vsel %vm294, %v277, 0.0
        %v297 = vadd.f32 %v295, %v296
        %v298 = vsel %vm294, %v280, 0.0
        %v299 = vadd.f32 %v297, %v298
        %v300 = vsel %vm294, %v282, 0.0
        %v301 = vadd.f32 %v299, %v300
        %v302 = vsel %vm294, %v285, 0.0
        %v303 = vadd.f32 %v301, %v302
        %v304 = vsel %vm294, %v287, 0.0
        %v305 = vadd.f32 %v303, %v304
        %v306 = vsel %vm294, %v290, 0.0
        %v307 = vadd.f32 %v305, %v306
        %v308 = vsel %vm294, %v292, 0.0
        %v309 = vadd.f32 %v307, %v308
        %v310 = vrot.slane %v309, 4
        %v311 = vadd.f32 %v309, %v310
        %v312 = vrot.slane %v311, 2
        %v313 = vadd.f32 %v311, %v312
        %v314 = vrot.slane %v313, 1
        %v315 = vadd.f32 %v313, %v314
        %v316 = vmul.f32 %v275, %v275
        %v317 = vmul.f32 %v277, %v277
        %v318 = vmul.f32 %v280, %v280
        %v319 = vmul.f32 %v282, %v282
        %v320 = vmul.f32 %v285, %v285
        %v321 = vmul.f32 %v287, %v287
        %v322 = vmul.f32 %v290, %v290
        %v323 = vmul.f32 %v292, %v292
        %v324 = vsel %vm294, %v316, 0.0
        %v325 = vsel %vm294, %v317, 0.0
        %v326 = vadd.f32 %v324, %v325
        %v327 = vsel %vm294, %v318, 0.0
        %v328 = vadd.f32 %v326, %v327
        %v329 = vsel %vm294, %v319, 0.0
        %v330 = vadd.f32 %v328, %v329
        %v331 = vsel %vm294, %v320, 0.0
        %v332 = vadd.f32 %v330, %v331
        %v333 = vsel %vm294, %v321, 0.0
        %v334 = vadd.f32 %v332, %v333
        %v335 = vsel %vm294, %v322, 0.0
        %v336 = vadd.f32 %v334, %v335
        %v337 = vsel %vm294, %v323, 0.0
        %v338 = vadd.f32 %v336, %v337
        %v339 = vrot.slane %v338, 4
        %v340 = vadd.f32 %v338, %v339
        %v341 = vrot.slane %v340, 2
        %v342 = vadd.f32 %v340, %v341
        %v343 = vrot.slane %v342, 1
        %v344 = vadd.f32 %v342, %v343
        %v345 = vld [vmem:[%s224] sm:$0x3]
        %vm346 = vcmask 1040384
        %v347 = vsel %vm346, %v315, %v344
        %v348 = vadd.f32 %v345, %v347
        %vm349 = vcmask 25600
        %350 = vst.msk [vmem:[%s224] sm:$0x3] %vm349, %v348
        %v351 = vpack.c.bf16 %v275, %v275
        %v352 = vpack.c.bf16 %v277, %v277
        %v353 = vpack.c.bf16 %v280, %v280
        %v354 = vpack.c.bf16 %v282, %v282
        %v355 = vpack.c.bf16 %v285, %v285
        %v356 = vpack.c.bf16 %v287, %v287
        %v357 = vpack.c.bf16 %v290, %v290
        %v358 = vpack.c.bf16 %v292, %v292
        %vm359 = vcmask 27648
        %360 = vst.msk [vmem:[%s219] sm:$0xf] %vm359, %v351
        %361 = vst.msk [vmem:[%s219 + $0x4] sm:$0xf] %vm359, %v352
        %362 = vst.msk [vmem:[%s219 + $0x8] sm:$0xf] %vm359, %v353
        %363 = vst.msk [vmem:[%s219 + $0xc] sm:$0xf] %vm359, %v354
        %364 = vst.msk [vmem:[%s219 + $0x10] sm:$0xf] %vm359, %v355
        %365 = vst.msk [vmem:[%s219 + $0x14] sm:$0xf] %vm359, %v356
        %366 = vst.msk [vmem:[%s219 + $0x18] sm:$0xf] %vm359, %v357
        %367 = vst.msk [vmem:[%s219 + $0x1c] sm:$0xf] %vm359, %v358
        %s368 = sadd.s32 %s22, %s23
        %p369 = scmp.lt.s32.totalorder %s368, 1
        %s370 = scalar_select %p369, %s368, 1
        %s371 = smul.addr %s370, 8
        %s372 = smul.addr %s371, 4
        %s373 = scalar_lea.vmem %s2, %s372
        %p374 = scmp.lt.s32.totalorder %s22, 1
        %s375 = scalar_select %p374, %s22, 1
        %s376 = smul.addr %s375, 2
        %s377 = scalar_lea.vmem %s3, %s376
        // Predicated region
        $region37: #{residual_template_forward.4} parent=27 // pred_check
          %p378 = pneg %p99
        $region38: #{residual_template_forward.4} parent=27 // pred_check_branch
          %380 = sbr.rel (%p378) target = $region40
        $region39: #{residual_template_forward.4} parent=27 // pred_region
          %s381 = sadd.s32 %s22, %s23
        $region40: #{residual_template_forward.4} parent=27 // pred_fallthru
          _
        // Predicated region
        $region41: #{residual_template_forward.4} parent=27 // pred_check
          %p382 = pneg %p125
        $region42: #{residual_template_forward.4} parent=27 // pred_check_branch
          %384 = sbr.rel (%p382) target = $region44
        $region43: #{residual_template_forward.4} parent=27 // pred_region
          _
        $region44: #{residual_template_forward.4} parent=27 // pred_fallthru
          _
      $region28: #{residual_template_forward.4} parent=5 // pred_fallthru
        _
      %p385 = scmp.le.s32.totalorder 2, %s13
      // Predicated region
      $region45: #{residual_template_forward.4} parent=5 // pred_check
        %p386 = pneg %p385
      $region46: #{residual_template_forward.4} parent=5 // pred_check_branch
        %388 = sbr.rel (%p386) target = $region48
      $region47: #{residual_template_forward.4} parent=5 // pred_region
        %s389 = ssub.s32 %s13, 2
        // Predicated region
        $region49: #{residual_template_forward.4} parent=47 // pred_check
          %p390 = pneg %p105
        $region50: #{residual_template_forward.4} parent=47 // pred_check_branch
          %392 = sbr.rel (%p390) target = $region52
        $region51: #{residual_template_forward.4} parent=47 // pred_region
          %s393 = sadd.s32 %s24, %s25
          %p394 = scmp.lt.s32.totalorder %s393, 1
          %s395 = scalar_select %p394, %s393, 1
          %s396 = smul.addr %s395, 8
          %s397 = smul.addr %s396, 4
          %s398 = scalar_lea.vmem %s2, %s397
        $region52: #{residual_template_forward.4} parent=47 // pred_fallthru
          _
        // Predicated region
        $region53: #{residual_template_forward.4} parent=47 // pred_check
          %p399 = pneg %p131
        $region54: #{residual_template_forward.4} parent=47 // pred_check_branch
          %401 = sbr.rel (%p399) target = $region56
        $region55: #{residual_template_forward.4} parent=47 // pred_region
          %p402 = scmp.lt.s32.totalorder %s24, 1
          %s403 = scalar_select %p402, %s24, 1
          %s404 = smul.addr %s403, 2
          %s405 = scalar_lea.vmem %s3, %s404
        $region56: #{residual_template_forward.4} parent=47 // pred_fallthru
          _
      $region48: #{residual_template_forward.4} parent=5 // pred_fallthru
        _
    $region6: #{residual_template_forward.4} parent=1 // loop_footer
      %s17 = sadd.s32 1, %s13
    $region7: #{residual_template_forward.4} parent=1 // loop_footer_branch
      %12 = sbr.rel target = $region3
    $region8: #{residual_template_forward.4} parent=1 // loop_exit
      _
    %406 = vsyncpa [#allocation3], 1
    %s407 = scalar_lea.sflag [#allocation3], 1
    %408 = vsyncpa %s407, 1

// kernel: residual_template_forward.6
$region0: #{residual_template_forward.6}
  #allocation0 [shape = 'u32[]', space=smem, size = 0x4, offset = 0x4, fixed_abs, tag = 'smem constant byte address 0x4 - core index']
  #allocation1 [shape = 'u32[72,128]{1,0:T(1,128)}', space=vmem, size = 0x9000, scoped, tag = 'internal scratch']
  %s0 = inlined_call_operand.vmem [shape: bf16[2,8,8,4], index: 0, kind: input, shape index: {}]
  %s1 = inlined_call_operand.vmem [shape: f32[1,4], index: 1, kind: input, shape index: {}]
  %s2 = inlined_call_operand.vmem [shape: f32[1,4], index: 2, kind: input, shape index: {}]
  %s3 = inlined_call_operand.vmem [shape: bf16[4,16], index: 3, kind: input, shape index: {}]
  %s4 = inlined_call_operand.vmem [shape: f32[2,2,16], index: 4, kind: output, shape index: {}]
  %s5 = sld [smem:[#allocation0]]
  $region53: #{residual_template_forward.6} parent=0
    _
  %s7 = ssub.s32 1, %s5
  %s8 = scalar_select 0, %s7, %s5
  loop: start=0, step=1, limit=4
  $region2: #{residual_template_forward.6} parent=0 // loop_pre_header
    _
  $region3: #{residual_template_forward.6} parent=0 // loop_header
    %s10 = sphi 0, %s14
    %p11 = scmp.ge.s32.totalorder %s10, 4
    %s17 = sphi 0, %s29
    %s18 = sphi 0, %s25
    %s19 = sphi 0, %s17
    %s20 = sphi 0, %s18
    %s21 = sphi 0, %s19
    %s22 = sphi 0, %s20
    %s34 = sphi 0, %s36
    %s37 = sphi 0, %s34
    %s38 = sphi 0, %s37
    %s54 = sphi 0, %s38
    %s58 = sphi 0, %s58
    %s60 = sphi 0, %s58
    %s61 = sphi 0, %s60
    %s75 = sphi 0, %s61
    %s79 = sphi 0, %s79
    %s81 = sphi 0, %s79
    %s82 = sphi 0, %s81
    %s96 = sphi 0, %s82
    %s100 = sphi 0, %s100
    %s102 = sphi 0, %s100
    %s103 = sphi 0, %s102
    %s117 = sphi 0, %s103
    %s123 = sphi 0, %s125
    %s126 = sphi 0, %s123
    %s127 = sphi 0, %s126
    %s143 = sphi 0, %s127
  $region4: #{residual_template_forward.6} parent=0 // loop_header_branch
    %13 = sbr.rel (%p11) target = $region8
  $region5: #{residual_template_forward.6} parent=0 // loop_body
    %s15 = ssub.s32 %s10, 1
    %s16 = ssub.s32 %s10, 2
    %s23 = sadd.s32 1, %s18
    %p24 = scmp.ge.s32.totalorder %s23, 1
    %s25 = scalar_select %p24, 0, %s23
    %s26 = sadd.s32 1, %s17
    %s27 = scalar_select %p24, %s26, %s17
    %p28 = scmp.ge.s32.totalorder %s27, 2
    %s29 = scalar_select %p28, 0, %s27
    %s30 = sadd.s32 %s17, %s18
    %s31 = sadd.s32 %s29, %s25
    %s32 = ssub.s32 %s30, %s31
    %p33 = scmp.eq.s32.totalorder %s32, 0
    %s35 = sadd.s32 %s34, 1
    %s36 = scalar_select %p33, %s34, %s35
    %p39 = pneg %p33
    %p40 = scmp.eq.s32.totalorder %s10, 1
    %p41 = por %p39, %p40
    %p42 = scmp.ne.s32.totalorder %s34, %s37
    %p43 = scmp.eq.s32.totalorder %s10, 0
    %p44 = por %p42, %p43
    %p45 = scmp.ne.s32.totalorder %s34, %s37
    %p46 = scmp.eq.s32.totalorder %s15, 1
    %p47 = por %p45, %p46
    %p48 = scmp.ne.s32.totalorder %s37, %s38
    %p49 = scmp.eq.s32.totalorder %s15, 0
    %p50 = por %p48, %p49
    %p51 = scmp.ne.s32.totalorder %s37, %s38
    %p52 = scmp.eq.s32.totalorder %s16, 1
    %p53 = por %p51, %p52
    %p55 = scmp.ne.s32.totalorder %s38, %s54
    %p56 = scmp.eq.s32.totalorder %s16, 0
    %p57 = por %p55, %p56
    %s59 = sadd.s32 %s58, 1
    %p62 = scmp.eq.s32.totalorder %s10, 1
    %p63 = scmp.ne.s32.totalorder %s58, %s60
    %p64 = scmp.eq.s32.totalorder %s10, 0
    %p65 = por %p63, %p64
    %p66 = scmp.ne.s32.totalorder %s58, %s60
    %p67 = scmp.eq.s32.totalorder %s15, 1
    %p68 = por %p66, %p67
    %p69 = scmp.ne.s32.totalorder %s60, %s61
    %p70 = scmp.eq.s32.totalorder %s15, 0
    %p71 = por %p69, %p70
    %p72 = scmp.ne.s32.totalorder %s60, %s61
    %p73 = scmp.eq.s32.totalorder %s16, 1
    %p74 = por %p72, %p73
    %p76 = scmp.ne.s32.totalorder %s61, %s75
    %p77 = scmp.eq.s32.totalorder %s16, 0
    %p78 = por %p76, %p77
    %s80 = sadd.s32 %s79, 1
    %p83 = scmp.eq.s32.totalorder %s10, 1
    %p84 = scmp.ne.s32.totalorder %s79, %s81
    %p85 = scmp.eq.s32.totalorder %s10, 0
    %p86 = por %p84, %p85
    %p87 = scmp.ne.s32.totalorder %s79, %s81
    %p88 = scmp.eq.s32.totalorder %s15, 1
    %p89 = por %p87, %p88
    %p90 = scmp.ne.s32.totalorder %s81, %s82
    %p91 = scmp.eq.s32.totalorder %s15, 0
    %p92 = por %p90, %p91
    %p93 = scmp.ne.s32.totalorder %s81, %s82
    %p94 = scmp.eq.s32.totalorder %s16, 1
    %p95 = por %p93, %p94
    %p97 = scmp.ne.s32.totalorder %s82, %s96
    %p98 = scmp.eq.s32.totalorder %s16, 0
    %p99 = por %p97, %p98
    %s101 = sadd.s32 %s100, 1
    %p104 = scmp.eq.s32.totalorder %s10, 1
    %p105 = scmp.ne.s32.totalorder %s100, %s102
    %p106 = scmp.eq.s32.totalorder %s10, 0
    %p107 = por %p105, %p106
    %p108 = scmp.ne.s32.totalorder %s100, %s102
    %p109 = scmp.eq.s32.totalorder %s15, 1
    %p110 = por %p108, %p109
    %p111 = scmp.ne.s32.totalorder %s102, %s103
    %p112 = scmp.eq.s32.totalorder %s15, 0
    %p113 = por %p111, %p112
    %p114 = scmp.ne.s32.totalorder %s102, %s103
    %p115 = scmp.eq.s32.totalorder %s16, 1
    %p116 = por %p114, %p115
    %p118 = scmp.ne.s32.totalorder %s103, %s117
    %p119 = scmp.eq.s32.totalorder %s16, 0
    %p120 = por %p118, %p119
    %s121 = ssub.s32 %s17, %s29
    %p122 = scmp.eq.s32.totalorder %s121, 0
    %s124 = sadd.s32 %s123, 1
    %s125 = scalar_select %p122, %s123, %s124
    %p128 = pneg %p122
    %p129 = scmp.eq.s32.totalorder %s10, 1
    %p130 = por %p128, %p129
    %p131 = scmp.ne.s32.totalorder %s123, %s126
    %p132 = scmp.eq.s32.totalorder %s10, 0
    %p133 = por %p131, %p132
    %p134 = scmp.ne.s32.totalorder %s123, %s126
    %p135 = scmp.eq.s32.totalorder %s15, 1
    %p136 = por %p134, %p135
    %p137 = scmp.ne.s32.totalorder %s126, %s127
    %p138 = scmp.eq.s32.totalorder %s15, 0
    %p139 = por %p137, %p138
    %p140 = scmp.ne.s32.totalorder %s126, %s127
    %p141 = scmp.eq.s32.totalorder %s16, 1
    %p142 = por %p140, %p141
    %p144 = scmp.ne.s32.totalorder %s127, %s143
    %p145 = scmp.eq.s32.totalorder %s16, 0
    %p146 = por %p144, %p145
    %p147 = scmp.le.s32.totalorder 1, %s10
    %p148 = scmp.lt.s32.totalorder %s10, 3
    %p149 = pnand %p147, %p148
    %p150 = pneg %p149
    // Predicated region
    $region9: #{residual_template_forward.6} parent=5 // pred_check
      _
    $region10: #{residual_template_forward.6} parent=5 // pred_check_branch
      %152 = sbr.rel (%p149) target = $region12
    $region11: #{residual_template_forward.6} parent=5 // pred_region
      %s153 = ssub.s32 %s10, 1
      // Predicated region
      $region13: #{residual_template_forward.6} parent=11 // pred_check
        %p154 = pneg %p71
      $region14: #{residual_template_forward.6} parent=11 // pred_check_branch
        %156 = sbr.rel (%p154) target = $region16
      $region15: #{residual_template_forward.6} parent=11 // pred_region
        _
      $region16: #{residual_template_forward.6} parent=11 // pred_fallthru
        _
      // Predicated region
      $region17: #{residual_template_forward.6} parent=11 // pred_check
        %p157 = pneg %p92
      $region18: #{residual_template_forward.6} parent=11 // pred_check_branch
        %159 = sbr.rel (%p157) target = $region20
      $region19: #{residual_template_forward.6} parent=11 // pred_region
        _
      $region20: #{residual_template_forward.6} parent=11 // pred_fallthru
        _
      // Predicated region
      $region21: #{residual_template_forward.6} parent=11 // pred_check
        %p160 = pneg %p113
      $region22: #{residual_template_forward.6} parent=11 // pred_check_branch
        %162 = sbr.rel (%p160) target = $region24
      $region23: #{residual_template_forward.6} parent=11 // pred_region
        _
      $region24: #{residual_template_forward.6} parent=11 // pred_fallthru
        _
    $region12: #{residual_template_forward.6} parent=5 // pred_fallthru
      _
    %p163 = scmp.lt.s32.totalorder %s10, 2
    // Predicated region
    $region25: #{residual_template_forward.6} parent=5 // pred_check
      %p164 = pneg %p163
    $region26: #{residual_template_forward.6} parent=5 // pred_check_branch
      %166 = sbr.rel (%p164) target = $region28
    $region27: #{residual_template_forward.6} parent=5 // pred_region
      // Predicated region
      $region29: #{residual_template_forward.6} parent=27 // pred_check
        %p167 = pneg %p44
      $region30: #{residual_template_forward.6} parent=27 // pred_check_branch
        %169 = sbr.rel (%p167) target = $region32
      $region31: #{residual_template_forward.6} parent=27 // pred_region
        %s170 = sadd.s32 %s17, %s18
        %p171 = scmp.lt.s32.totalorder %s170, 1
        %s172 = scalar_select %p171, %s170, 1
        %s173 = smul.addr %s172, 8
        %s174 = smul.addr %s173, 4
        %s175 = scalar_lea.vmem %s0, %s174
        %s176 = sadd.s32 %s17, %s18
      $region32: #{residual_template_forward.6} parent=27 // pred_fallthru
        _
    $region28: #{residual_template_forward.6} parent=5 // pred_fallthru
      _
    %p177 = scmp.le.s32.totalorder 1, %s10
    %p178 = scmp.lt.s32.totalorder %s10, 3
    %p179 = pnand %p177, %p178
    %p180 = pneg %p179
    // Predicated region
    $region33: #{residual_template_forward.6} parent=5 // pred_check
      _
    $region34: #{residual_template_forward.6} parent=5 // pred_check_branch
      %182 = sbr.rel (%p179) target = $region36
    $region35: #{residual_template_forward.6} parent=5 // pred_region
      %s183 = ssub.s32 %s10, 1
      %s184 = sadd.s32 %s19, %s20
      %p185 = scmp.lt.s32.totalorder %s184, 1
      %s186 = scalar_select %p185, %s184, 1
      %s187 = smul.addr %s186, 8
      %s188 = smul.addr %s187, 4
      %s189 = scalar_lea.vmem %s0, %s188
      %p190 = pneg %p50
      %p191 = pneg %p47
      %p192 = pneg %p71
      %p193 = pneg %p68
      %p194 = pneg %p92
      %p195 = pneg %p89
      %p196 = pneg %p113
      %p197 = pneg %p110
      %p198 = pneg %p139
      %p199 = pneg %p136
      %p200 = scmp.lt.s32.totalorder %s19, 1
      %s201 = scalar_select %p200, %s19, 1
      %s202 = smul.addr %s201, 2
      %s203 = scalar_lea.vmem %s4, %s202
      %s204 = sadd.s32 %s19, %s20
      %p205 = scmp.lt.s32.totalorder %s204, 1
      %s206 = scalar_select %p205, %s204, 1
      %s207 = smul.addr %s206, 8
      %s208 = smul.addr %s207, 4
      %s209 = scalar_lea.vmem %s0, %s208
      %s210 = sadd.s32 %s19, %s20
      %p211 = scmp.lt.s32.totalorder %s19, 1
      %s212 = scalar_select %p211, %s19, 1
      %s213 = smul.addr %s212, 2
      %s214 = scalar_lea.vmem %s4, %s213
      %p216 = scmp.eq.s32.totalorder %s20, 0
      // Predicated region
      $region37: #{residual_template_forward.6} parent=35 // pred_check
        %p217 = pneg %p216
      $region38: #{residual_template_forward.6} parent=35 // pred_check_branch
        %219 = sbr.rel (%p217) target = $region40
      $region39: #{residual_template_forward.6} parent=35 // pred_region
        %vm220 = vcmask 123904
        %221 = vst.msk [vmem:[%s214] sm:$0x3] %vm220, 0.0
      $region40: #{residual_template_forward.6} parent=35 // pred_fallthru
        _
      %v222 = vld [vmem:[%s209] sm:$0xf]
      %v223 = vld [vmem:[%s209 + $0x4] sm:$0xf]
      %v224 = vld [vmem:[%s209 + $0x8] sm:$0xf]
      %v225 = vld [vmem:[%s209 + $0xc] sm:$0xf]
      %v226 = vld [vmem:[%s209 + $0x10] sm:$0xf]
      %v227 = vld [vmem:[%s209 + $0x14] sm:$0xf]
      %v228 = vld [vmem:[%s209 + $0x18] sm:$0xf]
      %v229 = vld [vmem:[%s209 + $0x1c] sm:$0xf]
      %v230 = vunpack.c.l.bf16 %v222
      %v231 = vunpack.c.l.bf16 %v223
      %v232 = vunpack.c.l.bf16 %v224
      %v233 = vunpack.c.l.bf16 %v225
      %v234 = vunpack.c.l.bf16 %v226
      %v235 = vunpack.c.l.bf16 %v227
      %v236 = vunpack.c.l.bf16 %v228
      %v237 = vunpack.c.l.bf16 %v229
      %v238 = vld [vmem:[%s1] sm:$0x1]
      %v240 = vperm.slane %v238, 0
      %v242 = vmul.f32 %v230, %v240
      %v243 = vmul.f32 %v231, %v240
      %v244 = vmul.f32 %v232, %v240
      %v245 = vmul.f32 %v233, %v240
      %v246 = vmul.f32 %v234, %v240
      %v247 = vmul.f32 %v235, %v240
      %v248 = vmul.f32 %v236, %v240
      %v249 = vmul.f32 %v237, %v240
      %v250 = vld [vmem:[%s2] sm:$0x1]
      %v252 = vperm.slane %v250, 0
      %v254 = vadd.f32 %v242, %v252
      %v255 = vadd.f32 %v243, %v252
      %v256 = vadd.f32 %v244, %v252
      %v257 = vadd.f32 %v245, %v252
      %v258 = vadd.f32 %v246, %v252
      %v259 = vadd.f32 %v247, %v252
      %v260 = vadd.f32 %v248, %v252
      %v261 = vadd.f32 %v249, %v252
      %v262 = vmax.f32 %v254, 0.0
      %v263 = vmax.f32 %v255, 0.0
      %v264 = vmax.f32 %v256, 0.0
      %v265 = vmax.f32 %v257, 0.0
      %v266 = vmax.f32 %v258, 0.0
      %v267 = vmax.f32 %v259, 0.0
      %v268 = vmax.f32 %v260, 0.0
      %v269 = vmax.f32 %v261, 0.0
      %v270 = vpack.c.bf16 %v263, %v262
      %v271 = vpack.c.bf16 %v265, %v264
      %v272 = vpack.c.bf16 %v267, %v266
      %v273 = vpack.c.bf16 %v269, %v268
      %v274 = vld [vmem:[%s3] sm:$0x3]
      %vm275 = vcmask 31744
      %v277 = vsel %vm275, %v270, 0
      %v280 = vsel %vm275, %v271, 0
      %v283 = vsel %vm275, %v272, 0
      %v286 = vsel %vm275, %v273, 0
      %vm288 = vcmask 1041408
      %v290 = vsel %vm288, %v274, 0
      %292 = vmatpush.bf16.msra.mxu0 0
      %293 = vmatpush.bf16.msra.mxu0 0
      %294 = vmatpush.bf16.msra.mxu0 0
      %295 = vmatpush.bf16.msra.mxu0 0
      %296 = vmatpush.bf16.msra.mxu0 0
      %297 = vmatpush.bf16.msra.mxu0 0
      %298 = vmatpush.bf16.msra.mxu0 0
      %299 = vmatpush.bf16.msra.mxu0 %v290
      %300 = vmatmul.bf16.gmra.mxu0 %v277
      %v301 = vpop.f32.mrf.mxu0
      %v302 = vadd.f32 0.0, %v301
      %v303 = vpop.f32.mrf.mxu0
      %v304 = vadd.f32 0.0, %v303
      %305 = vmatmul.bf16.gmra.mxu0 %v280
      %v306 = vpop.f32.mrf.mxu0
      %v307 = vadd.f32 0.0, %v306
      %v308 = vpop.f32.mrf.mxu0
      %v309 = vadd.f32 0.0, %v308
      %310 = vmatmul.bf16.gmra.mxu0 %v283
      %v311 = vpop.f32.mrf.mxu0
      %v312 = vadd.f32 0.0, %v311
      %v313 = vpop.f32.mrf.mxu0
      %v314 = vadd.f32 0.0, %v313
      %315 = vmatmul.bf16.gmra.mxu0 %v286
      %v316 = vpop.f32.mrf.mxu0
      %v317 = vadd.f32 0.0, %v316
      %v318 = vpop.f32.mrf.mxu0
      %v319 = vadd.f32 0.0, %v318
      %320 = vdwg.mxu0
      %vm321 = vcmask 130048
      %v322 = vsel %vm321, %v302, 0.0
      %v323 = vsel %vm321, %v304, 0.0
      %v324 = vadd.f32 %v322, %v323
      %v325 = vsel %vm321, %v307, 0.0
      %v326 = vadd.f32 %v324, %v325
      %v327 = vsel %vm321, %v309, 0.0
      %v328 = vadd.f32 %v326, %v327
      %v329 = vsel %vm321, %v312, 0.0
      %v330 = vadd.f32 %v328, %v329
      %v331 = vsel %vm321, %v314, 0.0
      %v332 = vadd.f32 %v330, %v331
      %v333 = vsel %vm321, %v317, 0.0
      %v334 = vadd.f32 %v332, %v333
      %v335 = vsel %vm321, %v319, 0.0
      %v336 = vadd.f32 %v334, %v335
      %v337 = vrot.slane %v336, 4
      %v338 = vadd.f32 %v336, %v337
      %v339 = vrot.slane %v338, 2
      %v340 = vadd.f32 %v338, %v339
      %v341 = vrot.slane %v340, 1
      %v342 = vadd.f32 %v340, %v341
      %v343 = vmul.f32 %v302, %v302
      %v344 = vmul.f32 %v304, %v304
      %v345 = vmul.f32 %v307, %v307
      %v346 = vmul.f32 %v309, %v309
      %v347 = vmul.f32 %v312, %v312
      %v348 = vmul.f32 %v314, %v314
      %v349 = vmul.f32 %v317, %v317
      %v350 = vmul.f32 %v319, %v319
      %v351 = vsel %vm321, %v343, 0.0
      %v352 = vsel %vm321, %v344, 0.0
      %v353 = vadd.f32 %v351, %v352
      %v354 = vsel %vm321, %v345, 0.0
      %v355 = vadd.f32 %v353, %v354
      %v356 = vsel %vm321, %v346, 0.0
      %v357 = vadd.f32 %v355, %v356
      %v358 = vsel %vm321, %v347, 0.0
      %v359 = vadd.f32 %v357, %v358
      %v360 = vsel %vm321, %v348, 0.0
      %v361 = vadd.f32 %v359, %v360
      %v362 = vsel %vm321, %v349, 0.0
      %v363 = vadd.f32 %v361, %v362
      %v364 = vsel %vm321, %v350, 0.0
      %v365 = vadd.f32 %v363, %v364
      %v366 = vrot.slane %v365, 4
      %v367 = vadd.f32 %v365, %v366
      %v368 = vrot.slane %v367, 2
      %v369 = vadd.f32 %v367, %v368
      %v370 = vrot.slane %v369, 1
      %v371 = vadd.f32 %v369, %v370
      %v372 = vld [vmem:[%s214] sm:$0x3]
      %vm373 = vcmask 1040384
      %v374 = vsel %vm373, %v342, %v371
      %v375 = vadd.f32 %v372, %v374
      %vm376 = vcmask 123904
      %377 = vst.msk [vmem:[%s214] sm:$0x3] %vm376, %v375
      %p378 = scmp.lt.s32.totalorder %s19, 1
      %s379 = scalar_select %p378, %s19, 1
      %s380 = smul.addr %s379, 2
      %s381 = scalar_lea.vmem %s4, %s380
      // Predicated region
      $region41: #{residual_template_forward.6} parent=35 // pred_check
        %p382 = pneg %p136
      $region42: #{residual_template_forward.6} parent=35 // pred_check_branch
        %384 = sbr.rel (%p382) target = $region44
      $region43: #{residual_template_forward.6} parent=35 // pred_region
        _
      $region44: #{residual_template_forward.6} parent=35 // pred_fallthru
        _
    $region36: #{residual_template_forward.6} parent=5 // pred_fallthru
      _
    %p385 = scmp.le.s32.totalorder 2, %s10
    // Predicated region
    $region45: #{residual_template_forward.6} parent=5 // pred_check
      %p386 = pneg %p385
    $region46: #{residual_template_forward.6} parent=5 // pred_check_branch
      %388 = sbr.rel (%p386) target = $region48
    $region47: #{residual_template_forward.6} parent=5 // pred_region
      %s389 = ssub.s32 %s10, 2
      // Predicated region
      $region49: #{residual_template_forward.6} parent=47 // pred_check
        %p390 = pneg %p142
      $region50: #{residual_template_forward.6} parent=47 // pred_check_branch
        %392 = sbr.rel (%p390) target = $region52
      $region51: #{residual_template_forward.6} parent=47 // pred_region
        %p393 = scmp.lt.s32.totalorder %s21, 1
        %s394 = scalar_select %p393, %s21, 1
        %s395 = smul.addr %s394, 2
        %s396 = scalar_lea.vmem %s4, %s395
      $region52: #{residual_template_forward.6} parent=47 // pred_fallthru
        _
    $region48: #{residual_template_forward.6} parent=5 // pred_fallthru
      _
  $region6: #{residual_template_forward.6} parent=0 // loop_footer
    %s14 = sadd.s32 1, %s10
  $region7: #{residual_template_forward.6} parent=0 // loop_footer_branch
    %9 = sbr.rel target = $region3
  $region8: #{residual_template_forward.6} parent=0 // loop_exit
    _

// kernel: residual_template_forward.7
$region0: #{residual_template_forward.7}
  #allocation0 [shape = 'u32[]', space=smem, size = 0x4, offset = 0x4, fixed_abs, tag = 'smem constant byte address 0x4 - core index']
  #allocation1 [shape = 'u32[72,128]{1,0:T(1,128)}', space=vmem, size = 0x9000, scoped, tag = 'internal scratch']
  %s0 = inlined_call_operand.vmem [shape: bf16[2,8,8,4], index: 0, kind: input, shape index: {}]
  %s1 = inlined_call_operand.hbm [shape: f32[2,8,8,16], index: 1, kind: input, shape index: {}]
  %s2 = inlined_call_operand.vmem [shape: f32[1,4], index: 2, kind: input, shape index: {}]
  %s3 = inlined_call_operand.vmem [shape: f32[1,4], index: 3, kind: input, shape index: {}]
  %s4 = inlined_call_operand.vmem [shape: bf16[4,16], index: 4, kind: input, shape index: {}]
  %s5 = inlined_call_operand.vmem [shape: f32[1,16], index: 5, kind: input, shape index: {}]
  %s6 = inlined_call_operand.vmem [shape: f32[1,16], index: 6, kind: input, shape index: {}]
  %s7 = inlined_call_operand.hbm [shape: bf16[2,8,8,16], index: 7, kind: output, shape index: {}]
  %s8 = sld [smem:[#allocation0]]
  $region42: #{residual_template_forward.7} parent=0
    _
  %s10 = ssub.s32 1, %s8
  %s11 = scalar_select 0, %s10, %s8
  $region1: #{residual_template_forward.7} parent=0
    #allocation2 [shape = 'u8[65536]{0}', space=vmem, size = 0x10000, scoped, tag = 'input window, operand 1, single buffered']
    #allocation3 [shape = 's32[1]{0}', space=sflag, size = 0x4, scoped, tag = 'scoped memory for residual_template_forward.7']
    #allocation4 [shape = 's32[1]{0}', space=sflag, size = 0x4, scoped, tag = 'scoped memory for residual_template_forward.7']
    #allocation5 [shape = 'u8[32768]{0}', space=vmem, size = 0x8000, scoped, tag = 'output window, operand 0, single buffered']
    %12 = vsyncpa [#allocation3], 0
    %13 = vsyncpa [#allocation4], 0
    // Predicated region
    $region2: #{residual_template_forward.7} parent=1 // pred_check
      _
    $region3: #{residual_template_forward.7} parent=1 // pred_check_branch
      %15 = sbr.rel (0) target = $region5
    $region4: #{residual_template_forward.7} parent=1 // pred_region
      _
    $region5: #{residual_template_forward.7} parent=1 // pred_fallthru
      _
    // Predicated region
    $region6: #{residual_template_forward.7} parent=1 // pred_check
      _
    $region7: #{residual_template_forward.7} parent=1 // pred_check_branch
      %17 = sbr.rel (0) target = $region9
    $region8: #{residual_template_forward.7} parent=1 // pred_region
      %19 = vsyncadd [#allocation3], 0
      %s20 = sshll.u32 %s1, 4
      %s21 = int_to_ptr.hbm [resolvable:$true] %s20
      %s22 = sshll.u32 [#allocation2], 4
      %s23 = int_to_ptr.vmem [resolvable:$true] %s22
      %28 = dma.hbm_to_vmem [thread:$0]  %s21, 2048, %s23, [#allocation3], 128, 128, 8
    $region9: #{residual_template_forward.7} parent=1 // pred_fallthru
      _
    // Predicated region
    $region10: #{residual_template_forward.7} parent=1 // pred_check
      _
    $region11: #{residual_template_forward.7} parent=1 // pred_check_branch
      %30 = sbr.rel (0) target = $region13
    $region12: #{residual_template_forward.7} parent=1 // pred_region
      _
    $region13: #{residual_template_forward.7} parent=1 // pred_fallthru
      _
    // Predicated region
    $region14: #{residual_template_forward.7} parent=1 // pred_check
      _
    $region15: #{residual_template_forward.7} parent=1 // pred_check_branch
      %32 = sbr.rel (0) target = $region17
    $region16: #{residual_template_forward.7} parent=1 // pred_region
      _
    $region17: #{residual_template_forward.7} parent=1 // pred_fallthru
      _
    // Predicated region
    $region18: #{residual_template_forward.7} parent=1 // pred_check
      _
    $region19: #{residual_template_forward.7} parent=1 // pred_check_branch
      %34 = sbr.rel (0) target = $region21
    $region20: #{residual_template_forward.7} parent=1 // pred_region
      _
    $region21: #{residual_template_forward.7} parent=1 // pred_fallthru
      _
    // Predicated region
    $region22: #{residual_template_forward.7} parent=1 // pred_check
      _
    $region23: #{residual_template_forward.7} parent=1 // pred_check_branch
      %36 = sbr.rel (0) target = $region25
    $region24: #{residual_template_forward.7} parent=1 // pred_region
      _
    $region25: #{residual_template_forward.7} parent=1 // pred_fallthru
      _
    // Predicated region
    $region26: #{residual_template_forward.7} parent=1 // pred_check
      _
    $region27: #{residual_template_forward.7} parent=1 // pred_check_branch
      %38 = sbr.rel (0) target = $region29
    $region28: #{residual_template_forward.7} parent=1 // pred_region
      _
    $region29: #{residual_template_forward.7} parent=1 // pred_fallthru
      _
    // Predicated region
    $region30: #{residual_template_forward.7} parent=1 // pred_check
      _
    $region31: #{residual_template_forward.7} parent=1 // pred_check_branch
      %40 = sbr.rel (0) target = $region33
    $region32: #{residual_template_forward.7} parent=1 // pred_region
      %42 = dma.done [#allocation3], 2048
    $region33: #{residual_template_forward.7} parent=1 // pred_fallthru
      _
    %v44 = vld [vmem:[%s0] sm:$0xf]
    %v45 = vld [vmem:[%s0 + $0x4] sm:$0xf]
    %v46 = vld [vmem:[%s0 + $0x8] sm:$0xf]
    %v47 = vld [vmem:[%s0 + $0xc] sm:$0xf]
    %v48 = vld [vmem:[%s0 + $0x10] sm:$0xf]
    %v49 = vld [vmem:[%s0 + $0x14] sm:$0xf]
    %v50 = vld [vmem:[%s0 + $0x18] sm:$0xf]
    %v51 = vld [vmem:[%s0 + $0x1c] sm:$0xf]
    %v52 = vld [vmem:[%s0 + $0x20] sm:$0xf]
    %v53 = vld [vmem:[%s0 + $0x24] sm:$0xf]
    %v54 = vld [vmem:[%s0 + $0x28] sm:$0xf]
    %v55 = vld [vmem:[%s0 + $0x2c] sm:$0xf]
    %v56 = vld [vmem:[%s0 + $0x30] sm:$0xf]
    %v57 = vld [vmem:[%s0 + $0x34] sm:$0xf]
    %v58 = vld [vmem:[%s0 + $0x38] sm:$0xf]
    %v59 = vld [vmem:[%s0 + $0x3c] sm:$0xf]
    %v60 = vunpack.c.l.bf16 %v44
    %v61 = vunpack.c.l.bf16 %v45
    %v62 = vunpack.c.l.bf16 %v46
    %v63 = vunpack.c.l.bf16 %v47
    %v64 = vunpack.c.l.bf16 %v48
    %v65 = vunpack.c.l.bf16 %v49
    %v66 = vunpack.c.l.bf16 %v50
    %v67 = vunpack.c.l.bf16 %v51
    %v68 = vunpack.c.l.bf16 %v52
    %v69 = vunpack.c.l.bf16 %v53
    %v70 = vunpack.c.l.bf16 %v54
    %v71 = vunpack.c.l.bf16 %v55
    %v72 = vunpack.c.l.bf16 %v56
    %v73 = vunpack.c.l.bf16 %v57
    %v74 = vunpack.c.l.bf16 %v58
    %v75 = vunpack.c.l.bf16 %v59
    %v76 = vld [vmem:[%s2] sm:$0x1]
    %v78 = vperm.slane %v76, 0
    %v80 = vmul.f32 %v60, %v78
    %v81 = vmul.f32 %v61, %v78
    %v82 = vmul.f32 %v62, %v78
    %v83 = vmul.f32 %v63, %v78
    %v84 = vmul.f32 %v64, %v78
    %v85 = vmul.f32 %v65, %v78
    %v86 = vmul.f32 %v66, %v78
    %v87 = vmul.f32 %v67, %v78
    %v88 = vmul.f32 %v68, %v78
    %v89 = vmul.f32 %v69, %v78
    %v90 = vmul.f32 %v70, %v78
    %v91 = vmul.f32 %v71, %v78
    %v92 = vmul.f32 %v72, %v78
    %v93 = vmul.f32 %v73, %v78
    %v94 = vmul.f32 %v74, %v78
    %v95 = vmul.f32 %v75, %v78
    %v96 = vld [vmem:[%s3] sm:$0x1]
    %v98 = vperm.slane %v96, 0
    %v100 = vadd.f32 %v80, %v98
    %v101 = vadd.f32 %v81, %v98
    %v102 = vadd.f32 %v82, %v98
    %v103 = vadd.f32 %v83, %v98
    %v104 = vadd.f32 %v84, %v98
    %v105 = vadd.f32 %v85, %v98
    %v106 = vadd.f32 %v86, %v98
    %v107 = vadd.f32 %v87, %v98
    %v108 = vadd.f32 %v88, %v98
    %v109 = vadd.f32 %v89, %v98
    %v110 = vadd.f32 %v90, %v98
    %v111 = vadd.f32 %v91, %v98
    %v112 = vadd.f32 %v92, %v98
    %v113 = vadd.f32 %v93, %v98
    %v114 = vadd.f32 %v94, %v98
    %v115 = vadd.f32 %v95, %v98
    %v116 = vmax.f32 %v100, 0.0
    %v117 = vmax.f32 %v101, 0.0
    %v118 = vmax.f32 %v102, 0.0
    %v119 = vmax.f32 %v103, 0.0
    %v120 = vmax.f32 %v104, 0.0
    %v121 = vmax.f32 %v105, 0.0
    %v122 = vmax.f32 %v106, 0.0
    %v123 = vmax.f32 %v107, 0.0
    %v124 = vmax.f32 %v108, 0.0
    %v125 = vmax.f32 %v109, 0.0
    %v126 = vmax.f32 %v110, 0.0
    %v127 = vmax.f32 %v111, 0.0
    %v128 = vmax.f32 %v112, 0.0
    %v129 = vmax.f32 %v113, 0.0
    %v130 = vmax.f32 %v114, 0.0
    %v131 = vmax.f32 %v115, 0.0
    %v132 = vpack.c.bf16 %v117, %v116
    %v133 = vpack.c.bf16 %v119, %v118
    %v134 = vpack.c.bf16 %v121, %v120
    %v135 = vpack.c.bf16 %v123, %v122
    %v136 = vpack.c.bf16 %v125, %v124
    %v137 = vpack.c.bf16 %v127, %v126
    %v138 = vpack.c.bf16 %v129, %v128
    %v139 = vpack.c.bf16 %v131, %v130
    %v140 = vld [vmem:[%s4] sm:$0x3]
    %vm141 = vcmask 31744
    %v143 = vsel %vm141, %v132, 0
    %v146 = vsel %vm141, %v133, 0
    %v149 = vsel %vm141, %v134, 0
    %v152 = vsel %vm141, %v135, 0
    %v155 = vsel %vm141, %v136, 0
    %v158 = vsel %vm141, %v137, 0
    %v161 = vsel %vm141, %v138, 0
    %v164 = vsel %vm141, %v139, 0
    %vm166 = vcmask 1041408
    %v168 = vsel %vm166, %v140, 0
    %170 = vmatpush.bf16.msra.mxu0 0
    %171 = vmatpush.bf16.msra.mxu0 0
    %172 = vmatpush.bf16.msra.mxu0 0
    %173 = vmatpush.bf16.msra.mxu0 0
    %174 = vmatpush.bf16.msra.mxu0 0
    %175 = vmatpush.bf16.msra.mxu0 0
    %176 = vmatpush.bf16.msra.mxu0 0
    %177 = vmatpush.bf16.msra.mxu0 %v168
    %178 = vmatmul.bf16.gmra.mxu0 %v143
    %v179 = vpop.f32.mrf.mxu0
    %v180 = vadd.f32 0.0, %v179
    %v181 = vpop.f32.mrf.mxu0
    %v182 = vadd.f32 0.0, %v181
    %183 = vmatmul.bf16.gmra.mxu0 %v146
    %v184 = vpop.f32.mrf.mxu0
    %v185 = vadd.f32 0.0, %v184
    %v186 = vpop.f32.mrf.mxu0
    %v187 = vadd.f32 0.0, %v186
    %188 = vmatmul.bf16.gmra.mxu0 %v149
    %v189 = vpop.f32.mrf.mxu0
    %v190 = vadd.f32 0.0, %v189
    %v191 = vpop.f32.mrf.mxu0
    %v192 = vadd.f32 0.0, %v191
    %193 = vmatmul.bf16.gmra.mxu0 %v152
    %v194 = vpop.f32.mrf.mxu0
    %v195 = vadd.f32 0.0, %v194
    %v196 = vpop.f32.mrf.mxu0
    %v197 = vadd.f32 0.0, %v196
    %198 = vmatmul.bf16.gmra.mxu0 %v155
    %v199 = vpop.f32.mrf.mxu0
    %v200 = vadd.f32 0.0, %v199
    %v201 = vpop.f32.mrf.mxu0
    %v202 = vadd.f32 0.0, %v201
    %203 = vmatmul.bf16.gmra.mxu0 %v158
    %v204 = vpop.f32.mrf.mxu0
    %v205 = vadd.f32 0.0, %v204
    %v206 = vpop.f32.mrf.mxu0
    %v207 = vadd.f32 0.0, %v206
    %208 = vmatmul.bf16.gmra.mxu0 %v161
    %v209 = vpop.f32.mrf.mxu0
    %v210 = vadd.f32 0.0, %v209
    %v211 = vpop.f32.mrf.mxu0
    %v212 = vadd.f32 0.0, %v211
    %213 = vmatmul.bf16.gmra.mxu0 %v164
    %v214 = vpop.f32.mrf.mxu0
    %v215 = vadd.f32 0.0, %v214
    %v216 = vpop.f32.mrf.mxu0
    %v217 = vadd.f32 0.0, %v216
    %218 = vdwg.mxu0
    %v219 = vld [vmem:[#allocation2] sm:$0xff]
    %v220 = vld [vmem:[#allocation2 + $0x8] sm:$0xff]
    %v221 = vld [vmem:[#allocation2 + $0x10] sm:$0xff]
    %v222 = vld [vmem:[#allocation2 + $0x18] sm:$0xff]
    %v223 = vld [vmem:[#allocation2 + $0x20] sm:$0xff]
    %v224 = vld [vmem:[#allocation2 + $0x28] sm:$0xff]
    %v225 = vld [vmem:[#allocation2 + $0x30] sm:$0xff]
    %v226 = vld [vmem:[#allocation2 + $0x38] sm:$0xff]
    %v227 = vld [vmem:[#allocation2 + $0x40] sm:$0xff]
    %v228 = vld [vmem:[#allocation2 + $0x48] sm:$0xff]
    %v229 = vld [vmem:[#allocation2 + $0x50] sm:$0xff]
    %v230 = vld [vmem:[#allocation2 + $0x58] sm:$0xff]
    %v231 = vld [vmem:[#allocation2 + $0x60] sm:$0xff]
    %v232 = vld [vmem:[#allocation2 + $0x68] sm:$0xff]
    %v233 = vld [vmem:[#allocation2 + $0x70] sm:$0xff]
    %v234 = vld [vmem:[#allocation2 + $0x78] sm:$0xff]
    %v235 = vld [vmem:[%s5] sm:$0x1]
    %v237 = vperm.slane %v235, 0
    %v239 = vmul.f32 %v180, %v237
    %v240 = vmul.f32 %v182, %v237
    %v241 = vmul.f32 %v185, %v237
    %v242 = vmul.f32 %v187, %v237
    %v243 = vmul.f32 %v190, %v237
    %v244 = vmul.f32 %v192, %v237
    %v245 = vmul.f32 %v195, %v237
    %v246 = vmul.f32 %v197, %v237
    %v247 = vmul.f32 %v200, %v237
    %v248 = vmul.f32 %v202, %v237
    %v249 = vmul.f32 %v205, %v237
    %v250 = vmul.f32 %v207, %v237
    %v251 = vmul.f32 %v210, %v237
    %v252 = vmul.f32 %v212, %v237
    %v253 = vmul.f32 %v215, %v237
    %v254 = vmul.f32 %v217, %v237
    %v255 = vld [vmem:[%s6] sm:$0x1]
    %v257 = vperm.slane %v255, 0
    %v259 = vadd.f32 %v239, %v257
    %v260 = vadd.f32 %v240, %v257
    %v261 = vadd.f32 %v241, %v257
    %v262 = vadd.f32 %v242, %v257
    %v263 = vadd.f32 %v243, %v257
    %v264 = vadd.f32 %v244, %v257
    %v265 = vadd.f32 %v245, %v257
    %v266 = vadd.f32 %v246, %v257
    %v267 = vadd.f32 %v247, %v257
    %v268 = vadd.f32 %v248, %v257
    %v269 = vadd.f32 %v249, %v257
    %v270 = vadd.f32 %v250, %v257
    %v271 = vadd.f32 %v251, %v257
    %v272 = vadd.f32 %v252, %v257
    %v273 = vadd.f32 %v253, %v257
    %v274 = vadd.f32 %v254, %v257
    %v275 = vadd.f32 %v259, %v219
    %v276 = vadd.f32 %v260, %v220
    %v277 = vadd.f32 %v261, %v221
    %v278 = vadd.f32 %v262, %v222
    %v279 = vadd.f32 %v263, %v223
    %v280 = vadd.f32 %v264, %v224
    %v281 = vadd.f32 %v265, %v225
    %v282 = vadd.f32 %v266, %v226
    %v283 = vadd.f32 %v267, %v227
    %v284 = vadd.f32 %v268, %v228
    %v285 = vadd.f32 %v269, %v229
    %v286 = vadd.f32 %v270, %v230
    %v287 = vadd.f32 %v271, %v231
    %v288 = vadd.f32 %v272, %v232
    %v289 = vadd.f32 %v273, %v233
    %v290 = vadd.f32 %v274, %v234
    %v291 = vmax.f32 %v275, 0.0
    %v292 = vmax.f32 %v276, 0.0
    %v293 = vmax.f32 %v277, 0.0
    %v294 = vmax.f32 %v278, 0.0
    %v295 = vmax.f32 %v279, 0.0
    %v296 = vmax.f32 %v280, 0.0
    %v297 = vmax.f32 %v281, 0.0
    %v298 = vmax.f32 %v282, 0.0
    %v299 = vmax.f32 %v283, 0.0
    %v300 = vmax.f32 %v284, 0.0
    %v301 = vmax.f32 %v285, 0.0
    %v302 = vmax.f32 %v286, 0.0
    %v303 = vmax.f32 %v287, 0.0
    %v304 = vmax.f32 %v288, 0.0
    %v305 = vmax.f32 %v289, 0.0
    %v306 = vmax.f32 %v290, 0.0
    %v307 = vpack.c.bf16 %v291, %v291
    %v308 = vpack.c.bf16 %v292, %v292
    %v309 = vpack.c.bf16 %v293, %v293
    %v310 = vpack.c.bf16 %v294, %v294
    %v311 = vpack.c.bf16 %v295, %v295
    %v312 = vpack.c.bf16 %v296, %v296
    %v313 = vpack.c.bf16 %v297, %v297
    %v314 = vpack.c.bf16 %v298, %v298
    %v315 = vpack.c.bf16 %v299, %v299
    %v316 = vpack.c.bf16 %v300, %v300
    %v317 = vpack.c.bf16 %v301, %v301
    %v318 = vpack.c.bf16 %v302, %v302
    %v319 = vpack.c.bf16 %v303, %v303
    %v320 = vpack.c.bf16 %v304, %v304
    %v321 = vpack.c.bf16 %v305, %v305
    %v322 = vpack.c.bf16 %v306, %v306
    %vm323 = vcmask 125952
    %324 = vst.msk [vmem:[#allocation5] sm:$0xf] %vm323, %v307
    %325 = vst.msk [vmem:[#allocation5 + $0x4] sm:$0xf] %vm323, %v308
    %326 = vst.msk [vmem:[#allocation5 + $0x8] sm:$0xf] %vm323, %v309
    %327 = vst.msk [vmem:[#allocation5 + $0xc] sm:$0xf] %vm323, %v310
    %328 = vst.msk [vmem:[#allocation5 + $0x10] sm:$0xf] %vm323, %v311
    %329 = vst.msk [vmem:[#allocation5 + $0x14] sm:$0xf] %vm323, %v312
    %330 = vst.msk [vmem:[#allocation5 + $0x18] sm:$0xf] %vm323, %v313
    %331 = vst.msk [vmem:[#allocation5 + $0x1c] sm:$0xf] %vm323, %v314
    %332 = vst.msk [vmem:[#allocation5 + $0x20] sm:$0xf] %vm323, %v315
    %333 = vst.msk [vmem:[#allocation5 + $0x24] sm:$0xf] %vm323, %v316
    %334 = vst.msk [vmem:[#allocation5 + $0x28] sm:$0xf] %vm323, %v317
    %335 = vst.msk [vmem:[#allocation5 + $0x2c] sm:$0xf] %vm323, %v318
    %336 = vst.msk [vmem:[#allocation5 + $0x30] sm:$0xf] %vm323, %v319
    %337 = vst.msk [vmem:[#allocation5 + $0x34] sm:$0xf] %vm323, %v320
    %338 = vst.msk [vmem:[#allocation5 + $0x38] sm:$0xf] %vm323, %v321
    %339 = vst.msk [vmem:[#allocation5 + $0x3c] sm:$0xf] %vm323, %v322
    // Predicated region
    $region34: #{residual_template_forward.7} parent=1 // pred_check
      _
    $region35: #{residual_template_forward.7} parent=1 // pred_check_branch
      %341 = sbr.rel (0) target = $region37
    $region36: #{residual_template_forward.7} parent=1 // pred_region
      %343 = vsyncadd [#allocation4], 0
      %s344 = sshll.u32 [#allocation5], 4
      %s345 = int_to_ptr.vmem [resolvable:$true] %s344
      %s346 = sshll.u32 %s7, 4
      %s347 = int_to_ptr.hbm [resolvable:$true] %s346
      %352 = dma.vmem_to_hbm [thread:$0]  %s345, 1024, %s347, [#allocation4], 64, 64, 4
    $region37: #{residual_template_forward.7} parent=1 // pred_fallthru
      _
    // Predicated region
    $region38: #{residual_template_forward.7} parent=1 // pred_check
      _
    $region39: #{residual_template_forward.7} parent=1 // pred_check_branch
      %354 = sbr.rel (0) target = $region41
    $region40: #{residual_template_forward.7} parent=1 // pred_region
      %356 = dma.done [#allocation4], 1024
    $region41: #{residual_template_forward.7} parent=1 // pred_fallthru
      _
    %357 = vsyncpa [#allocation3], 1
    %358 = vsyncpa [#allocation4], 1

// kernel: residual_template_forward.5
$region0: #{residual_template_forward.5}
  #allocation0 [shape = 'u32[]', space=smem, size = 0x4, offset = 0x4, fixed_abs, tag = 'smem constant byte address 0x4 - core index']
  #allocation1 [shape = 'u32[72,128]{1,0:T(1,128)}', space=vmem, size = 0x9000, scoped, tag = 'internal scratch']
  #allocation2 [shape = 'bf16[11,16,4]{2,1,0:T(8,128)(2,1)}', space=vmem, size = 0xb000, scoped, tag = 'scratch operand']
  #allocation3 [shape = 'bf16[128,36]{1,0:T(8,128)(2,1)}', space=vmem, size = 0x8000, scoped, tag = 'scratch operand']
  %s0 = inlined_call_operand.vmem [shape: bf16[2,8,8,4], index: 0, kind: input, shape index: {}]
  %s1 = inlined_call_operand.vmem [shape: f32[1,4], index: 1, kind: input, shape index: {}]
  %s2 = inlined_call_operand.vmem [shape: f32[1,4], index: 2, kind: input, shape index: {}]
  %s3 = inlined_call_operand.vmem [shape: bf16[36,4], index: 3, kind: input, shape index: {}]
  %s4 = inlined_call_operand.vmem [shape: bf16[2,8,8,4], index: 4, kind: output, shape index: {0}]
  %s5 = inlined_call_operand.vmem [shape: f32[2,2,4], index: 5, kind: output, shape index: {1}]
  %6 = xla_tuple %s4, %s5
  %s7 = sld [smem:[#allocation0]]
  $region61: #{residual_template_forward.5} parent=0
    _
  %s9 = ssub.s32 1, %s7
  %s10 = scalar_select 0, %s9, %s7
  loop: start=0, step=1, limit=4
  $region2: #{residual_template_forward.5} parent=0 // loop_pre_header
    _
  $region3: #{residual_template_forward.5} parent=0 // loop_header
    %s12 = sphi 0, %s16
    %p13 = scmp.ge.s32.totalorder %s12, 4
    %s19 = sphi 0, %s31
    %s20 = sphi 0, %s27
    %s21 = sphi 0, %s19
    %s22 = sphi 0, %s20
    %s23 = sphi 0, %s21
    %s24 = sphi 0, %s22
    %s36 = sphi 0, %s38
    %s39 = sphi 0, %s36
    %s40 = sphi 0, %s39
    %s56 = sphi 0, %s40
    %s60 = sphi 0, %s60
    %s62 = sphi 0, %s60
    %s63 = sphi 0, %s62
    %s77 = sphi 0, %s63
    %s81 = sphi 0, %s81
    %s83 = sphi 0, %s81
    %s84 = sphi 0, %s83
    %s98 = sphi 0, %s84
    %s102 = sphi 0, %s102
    %s104 = sphi 0, %s102
    %s105 = sphi 0, %s104
    %s119 = sphi 0, %s105
    %s127 = sphi 0, %s129
    %s130 = sphi 0, %s127
    %s131 = sphi 0, %s130
    %s147 = sphi 0, %s131
    %s153 = sphi 0, %s155
    %s156 = sphi 0, %s153
    %s157 = sphi 0, %s156
    %s173 = sphi 0, %s157
  $region4: #{residual_template_forward.5} parent=0 // loop_header_branch
    %15 = sbr.rel (%p13) target = $region8
  $region5: #{residual_template_forward.5} parent=0 // loop_body
    %s17 = ssub.s32 %s12, 1
    %s18 = ssub.s32 %s12, 2
    %s25 = sadd.s32 1, %s20
    %p26 = scmp.ge.s32.totalorder %s25, 1
    %s27 = scalar_select %p26, 0, %s25
    %s28 = sadd.s32 1, %s19
    %s29 = scalar_select %p26, %s28, %s19
    %p30 = scmp.ge.s32.totalorder %s29, 2
    %s31 = scalar_select %p30, 0, %s29
    %s32 = sadd.s32 %s19, %s20
    %s33 = sadd.s32 %s31, %s27
    %s34 = ssub.s32 %s32, %s33
    %p35 = scmp.eq.s32.totalorder %s34, 0
    %s37 = sadd.s32 %s36, 1
    %s38 = scalar_select %p35, %s36, %s37
    %p41 = pneg %p35
    %p42 = scmp.eq.s32.totalorder %s12, 1
    %p43 = por %p41, %p42
    %p44 = scmp.ne.s32.totalorder %s36, %s39
    %p45 = scmp.eq.s32.totalorder %s12, 0
    %p46 = por %p44, %p45
    %p47 = scmp.ne.s32.totalorder %s36, %s39
    %p48 = scmp.eq.s32.totalorder %s17, 1
    %p49 = por %p47, %p48
    %p50 = scmp.ne.s32.totalorder %s39, %s40
    %p51 = scmp.eq.s32.totalorder %s17, 0
    %p52 = por %p50, %p51
    %p53 = scmp.ne.s32.totalorder %s39, %s40
    %p54 = scmp.eq.s32.totalorder %s18, 1
    %p55 = por %p53, %p54
    %p57 = scmp.ne.s32.totalorder %s40, %s56
    %p58 = scmp.eq.s32.totalorder %s18, 0
    %p59 = por %p57, %p58
    %s61 = sadd.s32 %s60, 1
    %p64 = scmp.eq.s32.totalorder %s12, 1
    %p65 = scmp.ne.s32.totalorder %s60, %s62
    %p66 = scmp.eq.s32.totalorder %s12, 0
    %p67 = por %p65, %p66
    %p68 = scmp.ne.s32.totalorder %s60, %s62
    %p69 = scmp.eq.s32.totalorder %s17, 1
    %p70 = por %p68, %p69
    %p71 = scmp.ne.s32.totalorder %s62, %s63
    %p72 = scmp.eq.s32.totalorder %s17, 0
    %p73 = por %p71, %p72
    %p74 = scmp.ne.s32.totalorder %s62, %s63
    %p75 = scmp.eq.s32.totalorder %s18, 1
    %p76 = por %p74, %p75
    %p78 = scmp.ne.s32.totalorder %s63, %s77
    %p79 = scmp.eq.s32.totalorder %s18, 0
    %p80 = por %p78, %p79
    %s82 = sadd.s32 %s81, 1
    %p85 = scmp.eq.s32.totalorder %s12, 1
    %p86 = scmp.ne.s32.totalorder %s81, %s83
    %p87 = scmp.eq.s32.totalorder %s12, 0
    %p88 = por %p86, %p87
    %p89 = scmp.ne.s32.totalorder %s81, %s83
    %p90 = scmp.eq.s32.totalorder %s17, 1
    %p91 = por %p89, %p90
    %p92 = scmp.ne.s32.totalorder %s83, %s84
    %p93 = scmp.eq.s32.totalorder %s17, 0
    %p94 = por %p92, %p93
    %p95 = scmp.ne.s32.totalorder %s83, %s84
    %p96 = scmp.eq.s32.totalorder %s18, 1
    %p97 = por %p95, %p96
    %p99 = scmp.ne.s32.totalorder %s84, %s98
    %p100 = scmp.eq.s32.totalorder %s18, 0
    %p101 = por %p99, %p100
    %s103 = sadd.s32 %s102, 1
    %p106 = scmp.eq.s32.totalorder %s12, 1
    %p107 = scmp.ne.s32.totalorder %s102, %s104
    %p108 = scmp.eq.s32.totalorder %s12, 0
    %p109 = por %p107, %p108
    %p110 = scmp.ne.s32.totalorder %s102, %s104
    %p111 = scmp.eq.s32.totalorder %s17, 1
    %p112 = por %p110, %p111
    %p113 = scmp.ne.s32.totalorder %s104, %s105
    %p114 = scmp.eq.s32.totalorder %s17, 0
    %p115 = por %p113, %p114
    %p116 = scmp.ne.s32.totalorder %s104, %s105
    %p117 = scmp.eq.s32.totalorder %s18, 1
    %p118 = por %p116, %p117
    %p120 = scmp.ne.s32.totalorder %s105, %s119
    %p121 = scmp.eq.s32.totalorder %s18, 0
    %p122 = por %p120, %p121
    %s123 = sadd.s32 %s19, %s20
    %s124 = sadd.s32 %s31, %s27
    %s125 = ssub.s32 %s123, %s124
    %p126 = scmp.eq.s32.totalorder %s125, 0
    %s128 = sadd.s32 %s127, 1
    %s129 = scalar_select %p126, %s127, %s128
    %p132 = pneg %p126
    %p133 = scmp.eq.s32.totalorder %s12, 1
    %p134 = por %p132, %p133
    %p135 = scmp.ne.s32.totalorder %s127, %s130
    %p136 = scmp.eq.s32.totalorder %s12, 0
    %p137 = por %p135, %p136
    %p138 = scmp.ne.s32.totalorder %s127, %s130
    %p139 = scmp.eq.s32.totalorder %s17, 1
    %p140 = por %p138, %p139
    %p141 = scmp.ne.s32.totalorder %s130, %s131
    %p142 = scmp.eq.s32.totalorder %s17, 0
    %p143 = por %p141, %p142
    %p144 = scmp.ne.s32.totalorder %s130, %s131
    %p145 = scmp.eq.s32.totalorder %s18, 1
    %p146 = por %p144, %p145
    %p148 = scmp.ne.s32.totalorder %s131, %s147
    %p149 = scmp.eq.s32.totalorder %s18, 0
    %p150 = por %p148, %p149
    %s151 = ssub.s32 %s19, %s31
    %p152 = scmp.eq.s32.totalorder %s151, 0
    %s154 = sadd.s32 %s153, 1
    %s155 = scalar_select %p152, %s153, %s154
    %p158 = pneg %p152
    %p159 = scmp.eq.s32.totalorder %s12, 1
    %p160 = por %p158, %p159
    %p161 = scmp.ne.s32.totalorder %s153, %s156
    %p162 = scmp.eq.s32.totalorder %s12, 0
    %p163 = por %p161, %p162
    %p164 = scmp.ne.s32.totalorder %s153, %s156
    %p165 = scmp.eq.s32.totalorder %s17, 1
    %p166 = por %p164, %p165
    %p167 = scmp.ne.s32.totalorder %s156, %s157
    %p168 = scmp.eq.s32.totalorder %s17, 0
    %p169 = por %p167, %p168
    %p170 = scmp.ne.s32.totalorder %s156, %s157
    %p171 = scmp.eq.s32.totalorder %s18, 1
    %p172 = por %p170, %p171
    %p174 = scmp.ne.s32.totalorder %s157, %s173
    %p175 = scmp.eq.s32.totalorder %s18, 0
    %p176 = por %p174, %p175
    %p177 = scmp.le.s32.totalorder 1, %s12
    %p178 = scmp.lt.s32.totalorder %s12, 3
    %p179 = pnand %p177, %p178
    %p180 = pneg %p179
    // Predicated region
    $region9: #{residual_template_forward.5} parent=5 // pred_check
      _
    $region10: #{residual_template_forward.5} parent=5 // pred_check_branch
      %182 = sbr.rel (%p179) target = $region12
    $region11: #{residual_template_forward.5} parent=5 // pred_region
      %s183 = ssub.s32 %s12, 1
      // Predicated region
      $region13: #{residual_template_forward.5} parent=11 // pred_check
        %p184 = pneg %p73
      $region14: #{residual_template_forward.5} parent=11 // pred_check_branch
        %186 = sbr.rel (%p184) target = $region16
      $region15: #{residual_template_forward.5} parent=11 // pred_region
        _
      $region16: #{residual_template_forward.5} parent=11 // pred_fallthru
        _
      // Predicated region
      $region17: #{residual_template_forward.5} parent=11 // pred_check
        %p187 = pneg %p94
      $region18: #{residual_template_forward.5} parent=11 // pred_check_branch
        %189 = sbr.rel (%p187) target = $region20
      $region19: #{residual_template_forward.5} parent=11 // pred_region
        _
      $region20: #{residual_template_forward.5} parent=11 // pred_fallthru
        _
      // Predicated region
      $region21: #{residual_template_forward.5} parent=11 // pred_check
        %p190 = pneg %p115
      $region22: #{residual_template_forward.5} parent=11 // pred_check_branch
        %192 = sbr.rel (%p190) target = $region24
      $region23: #{residual_template_forward.5} parent=11 // pred_region
        _
      $region24: #{residual_template_forward.5} parent=11 // pred_fallthru
        _
    $region12: #{residual_template_forward.5} parent=5 // pred_fallthru
      _
    %p193 = scmp.lt.s32.totalorder %s12, 2
    // Predicated region
    $region25: #{residual_template_forward.5} parent=5 // pred_check
      %p194 = pneg %p193
    $region26: #{residual_template_forward.5} parent=5 // pred_check_branch
      %196 = sbr.rel (%p194) target = $region28
    $region27: #{residual_template_forward.5} parent=5 // pred_region
      // Predicated region
      $region29: #{residual_template_forward.5} parent=27 // pred_check
        %p197 = pneg %p46
      $region30: #{residual_template_forward.5} parent=27 // pred_check_branch
        %199 = sbr.rel (%p197) target = $region32
      $region31: #{residual_template_forward.5} parent=27 // pred_region
        %s200 = sadd.s32 %s19, %s20
        %p201 = scmp.lt.s32.totalorder %s200, 1
        %s202 = scalar_select %p201, %s200, 1
        %s203 = smul.addr %s202, 8
        %s204 = smul.addr %s203, 4
        %s205 = scalar_lea.vmem %s0, %s204
        %s206 = sadd.s32 %s19, %s20
      $region32: #{residual_template_forward.5} parent=27 // pred_fallthru
        _
    $region28: #{residual_template_forward.5} parent=5 // pred_fallthru
      _
    %p207 = scmp.le.s32.totalorder 1, %s12
    %p208 = scmp.lt.s32.totalorder %s12, 3
    %p209 = pnand %p207, %p208
    %p210 = pneg %p209
    // Predicated region
    $region33: #{residual_template_forward.5} parent=5 // pred_check
      _
    $region34: #{residual_template_forward.5} parent=5 // pred_check_branch
      %212 = sbr.rel (%p209) target = $region36
    $region35: #{residual_template_forward.5} parent=5 // pred_region
      %s213 = ssub.s32 %s12, 1
      %s214 = sadd.s32 %s21, %s22
      %p215 = scmp.lt.s32.totalorder %s214, 1
      %s216 = scalar_select %p215, %s214, 1
      %s217 = smul.addr %s216, 8
      %s218 = smul.addr %s217, 4
      %s219 = scalar_lea.vmem %s0, %s218
      %p220 = pneg %p52
      %p221 = pneg %p49
      %p222 = pneg %p73
      %p223 = pneg %p70
      %p224 = pneg %p94
      %p225 = pneg %p91
      %p226 = pneg %p115
      %p227 = pneg %p112
      %p228 = pneg %p143
      %p229 = pneg %p140
      %s230 = sadd.s32 %s21, %s22
      %p231 = scmp.lt.s32.totalorder %s230, 1
      %s232 = scalar_select %p231, %s230, 1
      %s233 = smul.addr %s232, 8
      %s234 = smul.addr %s233, 4
      %s235 = scalar_lea.vmem %s4, %s234
      %p236 = pneg %p169
      %p237 = pneg %p166
      %p238 = scmp.lt.s32.totalorder %s21, 1
      %s239 = scalar_select %p238, %s21, 1
      %s240 = smul.addr %s239, 2
      %s241 = scalar_lea.vmem %s5, %s240
      %s242 = sadd.s32 %s21, %s22
      %p243 = scmp.lt.s32.totalorder %s242, 1
      %s244 = scalar_select %p243, %s242, 1
      %s245 = smul.addr %s244, 8
      %s246 = smul.addr %s245, 4
      %s247 = scalar_lea.vmem %s0, %s246
      %s248 = sadd.s32 %s21, %s22
      %s249 = sadd.s32 %s21, %s22
      %p250 = scmp.lt.s32.totalorder %s249, 1
      %s251 = scalar_select %p250, %s249, 1
      %s252 = smul.addr %s251, 8
      %s253 = smul.addr %s252, 4
      %s254 = scalar_lea.vmem %s4, %s253
      %s255 = sadd.s32 %s21, %s22
      %p256 = scmp.lt.s32.totalorder %s21, 1
      %s257 = scalar_select %p256, %s21, 1
      %s258 = smul.addr %s257, 2
      %s259 = scalar_lea.vmem %s5, %s258
      %p261 = scmp.eq.s32.totalorder %s22, 0
      // Predicated region
      $region37: #{residual_template_forward.5} parent=35 // pred_check
        %p262 = pneg %p261
      $region38: #{residual_template_forward.5} parent=35 // pred_check_branch
        %264 = sbr.rel (%p262) target = $region40
      $region39: #{residual_template_forward.5} parent=35 // pred_region
        %vm265 = vcmask 27648
        %266 = vst.msk [vmem:[#allocation2] sm:$0xf] %vm265, 0
        %267 = vst.msk [vmem:[#allocation2 + $0x4] sm:$0xf] %vm265, 0
        %268 = vst.msk [vmem:[#allocation2 + $0x8] sm:$0xf] %vm265, 0
        %269 = vst.msk [vmem:[#allocation2 + $0xc] sm:$0xf] %vm265, 0
        %270 = vst.msk [vmem:[#allocation2 + $0x10] sm:$0xf] %vm265, 0
        %271 = vst.msk [vmem:[#allocation2 + $0x14] sm:$0xf] %vm265, 0
        %272 = vst.msk [vmem:[#allocation2 + $0x18] sm:$0xf] %vm265, 0
        %273 = vst.msk [vmem:[#allocation2 + $0x1c] sm:$0xf] %vm265, 0
        %274 = vst.msk [vmem:[#allocation2 + $0x20] sm:$0xf] %vm265, 0
        %275 = vst.msk [vmem:[#allocation2 + $0x24] sm:$0xf] %vm265, 0
        %276 = vst.msk [vmem:[#allocation2 + $0x28] sm:$0xf] %vm265, 0
        %277 = vst.msk [vmem:[#allocation2 + $0x2c] sm:$0xf] %vm265, 0
        %278 = vst.msk [vmem:[#allocation2 + $0x30] sm:$0xf] %vm265, 0
        %279 = vst.msk [vmem:[#allocation2 + $0x34] sm:$0xf] %vm265, 0
        %280 = vst.msk [vmem:[#allocation2 + $0x38] sm:$0xf] %vm265, 0
        %281 = vst.msk [vmem:[#allocation2 + $0x3c] sm:$0xf] %vm265, 0
        %282 = vst.msk [vmem:[#allocation2 + $0x40] sm:$0xf] %vm265, 0
        %283 = vst.msk [vmem:[#allocation2 + $0x44] sm:$0xf] %vm265, 0
        %284 = vst.msk [vmem:[#allocation2 + $0x48] sm:$0xf] %vm265, 0
        %285 = vst.msk [vmem:[#allocation2 + $0x4c] sm:$0xf] %vm265, 0
        %286 = vst.msk [vmem:[#allocation2 + $0x50] sm:$0xf] %vm265, 0
        %287 = vst.msk [vmem:[#allocation2 + $0x54] sm:$0xf] %vm265, 0
        %vm288 = vcmask 25600
        %289 = vst.msk [vmem:[%s259] sm:$0x3] %vm288, 0.0
      $region40: #{residual_template_forward.5} parent=35 // pred_fallthru
        _
      %v290 = vld [vmem:[%s1] sm:$0x1]
      %v291 = vld [vmem:[%s2] sm:$0x1]
      %v292 = vld [vmem:[%s3] sm:$0xf]
      %v293 = vld [vmem:[%s3 + $0x4] sm:$0xf]
      %v294 = vld [vmem:[%s3 + $0x8] sm:$0xf]
      %v295 = vld [vmem:[%s3 + $0xc] sm:$0xf]
      %v296 = vld [vmem:[%s3 + $0x10] sm:$0x3]
      %v297 = vld [vmem:[%s247] sm:$0xf]
      %v298 = vld [vmem:[%s247 + $0x4] sm:$0xf]
      %v299 = vld [vmem:[%s247 + $0x8] sm:$0xf]
      %v300 = vld [vmem:[%s247 + $0xc] sm:$0xf]
      %v301 = vld [vmem:[%s247 + $0x10] sm:$0xf]
      %v302 = vld [vmem:[%s247 + $0x14] sm:$0xf]
      %v303 = vld [vmem:[%s247 + $0x18] sm:$0xf]
      %v304 = vld [vmem:[%s247 + $0x1c] sm:$0xf]
      %v305 = vunpack.c.l.bf16 %v297
      %v306 = vunpack.c.l.bf16 %v298
      %v307 = vunpack.c.l.bf16 %v299
      %v308 = vunpack.c.l.bf16 %v300
      %v309 = vunpack.c.l.bf16 %v301
      %v310 = vunpack.c.l.bf16 %v302
      %v311 = vunpack.c.l.bf16 %v303
      %v312 = vunpack.c.l.bf16 %v304
      %v314 = vperm.slane %v290, 0
      %v316 = vmul.f32 %v305, %v314
      %v317 = vmul.f32 %v306, %v314
      %v318 = vmul.f32 %v307, %v314
      %v319 = vmul.f32 %v308, %v314
      %v320 = vmul.f32 %v309, %v314
      %v321 = vmul.f32 %v310, %v314
      %v322 = vmul.f32 %v311, %v314
      %v323 = vmul.f32 %v312, %v314
      %v325 = vperm.slane %v291, 0
      %v327 = vadd.f32 %v316, %v325
      %v328 = vadd.f32 %v317, %v325
      %v329 = vadd.f32 %v318, %v325
      %v330 = vadd.f32 %v319, %v325
      %v331 = vadd.f32 %v320, %v325
      %v332 = vadd.f32 %v321, %v325
      %v333 = vadd.f32 %v322, %v325
      %v334 = vadd.f32 %v323, %v325
      %v335 = vmax.f32 %v327, 0.0
      %v336 = vmax.f32 %v328, 0.0
      %v337 = vmax.f32 %v329, 0.0
      %v338 = vmax.f32 %v330, 0.0
      %v339 = vmax.f32 %v331, 0.0
      %v340 = vmax.f32 %v332, 0.0
      %v341 = vmax.f32 %v333, 0.0
      %v342 = vmax.f32 %v334, 0.0
      %v343 = vpack.c.bf16 %v335, %v335
      %v344 = vpack.c.bf16 %v336, %v336
      %v345 = vpack.c.bf16 %v337, %v337
      %v346 = vpack.c.bf16 %v338, %v338
      %v347 = vpack.c.bf16 %v339, %v339
      %v348 = vpack.c.bf16 %v340, %v340
      %v349 = vpack.c.bf16 %v341, %v341
      %v350 = vpack.c.bf16 %v342, %v342
      %v352 = vshrl.u32 %v343, 16
      %v354 = vrot.slane %v352, 7
      %v355 = vshll.u32 %v343, 16
      %v357 = vor.u32 %v354, %v355
      %v358 = vrot.slane %v354, 4
      %v360 = vshrl.u32 %v344, 16
      %v362 = vrot.slane %v360, 7
      %v363 = vshll.u32 %v344, 16
      %v365 = vor.u32 %v362, %v363
      %v366 = vrot.slane %v362, 4
      %v368 = vshrl.u32 %v345, 16
      %v370 = vrot.slane %v368, 7
      %v371 = vshll.u32 %v345, 16
      %v373 = vor.u32 %v370, %v371
      %v374 = vrot.slane %v370, 4
      %v376 = vshrl.u32 %v346, 16
      %v378 = vrot.slane %v376, 7
      %v379 = vshll.u32 %v346, 16
      %v381 = vor.u32 %v378, %v379
      %v382 = vrot.slane %v378, 4
      %v384 = vshrl.u32 %v347, 16
      %v386 = vrot.slane %v384, 7
      %v387 = vshll.u32 %v347, 16
      %v389 = vor.u32 %v386, %v387
      %v390 = vrot.slane %v386, 4
      %v392 = vshrl.u32 %v348, 16
      %v394 = vrot.slane %v392, 7
      %v395 = vshll.u32 %v348, 16
      %v397 = vor.u32 %v394, %v395
      %v398 = vrot.slane %v394, 4
      %v400 = vshrl.u32 %v349, 16
      %v402 = vrot.slane %v400, 7
      %v403 = vshll.u32 %v349, 16
      %v405 = vor.u32 %v402, %v403
      %v406 = vrot.slane %v402, 4
      %v408 = vshrl.u32 %v350, 16
      %v410 = vrot.slane %v408, 7
      %v411 = vshll.u32 %v350, 16
      %v413 = vor.u32 %v410, %v411
      %v414 = vrot.slane %v410, 4
      %s431 = scalar_lea.vmem [#allocation2], 8
      %vm432 = vcmask 27648
      %vm433 = vsmask.f32 7938
      %vm434 = vmand %vm432, %vm433
      %v435 = vld [vmem:[%s431] sm:$0xf]
      %v436 = vsel %vm434, %v357, %v435
      %437 = vst [vmem:[%s431] sm:$0xf] %v436
      %vm438 = vcmask 24576
      %vm439 = vsmask.f32 256
      %vm440 = vmand %vm438, %vm439
      %v441 = vld [vmem:[%s431 + $0x4] sm:$0x1]
      %v442 = vsel %vm440, %v358, %v441
      %443 = vst [vmem:[%s431 + $0x4] sm:$0x1] %v442
      %v444 = vld [vmem:[%s431 + $0x8] sm:$0xf]
      %v445 = vsel %vm434, %v365, %v444
      %446 = vst [vmem:[%s431 + $0x8] sm:$0xf] %v445
      %v447 = vld [vmem:[%s431 + $0xc] sm:$0x1]
      %v448 = vsel %vm440, %v366, %v447
      %449 = vst [vmem:[%s431 + $0xc] sm:$0x1] %v448
      %v450 = vld [vmem:[%s431 + $0x10] sm:$0xf]
      %v451 = vsel %vm434, %v373, %v450
      %452 = vst [vmem:[%s431 + $0x10] sm:$0xf] %v451
      %v453 = vld [vmem:[%s431 + $0x14] sm:$0x1]
      %v454 = vsel %vm440, %v374, %v453
      %455 = vst [vmem:[%s431 + $0x14] sm:$0x1] %v454
      %v456 = vld [vmem:[%s431 + $0x18] sm:$0xf]
      %v457 = vsel %vm434, %v381, %v456
      %458 = vst [vmem:[%s431 + $0x18] sm:$0xf] %v457
      %v459 = vld [vmem:[%s431 + $0x1c] sm:$0x1]
      %v460 = vsel %vm440, %v382, %v459
      %461 = vst [vmem:[%s431 + $0x1c] sm:$0x1] %v460
      %v462 = vld [vmem:[%s431 + $0x20] sm:$0xf]
      %v463 = vsel %vm434, %v389, %v462
      %464 = vst [vmem:[%s431 + $0x20] sm:$0xf] %v463
      %v465 = vld [vmem:[%s431 + $0x24] sm:$0x1]
      %v466 = vsel %vm440, %v390, %v465
      %467 = vst [vmem:[%s431 + $0x24] sm:$0x1] %v466
      %v468 = vld [vmem:[%s431 + $0x28] sm:$0xf]
      %v469 = vsel %vm434, %v397, %v468
      %470 = vst [vmem:[%s431 + $0x28] sm:$0xf] %v469
      %v471 = vld [vmem:[%s431 + $0x2c] sm:$0x1]
      %v472 = vsel %vm440, %v398, %v471
      %473 = vst [vmem:[%s431 + $0x2c] sm:$0x1] %v472
      %v474 = vld [vmem:[%s431 + $0x30] sm:$0xf]
      %v475 = vsel %vm434, %v405, %v474
      %476 = vst [vmem:[%s431 + $0x30] sm:$0xf] %v475
      %v477 = vld [vmem:[%s431 + $0x34] sm:$0x1]
      %v478 = vsel %vm440, %v406, %v477
      %479 = vst [vmem:[%s431 + $0x34] sm:$0x1] %v478
      %v480 = vld [vmem:[%s431 + $0x38] sm:$0xf]
      %v481 = vsel %vm434, %v413, %v480
      %482 = vst [vmem:[%s431 + $0x38] sm:$0xf] %v481
      %v483 = vld [vmem:[%s431 + $0x3c] sm:$0x1]
      %v484 = vsel %vm440, %v414, %v483
      %485 = vst [vmem:[%s431 + $0x3c] sm:$0x1] %v484
      %v486 = vld [vmem:[#allocation2] sm:$0xf]
      %v487 = vld [vmem:[#allocation2 + $0x4] sm:$0xf]
      %v488 = vld [vmem:[#allocation2 + $0x8] sm:$0xf]
      %v489 = vld [vmem:[#allocation2 + $0xc] sm:$0xf]
      %v490 = vld [vmem:[#allocation2 + $0x10] sm:$0xf]
      %v491 = vld [vmem:[#allocation2 + $0x14] sm:$0xf]
      %v492 = vld [vmem:[#allocation2 + $0x18] sm:$0xf]
      %v493 = vld [vmem:[#allocation2 + $0x1c] sm:$0xf]
      %v494 = vld [vmem:[#allocation2 + $0x20] sm:$0xf]
      %v495 = vld [vmem:[#allocation2 + $0x24] sm:$0xf]
      %v496 = vld [vmem:[#allocation2 + $0x28] sm:$0xf]
      %v497 = vld [vmem:[#allocation2 + $0x2c] sm:$0xf]
      %v498 = vld [vmem:[#allocation2 + $0x30] sm:$0xf]
      %v499 = vld [vmem:[#allocation2 + $0x34] sm:$0xf]
      %v500 = vld [vmem:[#allocation2 + $0x38] sm:$0xf]
      %v501 = vld [vmem:[#allocation2 + $0x3c] sm:$0xf]
      %v502 = vld [vmem:[#allocation2 + $0x40] sm:$0xf]
      %vm503 = vcmask 27648
      %504 = vst.msk [vmem:[#allocation3] sm:$0xf] %vm503, %v486
      %505 = vst.msk [vmem:[#allocation3 + $0x4] sm:$0xf] %vm503, %v487
      %506 = vst.msk [vmem:[#allocation3 + $0x8] sm:$0xf] %vm503, %v488
      %507 = vst.msk [vmem:[#allocation3 + $0xc] sm:$0xf] %vm503, %v489
      %508 = vst.msk [vmem:[#allocation3 + $0x10] sm:$0xf] %vm503, %v490
      %509 = vst.msk [vmem:[#allocation3 + $0x14] sm:$0xf] %vm503, %v491
      %510 = vst.msk [vmem:[#allocation3 + $0x18] sm:$0xf] %vm503, %v492
      %511 = vst.msk [vmem:[#allocation3 + $0x1c] sm:$0xf] %vm503, %v493
      %512 = vst.msk [vmem:[#allocation3 + $0x20] sm:$0xf] %vm503, %v494
      %513 = vst.msk [vmem:[#allocation3 + $0x24] sm:$0xf] %vm503, %v495
      %514 = vst.msk [vmem:[#allocation3 + $0x28] sm:$0xf] %vm503, %v496
      %515 = vst.msk [vmem:[#allocation3 + $0x2c] sm:$0xf] %vm503, %v497
      %516 = vst.msk [vmem:[#allocation3 + $0x30] sm:$0xf] %vm503, %v498
      %517 = vst.msk [vmem:[#allocation3 + $0x34] sm:$0xf] %vm503, %v499
      %518 = vst.msk [vmem:[#allocation3 + $0x38] sm:$0xf] %vm503, %v500
      %519 = vst.msk [vmem:[#allocation3 + $0x3c] sm:$0xf] %vm503, %v501
      %vm520 = vsmask.f32 3328
      %vm521 = vsmask.f32 7440
      %vm522 = vmor %vm520, %vm521
      %v524 = vshrl.u32 %v486, 16
      %v526 = vrot.slane %v524, 4
      %v527 = vshll.u32 %v486, 16
      %v529 = vrot.slane %v527, 5
      %v530 = vor.u32 %v526, %v529
      %v531 = vrot.slane %v530, 4
      %v533 = vshll.u32 %v487, 16
      %v535 = vrot.slane %v533, 5
      %v536 = vsel %vm522, %v531, %v535
      %v537 = vshrl.u32 %v487, 16
      %v539 = vrot.slane %v537, 4
      %v540 = vor.u32 %v539, %v535
      %v541 = vrot.slane %v540, 4
      %v543 = vshll.u32 %v488, 16
      %v545 = vrot.slane %v543, 5
      %v546 = vsel %vm522, %v541, %v545
      %v547 = vshrl.u32 %v488, 16
      %v549 = vrot.slane %v547, 4
      %v550 = vor.u32 %v549, %v545
      %v551 = vrot.slane %v550, 4
      %v553 = vshll.u32 %v489, 16
      %v555 = vrot.slane %v553, 5
      %v556 = vsel %vm522, %v551, %v555
      %v557 = vshrl.u32 %v489, 16
      %v559 = vrot.slane %v557, 4
      %v560 = vor.u32 %v559, %v555
      %v561 = vrot.slane %v560, 4
      %v563 = vshll.u32 %v490, 16
      %v565 = vrot.slane %v563, 5
      %v566 = vsel %vm522, %v561, %v565
      %v567 = vshrl.u32 %v490, 16
      %v569 = vrot.slane %v567, 4
      %v570 = vor.u32 %v569, %v565
      %v571 = vrot.slane %v570, 4
      %v573 = vshll.u32 %v491, 16
      %v575 = vrot.slane %v573, 5
      %v576 = vsel %vm522, %v571, %v575
      %v577 = vshrl.u32 %v491, 16
      %v579 = vrot.slane %v577, 4
      %v580 = vor.u32 %v579, %v575
      %v581 = vrot.slane %v580, 4
      %v583 = vshll.u32 %v492, 16
      %v585 = vrot.slane %v583, 5
      %v586 = vsel %vm522, %v581, %v585
      %v587 = vshrl.u32 %v492, 16
      %v589 = vrot.slane %v587, 4
      %v590 = vor.u32 %v589, %v585
      %v591 = vrot.slane %v590, 4
      %v593 = vshll.u32 %v493, 16
      %v595 = vrot.slane %v593, 5
      %v596 = vsel %vm522, %v591, %v595
      %v597 = vshrl.u32 %v493, 16
      %v599 = vrot.slane %v597, 4
      %v600 = vor.u32 %v599, %v595
      %v601 = vrot.slane %v600, 4
      %v603 = vshll.u32 %v494, 16
      %v605 = vrot.slane %v603, 5
      %v606 = vsel %vm522, %v601, %v605
      %v607 = vshrl.u32 %v494, 16
      %v609 = vrot.slane %v607, 4
      %v610 = vor.u32 %v609, %v605
      %v611 = vrot.slane %v610, 4
      %v613 = vshll.u32 %v495, 16
      %v615 = vrot.slane %v613, 5
      %v616 = vsel %vm522, %v611, %v615
      %v617 = vshrl.u32 %v495, 16
      %v619 = vrot.slane %v617, 4
      %v620 = vor.u32 %v619, %v615
      %v621 = vrot.slane %v620, 4
      %v623 = vshll.u32 %v496, 16
      %v625 = vrot.slane %v623, 5
      %v626 = vsel %vm522, %v621, %v625
      %v627 = vshrl.u32 %v496, 16
      %v629 = vrot.slane %v627, 4
      %v630 = vor.u32 %v629, %v625
      %v631 = vrot.slane %v630, 4
      %v633 = vshll.u32 %v497, 16
      %v635 = vrot.slane %v633, 5
      %v636 = vsel %vm522, %v631, %v635
      %v637 = vshrl.u32 %v497, 16
      %v639 = vrot.slane %v637, 4
      %v640 = vor.u32 %v639, %v635
      %v641 = vrot.slane %v640, 4
      %v643 = vshll.u32 %v498, 16
      %v645 = vrot.slane %v643, 5
      %v646 = vsel %vm522, %v641, %v645
      %v647 = vshrl.u32 %v498, 16
      %v649 = vrot.slane %v647, 4
      %v650 = vor.u32 %v649, %v645
      %v651 = vrot.slane %v650, 4
      %v653 = vshll.u32 %v499, 16
      %v655 = vrot.slane %v653, 5
      %v656 = vsel %vm522, %v651, %v655
      %v657 = vshrl.u32 %v499, 16
      %v659 = vrot.slane %v657, 4
      %v660 = vor.u32 %v659, %v655
      %v661 = vrot.slane %v660, 4
      %v663 = vshll.u32 %v500, 16
      %v665 = vrot.slane %v663, 5
      %v666 = vsel %vm522, %v661, %v665
      %v667 = vshrl.u32 %v500, 16
      %v669 = vrot.slane %v667, 4
      %v670 = vor.u32 %v669, %v665
      %v671 = vrot.slane %v670, 4
      %v673 = vshll.u32 %v501, 16
      %v675 = vrot.slane %v673, 5
      %v676 = vsel %vm522, %v671, %v675
      %v677 = vshrl.u32 %v501, 16
      %v679 = vrot.slane %v677, 4
      %v680 = vor.u32 %v679, %v675
      %v681 = vrot.slane %v680, 4
      %v683 = vshll.u32 %v502, 16
      %v685 = vrot.slane %v683, 5
      %v686 = vsel %vm522, %v681, %v685
      %687 = vrot.lane.b32.xlu0 %v536, 4
      %v688 = vpop.permute.xlu0 %687
      %689 = vrot.lane.b32.xlu0 %v546, 4
      %v690 = vpop.permute.xlu0 %689
      %691 = vrot.lane.b32.xlu0 %v556, 4
      %v692 = vpop.permute.xlu0 %691
      %693 = vrot.lane.b32.xlu0 %v566, 4
      %v694 = vpop.permute.xlu0 %693
      %695 = vrot.lane.b32.xlu0 %v576, 4
      %v696 = vpop.permute.xlu0 %695
      %697 = vrot.lane.b32.xlu0 %v586, 4
      %v698 = vpop.permute.xlu0 %697
      %699 = vrot.lane.b32.xlu0 %v596, 4
      %v700 = vpop.permute.xlu0 %699
      %701 = vrot.lane.b32.xlu0 %v606, 4
      %v702 = vpop.permute.xlu0 %701
      %703 = vrot.lane.b32.xlu0 %v616, 4
      %v704 = vpop.permute.xlu0 %703
      %705 = vrot.lane.b32.xlu0 %v626, 4
      %v706 = vpop.permute.xlu0 %705
      %707 = vrot.lane.b32.xlu0 %v636, 4
      %v708 = vpop.permute.xlu0 %707
      %709 = vrot.lane.b32.xlu0 %v646, 4
      %v710 = vpop.permute.xlu0 %709
      %711 = vrot.lane.b32.xlu0 %v656, 4
      %v712 = vpop.permute.xlu0 %711
      %713 = vrot.lane.b32.xlu0 %v666, 4
      %v714 = vpop.permute.xlu0 %713
      %715 = vrot.lane.b32.xlu0 %v676, 4
      %v716 = vpop.permute.xlu0 %715
      %717 = vrot.lane.b32.xlu0 %v686, 4
      %v718 = vpop.permute.xlu0 %717
      %vm735 = vcmask 60448
      %736 = vst.msk [vmem:[#allocation3] sm:$0xf] %vm735, %v688
      %737 = vst.msk [vmem:[#allocation3 + $0x4] sm:$0xf] %vm735, %v690
      %738 = vst.msk [vmem:[#allocation3 + $0x8] sm:$0xf] %vm735, %v692
      %739 = vst.msk [vmem:[#allocation3 + $0xc] sm:$0xf] %vm735, %v694
      %740 = vst.msk [vmem:[#allocation3 + $0x10] sm:$0xf] %vm735, %v696
      %741 = vst.msk [vmem:[#allocation3 + $0x14] sm:$0xf] %vm735, %v698
      %742 = vst.msk [vmem:[#allocation3 + $0x18] sm:$0xf] %vm735, %v700
      %743 = vst.msk [vmem:[#allocation3 + $0x1c] sm:$0xf] %vm735, %v702
      %744 = vst.msk [vmem:[#allocation3 + $0x20] sm:$0xf] %vm735, %v704
      %745 = vst.msk [vmem:[#allocation3 + $0x24] sm:$0xf] %vm735, %v706
      %746 = vst.msk [vmem:[#allocation3 + $0x28] sm:$0xf] %vm735, %v708
      %747 = vst.msk [vmem:[#allocation3 + $0x2c] sm:$0xf] %vm735, %v710
      %748 = vst.msk [vmem:[#allocation3 + $0x30] sm:$0xf] %vm735, %v712
      %749 = vst.msk [vmem:[#allocation3 + $0x34] sm:$0xf] %vm735, %v714
      %750 = vst.msk [vmem:[#allocation3 + $0x38] sm:$0xf] %vm735, %v716
      %751 = vst.msk [vmem:[#allocation3 + $0x3c] sm:$0xf] %vm735, %v718
      %vm769 = vcmask 1042432
      %vm770 = vcmask 1046532
      %vm771 = vmor %vm769, %vm770
      %v772 = vrot.slane %v486, 5
      %v773 = vrot.slane %v772, 4
      %v774 = vrot.slane %v487, 5
      %v775 = vsel %vm771, %v773, %v774
      %v776 = vrot.slane %v774, 4
      %v777 = vrot.slane %v488, 5
      %v778 = vsel %vm771, %v776, %v777
      %v779 = vrot.slane %v777, 4
      %v780 = vrot.slane %v489, 5
      %v781 = vsel %vm771, %v779, %v780
      %v782 = vrot.slane %v780, 4
      %v783 = vrot.slane %v490, 5
      %v784 = vsel %vm771, %v782, %v783
      %v785 = vrot.slane %v783, 4
      %v786 = vrot.slane %v491, 5
      %v787 = vsel %vm771, %v785, %v786
      %v788 = vrot.slane %v786, 4
      %v789 = vrot.slane %v492, 5
      %v790 = vsel %vm771, %v788, %v789
      %v791 = vrot.slane %v789, 4
      %v792 = vrot.slane %v493, 5
      %v793 = vsel %vm771, %v791, %v792
      %v794 = vrot.slane %v792, 4
      %v795 = vrot.slane %v494, 5
      %v796 = vsel %vm771, %v794, %v795
      %v797 = vrot.slane %v795, 4
      %v798 = vrot.slane %v495, 5
      %v799 = vsel %vm771, %v797, %v798
      %v800 = vrot.slane %v798, 4
      %v801 = vrot.slane %v496, 5
      %v802 = vsel %vm771, %v800, %v801
      %v803 = vrot.slane %v801, 4
      %v804 = vrot.slane %v497, 5
      %v805 = vsel %vm771, %v803, %v804
      %v806 = vrot.slane %v804, 4
      %v807 = vrot.slane %v498, 5
      %v808 = vsel %vm771, %v806, %v807
      %v809 = vrot.slane %v807, 4
      %v810 = vrot.slane %v499, 5
      %v811 = vsel %vm771, %v809, %v810
      %v812 = vrot.slane %v810, 4
      %v813 = vrot.slane %v500, 5
      %v814 = vsel %vm771, %v812, %v813
      %v815 = vrot.slane %v813, 4
      %v816 = vrot.slane %v501, 5
      %v817 = vsel %vm771, %v815, %v816
      %v818 = vrot.slane %v816, 4
      %v819 = vrot.slane %v502, 5
      %v820 = vsel %vm771, %v818, %v819
      %821 = vrot.lane.b32.xlu0 %v775, 8
      %v822 = vpop.permute.xlu0 %821
      %823 = vrot.lane.b32.xlu0 %v778, 8
      %v824 = vpop.permute.xlu0 %823
      %825 = vrot.lane.b32.xlu0 %v781, 8
      %v826 = vpop.permute.xlu0 %825
      %827 = vrot.lane.b32.xlu0 %v784, 8
      %v828 = vpop.permute.xlu0 %827
      %829 = vrot.lane.b32.xlu0 %v787, 8
      %v830 = vpop.permute.xlu0 %829
      %831 = vrot.lane.b32.xlu0 %v790, 8
      %v832 = vpop.permute.xlu0 %831
      %833 = vrot.lane.b32.xlu0 %v793, 8
      %v834 = vpop.permute.xlu0 %833
      %835 = vrot.lane.b32.xlu0 %v796, 8
      %v836 = vpop.permute.xlu0 %835
      %837 = vrot.lane.b32.xlu0 %v799, 8
      %v838 = vpop.permute.xlu0 %837
      %839 = vrot.lane.b32.xlu0 %v802, 8
      %v840 = vpop.permute.xlu0 %839
      %841 = vrot.lane.b32.xlu0 %v805, 8
      %v842 = vpop.permute.xlu0 %841
      %843 = vrot.lane.b32.xlu0 %v808, 8
      %v844 = vpop.permute.xlu0 %843
      %845 = vrot.lane.b32.xlu0 %v811, 8
      %v846 = vpop.permute.xlu0 %845
      %847 = vrot.lane.b32.xlu0 %v814, 8
      %v848 = vpop.permute.xlu0 %847
      %849 = vrot.lane.b32.xlu0 %v817, 8
      %v850 = vpop.permute.xlu0 %849
      %851 = vrot.lane.b32.xlu0 %v820, 8
      %v852 = vpop.permute.xlu0 %851
      %vm869 = vcmask 93248
      %870 = vst.msk [vmem:[#allocation3] sm:$0xf] %vm869, %v822
      %871 = vst.msk [vmem:[#allocation3 + $0x4] sm:$0xf] %vm869, %v824
      %872 = vst.msk [vmem:[#allocation3 + $0x8] sm:$0xf] %vm869, %v826
      %873 = vst.msk [vmem:[#allocation3 + $0xc] sm:$0xf] %vm869, %v828
      %874 = vst.msk [vmem:[#allocation3 + $0x10] sm:$0xf] %vm869, %v830
      %875 = vst.msk [vmem:[#allocation3 + $0x14] sm:$0xf] %vm869, %v832
      %876 = vst.msk [vmem:[#allocation3 + $0x18] sm:$0xf] %vm869, %v834
      %877 = vst.msk [vmem:[#allocation3 + $0x1c] sm:$0xf] %vm869, %v836
      %878 = vst.msk [vmem:[#allocation3 + $0x20] sm:$0xf] %vm869, %v838
      %879 = vst.msk [vmem:[#allocation3 + $0x24] sm:$0xf] %vm869, %v840
      %880 = vst.msk [vmem:[#allocation3 + $0x28] sm:$0xf] %vm869, %v842
      %881 = vst.msk [vmem:[#allocation3 + $0x2c] sm:$0xf] %vm869, %v844
      %882 = vst.msk [vmem:[#allocation3 + $0x30] sm:$0xf] %vm869, %v846
      %883 = vst.msk [vmem:[#allocation3 + $0x34] sm:$0xf] %vm869, %v848
      %884 = vst.msk [vmem:[#allocation3 + $0x38] sm:$0xf] %vm869, %v850
      %885 = vst.msk [vmem:[#allocation3 + $0x3c] sm:$0xf] %vm869, %v852
      %v886 = vld [vmem:[%s431] sm:$0xf]
      %v887 = vld [vmem:[%s431 + $0x4] sm:$0xf]
      %v888 = vld [vmem:[%s431 + $0x8] sm:$0xf]
      %v889 = vld [vmem:[%s431 + $0xc] sm:$0xf]
      %v890 = vld [vmem:[%s431 + $0x10] sm:$0xf]
      %v891 = vld [vmem:[%s431 + $0x14] sm:$0xf]
      %v892 = vld [vmem:[%s431 + $0x18] sm:$0xf]
      %v893 = vld [vmem:[%s431 + $0x1c] sm:$0xf]
      %v894 = vld [vmem:[%s431 + $0x20] sm:$0xf]
      %v895 = vld [vmem:[%s431 + $0x24] sm:$0xf]
      %v896 = vld [vmem:[%s431 + $0x28] sm:$0xf]
      %v897 = vld [vmem:[%s431 + $0x2c] sm:$0xf]
      %v898 = vld [vmem:[%s431 + $0x30] sm:$0xf]
      %v899 = vld [vmem:[%s431 + $0x34] sm:$0xf]
      %v900 = vld [vmem:[%s431 + $0x38] sm:$0xf]
      %v901 = vld [vmem:[%s431 + $0x3c] sm:$0xf]
      %v902 = vld [vmem:[%s431 + $0x40] sm:$0xf]
      %919 = vrot.lane.b32.xlu0 %v886, 12
      %v920 = vpop.permute.xlu0 %919
      %921 = vrot.lane.b32.xlu0 %v887, 12
      %v922 = vpop.permute.xlu0 %921
      %923 = vrot.lane.b32.xlu0 %v888, 12
      %v924 = vpop.permute.xlu0 %923
      %925 = vrot.lane.b32.xlu0 %v889, 12
      %v926 = vpop.permute.xlu0 %925
      %927 = vrot.lane.b32.xlu0 %v890, 12
      %v928 = vpop.permute.xlu0 %927
      %929 = vrot.lane.b32.xlu0 %v891, 12
      %v930 = vpop.permute.xlu0 %929
      %931 = vrot.lane.b32.xlu0 %v892, 12
      %v932 = vpop.permute.xlu0 %931
      %933 = vrot.lane.b32.xlu0 %v893, 12
      %v934 = vpop.permute.xlu0 %933
      %935 = vrot.lane.b32.xlu0 %v894, 12
      %v936 = vpop.permute.xlu0 %935
      %937 = vrot.lane.b32.xlu0 %v895, 12
      %v938 = vpop.permute.xlu0 %937
      %939 = vrot.lane.b32.xlu0 %v896, 12
      %v940 = vpop.permute.xlu0 %939
      %941 = vrot.lane.b32.xlu0 %v897, 12
      %v942 = vpop.permute.xlu0 %941
      %943 = vrot.lane.b32.xlu0 %v898, 12
      %v944 = vpop.permute.xlu0 %943
      %945 = vrot.lane.b32.xlu0 %v899, 12
      %v946 = vpop.permute.xlu0 %945
      %947 = vrot.lane.b32.xlu0 %v900, 12
      %v948 = vpop.permute.xlu0 %947
      %949 = vrot.lane.b32.xlu0 %v901, 12
      %v950 = vpop.permute.xlu0 %949
      %vm967 = vcmask 126048
      %968 = vst.msk [vmem:[#allocation3] sm:$0xf] %vm967, %v920
      %969 = vst.msk [vmem:[#allocation3 + $0x4] sm:$0xf] %vm967, %v922
      %970 = vst.msk [vmem:[#allocation3 + $0x8] sm:$0xf] %vm967, %v924
      %971 = vst.msk [vmem:[#allocation3 + $0xc] sm:$0xf] %vm967, %v926
      %972 = vst.msk [vmem:[#allocation3 + $0x10] sm:$0xf] %vm967, %v928
      %973 = vst.msk [vmem:[#allocation3 + $0x14] sm:$0xf] %vm967, %v930
      %974 = vst.msk [vmem:[#allocation3 + $0x18] sm:$0xf] %vm967, %v932
      %975 = vst.msk [vmem:[#allocation3 + $0x1c] sm:$0xf] %vm967, %v934
      %976 = vst.msk [vmem:[#allocation3 + $0x20] sm:$0xf] %vm967, %v936
      %977 = vst.msk [vmem:[#allocation3 + $0x24] sm:$0xf] %vm967, %v938
      %978 = vst.msk [vmem:[#allocation3 + $0x28] sm:$0xf] %vm967, %v940
      %979 = vst.msk [vmem:[#allocation3 + $0x2c] sm:$0xf] %vm967, %v942
      %980 = vst.msk [vmem:[#allocation3 + $0x30] sm:$0xf] %vm967, %v944
      %981 = vst.msk [vmem:[#allocation3 + $0x34] sm:$0xf] %vm967, %v946
      %982 = vst.msk [vmem:[#allocation3 + $0x38] sm:$0xf] %vm967, %v948
      %983 = vst.msk [vmem:[#allocation3 + $0x3c] sm:$0xf] %vm967, %v950
      %v985 = vshrl.u32 %v886, 16
      %v987 = vrot.slane %v985, 4
      %v988 = vshll.u32 %v886, 16
      %v990 = vrot.slane %v988, 5
      %v991 = vor.u32 %v987, %v990
      %v992 = vrot.slane %v991, 4
      %v994 = vshll.u32 %v887, 16
      %v996 = vrot.slane %v994, 5
      %v997 = vsel %vm522, %v992, %v996
      %v998 = vshrl.u32 %v887, 16
      %v1000 = vrot.slane %v998, 4
      %v1001 = vor.u32 %v1000, %v996
      %v1002 = vrot.slane %v1001, 4
      %v1004 = vshll.u32 %v888, 16
      %v1006 = vrot.slane %v1004, 5
      %v1007 = vsel %vm522, %v1002, %v1006
      %v1008 = vshrl.u32 %v888, 16
      %v1010 = vrot.slane %v1008, 4
      %v1011 = vor.u32 %v1010, %v1006
      %v1012 = vrot.slane %v1011, 4
      %v1014 = vshll.u32 %v889, 16
      %v1016 = vrot.slane %v1014, 5
      %v1017 = vsel %vm522, %v1012, %v1016
      %v1018 = vshrl.u32 %v889, 16
      %v1020 = vrot.slane %v1018, 4
      %v1021 = vor.u32 %v1020, %v1016
      %v1022 = vrot.slane %v1021, 4
      %v1024 = vshll.u32 %v890, 16
      %v1026 = vrot.slane %v1024, 5
      %v1027 = vsel %vm522, %v1022, %v1026
      %v1028 = vshrl.u32 %v890, 16
      %v1030 = vrot.slane %v1028, 4
      %v1031 = vor.u32 %v1030, %v1026
      %v1032 = vrot.slane %v1031, 4
      %v1034 = vshll.u32 %v891, 16
      %v1036 = vrot.slane %v1034, 5
      %v1037 = vsel %vm522, %v1032, %v1036
      %v1038 = vshrl.u32 %v891, 16
      %v1040 = vrot.slane %v1038, 4
      %v1041 = vor.u32 %v1040, %v1036
      %v1042 = vrot.slane %v1041, 4
      %v1044 = vshll.u32 %v892, 16
      %v1046 = vrot.slane %v1044, 5
      %v1047 = vsel %vm522, %v1042, %v1046
      %v1048 = vshrl.u32 %v892, 16
      %v1050 = vrot.slane %v1048, 4
      %v1051 = vor.u32 %v1050, %v1046
      %v1052 = vrot.slane %v1051, 4
      %v1054 = vshll.u32 %v893, 16
      %v1056 = vrot.slane %v1054, 5
      %v1057 = vsel %vm522, %v1052, %v1056
      %v1058 = vshrl.u32 %v893, 16
      %v1060 = vrot.slane %v1058, 4
      %v1061 = vor.u32 %v1060, %v1056
      %v1062 = vrot.slane %v1061, 4
      %v1064 = vshll.u32 %v894, 16
      %v1066 = vrot.slane %v1064, 5
      %v1067 = vsel %vm522, %v1062, %v1066
      %v1068 = vshrl.u32 %v894, 16
      %v1070 = vrot.slane %v1068, 4
      %v1071 = vor.u32 %v1070, %v1066
      %v1072 = vrot.slane %v1071, 4
      %v1074 = vshll.u32 %v895, 16
      %v1076 = vrot.slane %v1074, 5
      %v1077 = vsel %vm522, %v1072, %v1076
      %v1078 = vshrl.u32 %v895, 16
      %v1080 = vrot.slane %v1078, 4
      %v1081 = vor.u32 %v1080, %v1076
      %v1082 = vrot.slane %v1081, 4
      %v1084 = vshll.u32 %v896, 16
      %v1086 = vrot.slane %v1084, 5
      %v1087 = vsel %vm522, %v1082, %v1086
      %v1088 = vshrl.u32 %v896, 16
      %v1090 = vrot.slane %v1088, 4
      %v1091 = vor.u32 %v1090, %v1086
      %v1092 = vrot.slane %v1091, 4
      %v1094 = vshll.u32 %v897, 16
      %v1096 = vrot.slane %v1094, 5
      %v1097 = vsel %vm522, %v1092, %v1096
      %v1098 = vshrl.u32 %v897, 16
      %v1100 = vrot.slane %v1098, 4
      %v1101 = vor.u32 %v1100, %v1096
      %v1102 = vrot.slane %v1101, 4
      %v1104 = vshll.u32 %v898, 16
      %v1106 = vrot.slane %v1104, 5
      %v1107 = vsel %vm522, %v1102, %v1106
      %v1108 = vshrl.u32 %v898, 16
      %v1110 = vrot.slane %v1108, 4
      %v1111 = vor.u32 %v1110, %v1106
      %v1112 = vrot.slane %v1111, 4
      %v1114 = vshll.u32 %v899, 16
      %v1116 = vrot.slane %v1114, 5
      %v1117 = vsel %vm522, %v1112, %v1116
      %v1118 = vshrl.u32 %v899, 16
      %v1120 = vrot.slane %v1118, 4
      %v1121 = vor.u32 %v1120, %v1116
      %v1122 = vrot.slane %v1121, 4
      %v1124 = vshll.u32 %v900, 16
      %v1126 = vrot.slane %v1124, 5
      %v1127 = vsel %vm522, %v1122, %v1126
      %v1128 = vshrl.u32 %v900, 16
      %v1130 = vrot.slane %v1128, 4
      %v1131 = vor.u32 %v1130, %v1126
      %v1132 = vrot.slane %v1131, 4
      %v1134 = vshll.u32 %v901, 16
      %v1136 = vrot.slane %v1134, 5
      %v1137 = vsel %vm522, %v1132, %v1136
      %v1138 = vshrl.u32 %v901, 16
      %v1140 = vrot.slane %v1138, 4
      %v1141 = vor.u32 %v1140, %v1136
      %v1142 = vrot.slane %v1141, 4
      %v1144 = vshll.u32 %v902, 16
      %v1146 = vrot.slane %v1144, 5
      %v1147 = vsel %vm522, %v1142, %v1146
      %1148 = vrot.lane.b32.xlu0 %v997, 16
      %v1149 = vpop.permute.xlu0 %1148
      %1150 = vrot.lane.b32.xlu0 %v1007, 16
      %v1151 = vpop.permute.xlu0 %1150
      %1152 = vrot.lane.b32.xlu0 %v1017, 16
      %v1153 = vpop.permute.xlu0 %1152
      %1154 = vrot.lane.b32.xlu0 %v1027, 16
      %v1155 = vpop.permute.xlu0 %1154
      %1156 = vrot.lane.b32.xlu0 %v1037, 16
      %v1157 = vpop.permute.xlu0 %1156
      %1158 = vrot.lane.b32.xlu0 %v1047, 16
      %v1159 = vpop.permute.xlu0 %1158
      %1160 = vrot.lane.b32.xlu0 %v1057, 16
      %v1161 = vpop.permute.xlu0 %1160
      %1162 = vrot.lane.b32.xlu0 %v1067, 16
      %v1163 = vpop.permute.xlu0 %1162
      %1164 = vrot.lane.b32.xlu0 %v1077, 16
      %v1165 = vpop.permute.xlu0 %1164
      %1166 = vrot.lane.b32.xlu0 %v1087, 16
      %v1167 = vpop.permute.xlu0 %1166
      %1168 = vrot.lane.b32.xlu0 %v1097, 16
      %v1169 = vpop.permute.xlu0 %1168
      %1170 = vrot.lane.b32.xlu0 %v1107, 16
      %v1171 = vpop.permute.xlu0 %1170
      %1172 = vrot.lane.b32.xlu0 %v1117, 16
      %v1173 = vpop.permute.xlu0 %1172
      %1174 = vrot.lane.b32.xlu0 %v1127, 16
      %v1175 = vpop.permute.xlu0 %1174
      %1176 = vrot.lane.b32.xlu0 %v1137, 16
      %v1177 = vpop.permute.xlu0 %1176
      %1178 = vrot.lane.b32.xlu0 %v1147, 16
      %v1179 = vpop.permute.xlu0 %1178
      %vm1196 = vcmask 158848
      %1197 = vst.msk [vmem:[#allocation3] sm:$0xf] %vm1196, %v1149
      %1198 = vst.msk [vmem:[#allocation3 + $0x4] sm:$0xf] %vm1196, %v1151
      %1199 = vst.msk [vmem:[#allocation3 + $0x8] sm:$0xf] %vm1196, %v1153
      %1200 = vst.msk [vmem:[#allocation3 + $0xc] sm:$0xf] %vm1196, %v1155
      %1201 = vst.msk [vmem:[#allocation3 + $0x10] sm:$0xf] %vm1196, %v1157
      %1202 = vst.msk [vmem:[#allocation3 + $0x14] sm:$0xf] %vm1196, %v1159
      %1203 = vst.msk [vmem:[#allocation3 + $0x18] sm:$0xf] %vm1196, %v1161
      %1204 = vst.msk [vmem:[#allocation3 + $0x1c] sm:$0xf] %vm1196, %v1163
      %1205 = vst.msk [vmem:[#allocation3 + $0x20] sm:$0xf] %vm1196, %v1165
      %1206 = vst.msk [vmem:[#allocation3 + $0x24] sm:$0xf] %vm1196, %v1167
      %1207 = vst.msk [vmem:[#allocation3 + $0x28] sm:$0xf] %vm1196, %v1169
      %1208 = vst.msk [vmem:[#allocation3 + $0x2c] sm:$0xf] %vm1196, %v1171
      %1209 = vst.msk [vmem:[#allocation3 + $0x30] sm:$0xf] %vm1196, %v1173
      %1210 = vst.msk [vmem:[#allocation3 + $0x34] sm:$0xf] %vm1196, %v1175
      %1211 = vst.msk [vmem:[#allocation3 + $0x38] sm:$0xf] %vm1196, %v1177
      %1212 = vst.msk [vmem:[#allocation3 + $0x3c] sm:$0xf] %vm1196, %v1179
      %v1214 = vrot.slane %v886, 5
      %v1215 = vrot.slane %v1214, 4
      %v1216 = vrot.slane %v887, 5
      %v1217 = vsel %vm771, %v1215, %v1216
      %v1218 = vrot.slane %v1216, 4
      %v1219 = vrot.slane %v888, 5
      %v1220 = vsel %vm771, %v1218, %v1219
      %v1221 = vrot.slane %v1219, 4
      %v1222 = vrot.slane %v889, 5
      %v1223 = vsel %vm771, %v1221, %v1222
      %v1224 = vrot.slane %v1222, 4
      %v1225 = vrot.slane %v890, 5
      %v1226 = vsel %vm771, %v1224, %v1225
      %v1227 = vrot.slane %v1225, 4
      %v1228 = vrot.slane %v891, 5
      %v1229 = vsel %vm771, %v1227, %v1228
      %v1230 = vrot.slane %v1228, 4
      %v1231 = vrot.slane %v892, 5
      %v1232 = vsel %vm771, %v1230, %v1231
      %v1233 = vrot.slane %v1231, 4
      %v1234 = vrot.slane %v893, 5
      %v1235 = vsel %vm771, %v1233, %v1234
      %v1236 = vrot.slane %v1234, 4
      %v1237 = vrot.slane %v894, 5
      %v1238 = vsel %vm771, %v1236, %v1237
      %v1239 = vrot.slane %v1237, 4
      %v1240 = vrot.slane %v895, 5
      %v1241 = vsel %vm771, %v1239, %v1240
      %v1242 = vrot.slane %v1240, 4
      %v1243 = vrot.slane %v896, 5
      %v1244 = vsel %vm771, %v1242, %v1243
      %v1245 = vrot.slane %v1243, 4
      %v1246 = vrot.slane %v897, 5
      %v1247 = vsel %vm771, %v1245, %v1246
      %v1248 = vrot.slane %v1246, 4
      %v1249 = vrot.slane %v898, 5
      %v1250 = vsel %vm771, %v1248, %v1249
      %v1251 = vrot.slane %v1249, 4
      %v1252 = vrot.slane %v899, 5
      %v1253 = vsel %vm771, %v1251, %v1252
      %v1254 = vrot.slane %v1252, 4
      %v1255 = vrot.slane %v900, 5
      %v1256 = vsel %vm771, %v1254, %v1255
      %v1257 = vrot.slane %v1255, 4
      %v1258 = vrot.slane %v901, 5
      %v1259 = vsel %vm771, %v1257, %v1258
      %v1260 = vrot.slane %v1258, 4
      %v1261 = vrot.slane %v902, 5
      %v1262 = vsel %vm771, %v1260, %v1261
      %1263 = vrot.lane.b32.xlu0 %v1217, 20
      %v1264 = vpop.permute.xlu0 %1263
      %1265 = vrot.lane.b32.xlu0 %v1220, 20
      %v1266 = vpop.permute.xlu0 %1265
      %1267 = vrot.lane.b32.xlu0 %v1223, 20
      %v1268 = vpop.permute.xlu0 %1267
      %1269 = vrot.lane.b32.xlu0 %v1226, 20
      %v1270 = vpop.permute.xlu0 %1269
      %1271 = vrot.lane.b32.xlu0 %v1229, 20
      %v1272 = vpop.permute.xlu0 %1271
      %1273 = vrot.lane.b32.xlu0 %v1232, 20
      %v1274 = vpop.permute.xlu0 %1273
      %1275 = vrot.lane.b32.xlu0 %v1235, 20
      %v1276 = vpop.permute.xlu0 %1275
      %1277 = vrot.lane.b32.xlu0 %v1238, 20
      %v1278 = vpop.permute.xlu0 %1277
      %1279 = vrot.lane.b32.xlu0 %v1241, 20
      %v1280 = vpop.permute.xlu0 %1279
      %1281 = vrot.lane.b32.xlu0 %v1244, 20
      %v1282 = vpop.permute.xlu0 %1281
      %1283 = vrot.lane.b32.xlu0 %v1247, 20
      %v1284 = vpop.permute.xlu0 %1283
      %1285 = vrot.lane.b32.xlu0 %v1250, 20
      %v1286 = vpop.permute.xlu0 %1285
      %1287 = vrot.lane.b32.xlu0 %v1253, 20
      %v1288 = vpop.permute.xlu0 %1287
      %1289 = vrot.lane.b32.xlu0 %v1256, 20
      %v1290 = vpop.permute.xlu0 %1289
      %1291 = vrot.lane.b32.xlu0 %v1259, 20
      %v1292 = vpop.permute.xlu0 %1291
      %1293 = vrot.lane.b32.xlu0 %v1262, 20
      %v1294 = vpop.permute.xlu0 %1293
      %vm1311 = vcmask 191648
      %1312 = vst.msk [vmem:[#allocation3] sm:$0xf] %vm1311, %v1264
      %1313 = vst.msk [vmem:[#allocation3 + $0x4] sm:$0xf] %vm1311, %v1266
      %1314 = vst.msk [vmem:[#allocation3 + $0x8] sm:$0xf] %vm1311, %v1268
      %1315 = vst.msk [vmem:[#allocation3 + $0xc] sm:$0xf] %vm1311, %v1270
      %1316 = vst.msk [vmem:[#allocation3 + $0x10] sm:$0xf] %vm1311, %v1272
      %1317 = vst.msk [vmem:[#allocation3 + $0x14] sm:$0xf] %vm1311, %v1274
      %1318 = vst.msk [vmem:[#allocation3 + $0x18] sm:$0xf] %vm1311, %v1276
      %1319 = vst.msk [vmem:[#allocation3 + $0x1c] sm:$0xf] %vm1311, %v1278
      %1320 = vst.msk [vmem:[#allocation3 + $0x20] sm:$0xf] %vm1311, %v1280
      %1321 = vst.msk [vmem:[#allocation3 + $0x24] sm:$0xf] %vm1311, %v1282
      %1322 = vst.msk [vmem:[#allocation3 + $0x28] sm:$0xf] %vm1311, %v1284
      %1323 = vst.msk [vmem:[#allocation3 + $0x2c] sm:$0xf] %vm1311, %v1286
      %1324 = vst.msk [vmem:[#allocation3 + $0x30] sm:$0xf] %vm1311, %v1288
      %1325 = vst.msk [vmem:[#allocation3 + $0x34] sm:$0xf] %vm1311, %v1290
      %1326 = vst.msk [vmem:[#allocation3 + $0x38] sm:$0xf] %vm1311, %v1292
      %1327 = vst.msk [vmem:[#allocation3 + $0x3c] sm:$0xf] %vm1311, %v1294
      %s1328 = scalar_lea.vmem [#allocation2], 16
      %v1329 = vld [vmem:[%s1328] sm:$0xf]
      %v1330 = vld [vmem:[%s1328 + $0x4] sm:$0xf]
      %v1331 = vld [vmem:[%s1328 + $0x8] sm:$0xf]
      %v1332 = vld [vmem:[%s1328 + $0xc] sm:$0xf]
      %v1333 = vld [vmem:[%s1328 + $0x10] sm:$0xf]
      %v1334 = vld [vmem:[%s1328 + $0x14] sm:$0xf]
      %v1335 = vld [vmem:[%s1328 + $0x18] sm:$0xf]
      %v1336 = vld [vmem:[%s1328 + $0x1c] sm:$0xf]
      %v1337 = vld [vmem:[%s1328 + $0x20] sm:$0xf]
      %v1338 = vld [vmem:[%s1328 + $0x24] sm:$0xf]
      %v1339 = vld [vmem:[%s1328 + $0x28] sm:$0xf]
      %v1340 = vld [vmem:[%s1328 + $0x2c] sm:$0xf]
      %v1341 = vld [vmem:[%s1328 + $0x30] sm:$0xf]
      %v1342 = vld [vmem:[%s1328 + $0x34] sm:$0xf]
      %v1343 = vld [vmem:[%s1328 + $0x38] sm:$0xf]
      %v1344 = vld [vmem:[%s1328 + $0x3c] sm:$0xf]
      %v1345 = vld [vmem:[%s1328 + $0x40] sm:$0xf]
      %1362 = vrot.lane.b32.xlu0 %v1329, 24
      %v1363 = vpop.permute.xlu0 %1362
      %1364 = vrot.lane.b32.xlu0 %v1330, 24
      %v1365 = vpop.permute.xlu0 %1364
      %1366 = vrot.lane.b32.xlu0 %v1331, 24
      %v1367 = vpop.permute.xlu0 %1366
      %1368 = vrot.lane.b32.xlu0 %v1332, 24
      %v1369 = vpop.permute.xlu0 %1368
      %1370 = vrot.lane.b32.xlu0 %v1333, 24
      %v1371 = vpop.permute.xlu0 %1370
      %1372 = vrot.lane.b32.xlu0 %v1334, 24
      %v1373 = vpop.permute.xlu0 %1372
      %1374 = vrot.lane.b32.xlu0 %v1335, 24
      %v1375 = vpop.permute.xlu0 %1374
      %1376 = vrot.lane.b32.xlu0 %v1336, 24
      %v1377 = vpop.permute.xlu0 %1376
      %1378 = vrot.lane.b32.xlu0 %v1337, 24
      %v1379 = vpop.permute.xlu0 %1378
      %1380 = vrot.lane.b32.xlu0 %v1338, 24
      %v1381 = vpop.permute.xlu0 %1380
      %1382 = vrot.lane.b32.xlu0 %v1339, 24
      %v1383 = vpop.permute.xlu0 %1382
      %1384 = vrot.lane.b32.xlu0 %v1340, 24
      %v1385 = vpop.permute.xlu0 %1384
      %1386 = vrot.lane.b32.xlu0 %v1341, 24
      %v1387 = vpop.permute.xlu0 %1386
      %1388 = vrot.lane.b32.xlu0 %v1342, 24
      %v1389 = vpop.permute.xlu0 %1388
      %1390 = vrot.lane.b32.xlu0 %v1343, 24
      %v1391 = vpop.permute.xlu0 %1390
      %1392 = vrot.lane.b32.xlu0 %v1344, 24
      %v1393 = vpop.permute.xlu0 %1392
      %vm1410 = vcmask 224448
      %1411 = vst.msk [vmem:[#allocation3] sm:$0xf] %vm1410, %v1363
      %1412 = vst.msk [vmem:[#allocation3 + $0x4] sm:$0xf] %vm1410, %v1365
      %1413 = vst.msk [vmem:[#allocation3 + $0x8] sm:$0xf] %vm1410, %v1367
      %1414 = vst.msk [vmem:[#allocation3 + $0xc] sm:$0xf] %vm1410, %v1369
      %1415 = vst.msk [vmem:[#allocation3 + $0x10] sm:$0xf] %vm1410, %v1371
      %1416 = vst.msk [vmem:[#allocation3 + $0x14] sm:$0xf] %vm1410, %v1373
      %1417 = vst.msk [vmem:[#allocation3 + $0x18] sm:$0xf] %vm1410, %v1375
      %1418 = vst.msk [vmem:[#allocation3 + $0x1c] sm:$0xf] %vm1410, %v1377
      %1419 = vst.msk [vmem:[#allocation3 + $0x20] sm:$0xf] %vm1410, %v1379
      %1420 = vst.msk [vmem:[#allocation3 + $0x24] sm:$0xf] %vm1410, %v1381
      %1421 = vst.msk [vmem:[#allocation3 + $0x28] sm:$0xf] %vm1410, %v1383
      %1422 = vst.msk [vmem:[#allocation3 + $0x2c] sm:$0xf] %vm1410, %v1385
      %1423 = vst.msk [vmem:[#allocation3 + $0x30] sm:$0xf] %vm1410, %v1387
      %1424 = vst.msk [vmem:[#allocation3 + $0x34] sm:$0xf] %vm1410, %v1389
      %1425 = vst.msk [vmem:[#allocation3 + $0x38] sm:$0xf] %vm1410, %v1391
      %1426 = vst.msk [vmem:[#allocation3 + $0x3c] sm:$0xf] %vm1410, %v1393
      %v1428 = vshrl.u32 %v1329, 16
      %v1430 = vrot.slane %v1428, 4
      %v1431 = vshll.u32 %v1329, 16
      %v1433 = vrot.slane %v1431, 5
      %v1434 = vor.u32 %v1430, %v1433
      %v1435 = vrot.slane %v1434, 4
      %v1437 = vshll.u32 %v1330, 16
      %v1439 = vrot.slane %v1437, 5
      %v1440 = vsel %vm522, %v1435, %v1439
      %v1441 = vshrl.u32 %v1330, 16
      %v1443 = vrot.slane %v1441, 4
      %v1444 = vor.u32 %v1443, %v1439
      %v1445 = vrot.slane %v1444, 4
      %v1447 = vshll.u32 %v1331, 16
      %v1449 = vrot.slane %v1447, 5
      %v1450 = vsel %vm522, %v1445, %v1449
      %v1451 = vshrl.u32 %v1331, 16
      %v1453 = vrot.slane %v1451, 4
      %v1454 = vor.u32 %v1453, %v1449
      %v1455 = vrot.slane %v1454, 4
      %v1457 = vshll.u32 %v1332, 16
      %v1459 = vrot.slane %v1457, 5
      %v1460 = vsel %vm522, %v1455, %v1459
      %v1461 = vshrl.u32 %v1332, 16
      %v1463 = vrot.slane %v1461, 4
      %v1464 = vor.u32 %v1463, %v1459
      %v1465 = vrot.slane %v1464, 4
      %v1467 = vshll.u32 %v1333, 16
      %v1469 = vrot.slane %v1467, 5
      %v1470 = vsel %vm522, %v1465, %v1469
      %v1471 = vshrl.u32 %v1333, 16
      %v1473 = vrot.slane %v1471, 4
      %v1474 = vor.u32 %v1473, %v1469
      %v1475 = vrot.slane %v1474, 4
      %v1477 = vshll.u32 %v1334, 16
      %v1479 = vrot.slane %v1477, 5
      %v1480 = vsel %vm522, %v1475, %v1479
      %v1481 = vshrl.u32 %v1334, 16
      %v1483 = vrot.slane %v1481, 4
      %v1484 = vor.u32 %v1483, %v1479
      %v1485 = vrot.slane %v1484, 4
      %v1487 = vshll.u32 %v1335, 16
      %v1489 = vrot.slane %v1487, 5
      %v1490 = vsel %vm522, %v1485, %v1489
      %v1491 = vshrl.u32 %v1335, 16
      %v1493 = vrot.slane %v1491, 4
      %v1494 = vor.u32 %v1493, %v1489
      %v1495 = vrot.slane %v1494, 4
      %v1497 = vshll.u32 %v1336, 16
      %v1499 = vrot.slane %v1497, 5
      %v1500 = vsel %vm522, %v1495, %v1499
      %v1501 = vshrl.u32 %v1336, 16
      %v1503 = vrot.slane %v1501, 4
      %v1504 = vor.u32 %v1503, %v1499
      %v1505 = vrot.slane %v1504, 4
      %v1507 = vshll.u32 %v1337, 16
      %v1509 = vrot.slane %v1507, 5
      %v1510 = vsel %vm522, %v1505, %v1509
      %v1511 = vshrl.u32 %v1337, 16
      %v1513 = vrot.slane %v1511, 4
      %v1514 = vor.u32 %v1513, %v1509
      %v1515 = vrot.slane %v1514, 4
      %v1517 = vshll.u32 %v1338, 16
      %v1519 = vrot.slane %v1517, 5
      %v1520 = vsel %vm522, %v1515, %v1519
      %v1521 = vshrl.u32 %v1338, 16
      %v1523 = vrot.slane %v1521, 4
      %v1524 = vor.u32 %v1523, %v1519
      %v1525 = vrot.slane %v1524, 4
      %v1527 = vshll.u32 %v1339, 16
      %v1529 = vrot.slane %v1527, 5
      %v1530 = vsel %vm522, %v1525, %v1529
      %v1531 = vshrl.u32 %v1339, 16
      %v1533 = vrot.slane %v1531, 4
      %v1534 = vor.u32 %v1533, %v1529
      %v1535 = vrot.slane %v1534, 4
      %v1537 = vshll.u32 %v1340, 16
      %v1539 = vrot.slane %v1537, 5
      %v1540 = vsel %vm522, %v1535, %v1539
      %v1541 = vshrl.u32 %v1340, 16
      %v1543 = vrot.slane %v1541, 4
      %v1544 = vor.u32 %v1543, %v1539
      %v1545 = vrot.slane %v1544, 4
      %v1547 = vshll.u32 %v1341, 16
      %v1549 = vrot.slane %v1547, 5
      %v1550 = vsel %vm522, %v1545, %v1549
      %v1551 = vshrl.u32 %v1341, 16
      %v1553 = vrot.slane %v1551, 4
      %v1554 = vor.u32 %v1553, %v1549
      %v1555 = vrot.slane %v1554, 4
      %v1557 = vshll.u32 %v1342, 16
      %v1559 = vrot.slane %v1557, 5
      %v1560 = vsel %vm522, %v1555, %v1559
      %v1561 = vshrl.u32 %v1342, 16
      %v1563 = vrot.slane %v1561, 4
      %v1564 = vor.u32 %v1563, %v1559
      %v1565 = vrot.slane %v1564, 4
      %v1567 = vshll.u32 %v1343, 16
      %v1569 = vrot.slane %v1567, 5
      %v1570 = vsel %vm522, %v1565, %v1569
      %v1571 = vshrl.u32 %v1343, 16
      %v1573 = vrot.slane %v1571, 4
      %v1574 = vor.u32 %v1573, %v1569
      %v1575 = vrot.slane %v1574, 4
      %v1577 = vshll.u32 %v1344, 16
      %v1579 = vrot.slane %v1577, 5
      %v1580 = vsel %vm522, %v1575, %v1579
      %v1581 = vshrl.u32 %v1344, 16
      %v1583 = vrot.slane %v1581, 4
      %v1584 = vor.u32 %v1583, %v1579
      %v1585 = vrot.slane %v1584, 4
      %v1587 = vshll.u32 %v1345, 16
      %v1589 = vrot.slane %v1587, 5
      %v1590 = vsel %vm522, %v1585, %v1589
      %1591 = vrot.lane.b32.xlu0 %v1440, 28
      %v1592 = vpop.permute.xlu0 %1591
      %1593 = vrot.lane.b32.xlu0 %v1450, 28
      %v1594 = vpop.permute.xlu0 %1593
      %1595 = vrot.lane.b32.xlu0 %v1460, 28
      %v1596 = vpop.permute.xlu0 %1595
      %1597 = vrot.lane.b32.xlu0 %v1470, 28
      %v1598 = vpop.permute.xlu0 %1597
      %1599 = vrot.lane.b32.xlu0 %v1480, 28
      %v1600 = vpop.permute.xlu0 %1599
      %1601 = vrot.lane.b32.xlu0 %v1490, 28
      %v1602 = vpop.permute.xlu0 %1601
      %1603 = vrot.lane.b32.xlu0 %v1500, 28
      %v1604 = vpop.permute.xlu0 %1603
      %1605 = vrot.lane.b32.xlu0 %v1510, 28
      %v1606 = vpop.permute.xlu0 %1605
      %1607 = vrot.lane.b32.xlu0 %v1520, 28
      %v1608 = vpop.permute.xlu0 %1607
      %1609 = vrot.lane.b32.xlu0 %v1530, 28
      %v1610 = vpop.permute.xlu0 %1609
      %1611 = vrot.lane.b32.xlu0 %v1540, 28
      %v1612 = vpop.permute.xlu0 %1611
      %1613 = vrot.lane.b32.xlu0 %v1550, 28
      %v1614 = vpop.permute.xlu0 %1613
      %1615 = vrot.lane.b32.xlu0 %v1560, 28
      %v1616 = vpop.permute.xlu0 %1615
      %1617 = vrot.lane.b32.xlu0 %v1570, 28
      %v1618 = vpop.permute.xlu0 %1617
      %1619 = vrot.lane.b32.xlu0 %v1580, 28
      %v1620 = vpop.permute.xlu0 %1619
      %1621 = vrot.lane.b32.xlu0 %v1590, 28
      %v1622 = vpop.permute.xlu0 %1621
      %vm1639 = vcmask 257248
      %1640 = vst.msk [vmem:[#allocation3] sm:$0xf] %vm1639, %v1592
      %1641 = vst.msk [vmem:[#allocation3 + $0x4] sm:$0xf] %vm1639, %v1594
      %1642 = vst.msk [vmem:[#allocation3 + $0x8] sm:$0xf] %vm1639, %v1596
      %1643 = vst.msk [vmem:[#allocation3 + $0xc] sm:$0xf] %vm1639, %v1598
      %1644 = vst.msk [vmem:[#allocation3 + $0x10] sm:$0xf] %vm1639, %v1600
      %1645 = vst.msk [vmem:[#allocation3 + $0x14] sm:$0xf] %vm1639, %v1602
      %1646 = vst.msk [vmem:[#allocation3 + $0x18] sm:$0xf] %vm1639, %v1604
      %1647 = vst.msk [vmem:[#allocation3 + $0x1c] sm:$0xf] %vm1639, %v1606
      %1648 = vst.msk [vmem:[#allocation3 + $0x20] sm:$0xf] %vm1639, %v1608
      %1649 = vst.msk [vmem:[#allocation3 + $0x24] sm:$0xf] %vm1639, %v1610
      %1650 = vst.msk [vmem:[#allocation3 + $0x28] sm:$0xf] %vm1639, %v1612
      %1651 = vst.msk [vmem:[#allocation3 + $0x2c] sm:$0xf] %vm1639, %v1614
      %1652 = vst.msk [vmem:[#allocation3 + $0x30] sm:$0xf] %vm1639, %v1616
      %1653 = vst.msk [vmem:[#allocation3 + $0x34] sm:$0xf] %vm1639, %v1618
      %1654 = vst.msk [vmem:[#allocation3 + $0x38] sm:$0xf] %vm1639, %v1620
      %1655 = vst.msk [vmem:[#allocation3 + $0x3c] sm:$0xf] %vm1639, %v1622
      %v1657 = vrot.slane %v1329, 5
      %v1658 = vrot.slane %v1657, 4
      %v1659 = vrot.slane %v1330, 5
      %v1660 = vsel %vm771, %v1658, %v1659
      %v1661 = vrot.slane %v1659, 4
      %v1662 = vrot.slane %v1331, 5
      %v1663 = vsel %vm771, %v1661, %v1662
      %v1664 = vrot.slane %v1662, 4
      %v1665 = vrot.slane %v1332, 5
      %v1666 = vsel %vm771, %v1664, %v1665
      %v1667 = vrot.slane %v1665, 4
      %v1668 = vrot.slane %v1333, 5
      %v1669 = vsel %vm771, %v1667, %v1668
      %v1670 = vrot.slane %v1668, 4
      %v1671 = vrot.slane %v1334, 5
      %v1672 = vsel %vm771, %v1670, %v1671
      %v1673 = vrot.slane %v1671, 4
      %v1674 = vrot.slane %v1335, 5
      %v1675 = vsel %vm771, %v1673, %v1674
      %v1676 = vrot.slane %v1674, 4
      %v1677 = vrot.slane %v1336, 5
      %v1678 = vsel %vm771, %v1676, %v1677
      %v1679 = vrot.slane %v1677, 4
      %v1680 = vrot.slane %v1337, 5
      %v1681 = vsel %vm771, %v1679, %v1680
      %v1682 = vrot.slane %v1680, 4
      %v1683 = vrot.slane %v1338, 5
      %v1684 = vsel %vm771, %v1682, %v1683
      %v1685 = vrot.slane %v1683, 4
      %v1686 = vrot.slane %v1339, 5
      %v1687 = vsel %vm771, %v1685, %v1686
      %v1688 = vrot.slane %v1686, 4
      %v1689 = vrot.slane %v1340, 5
      %v1690 = vsel %vm771, %v1688, %v1689
      %v1691 = vrot.slane %v1689, 4
      %v1692 = vrot.slane %v1341, 5
      %v1693 = vsel %vm771, %v1691, %v1692
      %v1694 = vrot.slane %v1692, 4
      %v1695 = vrot.slane %v1342, 5
      %v1696 = vsel %vm771, %v1694, %v1695
      %v1697 = vrot.slane %v1695, 4
      %v1698 = vrot.slane %v1343, 5
      %v1699 = vsel %vm771, %v1697, %v1698
      %v1700 = vrot.slane %v1698, 4
      %v1701 = vrot.slane %v1344, 5
      %v1702 = vsel %vm771, %v1700, %v1701
      %v1703 = vrot.slane %v1701, 4
      %v1704 = vrot.slane %v1345, 5
      %v1705 = vsel %vm771, %v1703, %v1704
      %1706 = vrot.lane.b32.xlu0 %v1660, 32
      %v1707 = vpop.permute.xlu0 %1706
      %1708 = vrot.lane.b32.xlu0 %v1663, 32
      %v1709 = vpop.permute.xlu0 %1708
      %1710 = vrot.lane.b32.xlu0 %v1666, 32
      %v1711 = vpop.permute.xlu0 %1710
      %1712 = vrot.lane.b32.xlu0 %v1669, 32
      %v1713 = vpop.permute.xlu0 %1712
      %1714 = vrot.lane.b32.xlu0 %v1672, 32
      %v1715 = vpop.permute.xlu0 %1714
      %1716 = vrot.lane.b32.xlu0 %v1675, 32
      %v1717 = vpop.permute.xlu0 %1716
      %1718 = vrot.lane.b32.xlu0 %v1678, 32
      %v1719 = vpop.permute.xlu0 %1718
      %1720 = vrot.lane.b32.xlu0 %v1681, 32
      %v1721 = vpop.permute.xlu0 %1720
      %1722 = vrot.lane.b32.xlu0 %v1684, 32
      %v1723 = vpop.permute.xlu0 %1722
      %1724 = vrot.lane.b32.xlu0 %v1687, 32
      %v1725 = vpop.permute.xlu0 %1724
      %1726 = vrot.lane.b32.xlu0 %v1690, 32
      %v1727 = vpop.permute.xlu0 %1726
      %1728 = vrot.lane.b32.xlu0 %v1693, 32
      %v1729 = vpop.permute.xlu0 %1728
      %1730 = vrot.lane.b32.xlu0 %v1696, 32
      %v1731 = vpop.permute.xlu0 %1730
      %1732 = vrot.lane.b32.xlu0 %v1699, 32
      %v1733 = vpop.permute.xlu0 %1732
      %1734 = vrot.lane.b32.xlu0 %v1702, 32
      %v1735 = vpop.permute.xlu0 %1734
      %1736 = vrot.lane.b32.xlu0 %v1705, 32
      %v1737 = vpop.permute.xlu0 %1736
      %vm1754 = vcmask 290048
      %1755 = vst.msk [vmem:[#allocation3] sm:$0xf] %vm1754, %v1707
      %1756 = vst.msk [vmem:[#allocation3 + $0x4] sm:$0xf] %vm1754, %v1709
      %1757 = vst.msk [vmem:[#allocation3 + $0x8] sm:$0xf] %vm1754, %v1711
      %1758 = vst.msk [vmem:[#allocation3 + $0xc] sm:$0xf] %vm1754, %v1713
      %1759 = vst.msk [vmem:[#allocation3 + $0x10] sm:$0xf] %vm1754, %v1715
      %1760 = vst.msk [vmem:[#allocation3 + $0x14] sm:$0xf] %vm1754, %v1717
      %1761 = vst.msk [vmem:[#allocation3 + $0x18] sm:$0xf] %vm1754, %v1719
      %1762 = vst.msk [vmem:[#allocation3 + $0x1c] sm:$0xf] %vm1754, %v1721
      %1763 = vst.msk [vmem:[#allocation3 + $0x20] sm:$0xf] %vm1754, %v1723
      %1764 = vst.msk [vmem:[#allocation3 + $0x24] sm:$0xf] %vm1754, %v1725
      %1765 = vst.msk [vmem:[#allocation3 + $0x28] sm:$0xf] %vm1754, %v1727
      %1766 = vst.msk [vmem:[#allocation3 + $0x2c] sm:$0xf] %vm1754, %v1729
      %1767 = vst.msk [vmem:[#allocation3 + $0x30] sm:$0xf] %vm1754, %v1731
      %1768 = vst.msk [vmem:[#allocation3 + $0x34] sm:$0xf] %vm1754, %v1733
      %1769 = vst.msk [vmem:[#allocation3 + $0x38] sm:$0xf] %vm1754, %v1735
      %1770 = vst.msk [vmem:[#allocation3 + $0x3c] sm:$0xf] %vm1754, %v1737
      %v1771 = vld [vmem:[#allocation3] sm:$0xf]
      %v1772 = vld [vmem:[#allocation3 + $0x4] sm:$0xf]
      %v1773 = vld [vmem:[#allocation3 + $0x8] sm:$0xf]
      %v1774 = vld [vmem:[#allocation3 + $0xc] sm:$0xf]
      %v1775 = vld [vmem:[#allocation3 + $0x10] sm:$0xf]
      %v1776 = vld [vmem:[#allocation3 + $0x14] sm:$0xf]
      %v1777 = vld [vmem:[#allocation3 + $0x18] sm:$0xf]
      %v1778 = vld [vmem:[#allocation3 + $0x1c] sm:$0xf]
      %v1779 = vld [vmem:[#allocation3 + $0x20] sm:$0xf]
      %v1780 = vld [vmem:[#allocation3 + $0x24] sm:$0xf]
      %v1781 = vld [vmem:[#allocation3 + $0x28] sm:$0xf]
      %v1782 = vld [vmem:[#allocation3 + $0x2c] sm:$0xf]
      %v1783 = vld [vmem:[#allocation3 + $0x30] sm:$0xf]
      %v1784 = vld [vmem:[#allocation3 + $0x34] sm:$0xf]
      %v1785 = vld [vmem:[#allocation3 + $0x38] sm:$0xf]
      %v1786 = vld [vmem:[#allocation3 + $0x3c] sm:$0xf]
      %v1803 = vunpack.c.l.b16 %v1771
      %v1804 = vunpack.c.l.b16 %v1772
      %v1805 = vunpack.c.l.b16 %v1773
      %v1806 = vunpack.c.l.b16 %v1774
      %v1807 = vunpack.c.l.b16 %v1775
      %v1808 = vunpack.c.l.b16 %v1776
      %v1809 = vunpack.c.l.b16 %v1777
      %v1810 = vunpack.c.l.b16 %v1778
      %v1811 = vunpack.c.l.b16 %v1779
      %v1812 = vunpack.c.l.b16 %v1780
      %v1813 = vunpack.c.l.b16 %v1781
      %v1814 = vunpack.c.l.b16 %v1782
      %v1815 = vunpack.c.l.b16 %v1783
      %v1816 = vunpack.c.l.b16 %v1784
      %v1817 = vunpack.c.l.b16 %v1785
      %v1818 = vunpack.c.l.b16 %v1786
      %v1819 = vpack.c.b16 %v1804, %v1803
      %v1820 = vpack.c.b16 %v1806, %v1805
      %v1821 = vpack.c.b16 %v1808, %v1807
      %v1822 = vpack.c.b16 %v1810, %v1809
      %v1823 = vpack.c.b16 %v1812, %v1811
      %v1824 = vpack.c.b16 %v1814, %v1813
      %v1825 = vpack.c.b16 %v1816, %v1815
      %v1826 = vpack.c.b16 %v1818, %v1817
      %v1832 = vunpack.c.l.b16 %v292
      %v1833 = vunpack.c.l.b16 %v293
      %v1834 = vunpack.c.l.b16 %v294
      %v1835 = vunpack.c.l.b16 %v295
      %v1836 = vunpack.c.l.b16 %v296
      %v1837 = vpack.c.b16 %v1833, %v1832
      %v1838 = vpack.c.b16 %v1835, %v1834
      %v1839 = vpack.c.b16 %v1836, %v1836
      %vm1842 = vcmask 293888
      %v1844 = vsel %vm1842, %v1819, 0
      %v1847 = vsel %vm1842, %v1820, 0
      %v1850 = vsel %vm1842, %v1821, 0
      %v1853 = vsel %vm1842, %v1822, 0
      %v1856 = vsel %vm1842, %v1823, 0
      %v1859 = vsel %vm1842, %v1824, 0
      %v1862 = vsel %vm1842, %v1825, 0
      %v1865 = vsel %vm1842, %v1826, 0
      %vm1867 = vcmask 1041408
      %v1869 = vsel %vm1867, %v1839, 0
      %1871 = vmatpush.bf16.msra.mxu0 0
      %1872 = vmatpush.bf16.msra.mxu0 0
      %1873 = vmatpush.bf16.msra.mxu0 0
      %1874 = vmatpush.bf16.msra.mxu0 0
      %1875 = vmatpush.bf16.msra.mxu0 0
      %1876 = vmatpush.bf16.msra.mxu0 %v1869
      %1877 = vmatpush.bf16.msra.mxu0 %v1838
      %1878 = vmatpush.bf16.msra.mxu0 %v1837
      %1879 = vmatmul.bf16.gmra.mxu0 %v1844
      %v1880 = vpop.f32.mrf.mxu0
      %v1881 = vadd.f32 0.0, %v1880
      %v1882 = vpop.f32.mrf.mxu0
      %1883 = vmatmul.bf16.gmra.mxu0 %v1847
      %v1884 = vpop.f32.mrf.mxu0
      %v1885 = vadd.f32 0.0, %v1884
      %v1886 = vpop.f32.mrf.mxu0
      %1887 = vmatmul.bf16.gmra.mxu0 %v1850
      %v1888 = vpop.f32.mrf.mxu0
      %v1889 = vadd.f32 0.0, %v1888
      %v1890 = vpop.f32.mrf.mxu0
      %1891 = vmatmul.bf16.gmra.mxu0 %v1853
      %v1892 = vpop.f32.mrf.mxu0
      %v1893 = vadd.f32 0.0, %v1892
      %v1894 = vpop.f32.mrf.mxu0
      %1895 = vmatmul.bf16.gmra.mxu0 %v1856
      %v1896 = vpop.f32.mrf.mxu0
      %v1897 = vadd.f32 0.0, %v1896
      %v1898 = vpop.f32.mrf.mxu0
      %1899 = vmatmul.bf16.gmra.mxu0 %v1859
      %v1900 = vpop.f32.mrf.mxu0
      %v1901 = vadd.f32 0.0, %v1900
      %v1902 = vpop.f32.mrf.mxu0
      %1903 = vmatmul.bf16.gmra.mxu0 %v1862
      %v1904 = vpop.f32.mrf.mxu0
      %v1905 = vadd.f32 0.0, %v1904
      %v1906 = vpop.f32.mrf.mxu0
      %1907 = vmatmul.bf16.gmra.mxu0 %v1865
      %v1908 = vpop.f32.mrf.mxu0
      %v1909 = vadd.f32 0.0, %v1908
      %v1910 = vpop.f32.mrf.mxu0
      %1911 = vdwg.mxu0
      %vm1912 = vcmask 31744
      %v1913 = vsel %vm1912, %v1881, 0.0
      %v1914 = vsel %vm1912, %v1885, 0.0
      %v1915 = vadd.f32 %v1913, %v1914
      %v1916 = vsel %vm1912, %v1889, 0.0
      %v1917 = vadd.f32 %v1915, %v1916
      %v1918 = vsel %vm1912, %v1893, 0.0
      %v1919 = vadd.f32 %v1917, %v1918
      %v1920 = vsel %vm1912, %v1897, 0.0
      %v1921 = vadd.f32 %v1919, %v1920
      %v1922 = vsel %vm1912, %v1901, 0.0
      %v1923 = vadd.f32 %v1921, %v1922
      %v1924 = vsel %vm1912, %v1905, 0.0
      %v1925 = vadd.f32 %v1923, %v1924
      %v1926 = vsel %vm1912, %v1909, 0.0
      %v1927 = vadd.f32 %v1925, %v1926
      %v1928 = vrot.slane %v1927, 4
      %v1929 = vadd.f32 %v1927, %v1928
      %v1930 = vrot.slane %v1929, 2
      %v1931 = vadd.f32 %v1929, %v1930
      %v1932 = vrot.slane %v1931, 1
      %v1933 = vadd.f32 %v1931, %v1932
      %v1934 = vadd.f32 %v1933, 0.0
      %v1935 = vmul.f32 %v1881, %v1881
      %v1936 = vmul.f32 %v1885, %v1885
      %v1937 = vmul.f32 %v1889, %v1889
      %v1938 = vmul.f32 %v1893, %v1893
      %v1939 = vmul.f32 %v1897, %v1897
      %v1940 = vmul.f32 %v1901, %v1901
      %v1941 = vmul.f32 %v1905, %v1905
      %v1942 = vmul.f32 %v1909, %v1909
      %v1943 = vsel %vm1912, %v1935, 0.0
      %v1944 = vsel %vm1912, %v1936, 0.0
      %v1945 = vadd.f32 %v1943, %v1944
      %v1946 = vsel %vm1912, %v1937, 0.0
      %v1947 = vadd.f32 %v1945, %v1946
      %v1948 = vsel %vm1912, %v1938, 0.0
      %v1949 = vadd.f32 %v1947, %v1948
      %v1950 = vsel %vm1912, %v1939, 0.0
      %v1951 = vadd.f32 %v1949, %v1950
      %v1952 = vsel %vm1912, %v1940, 0.0
      %v1953 = vadd.f32 %v1951, %v1952
      %v1954 = vsel %vm1912, %v1941, 0.0
      %v1955 = vadd.f32 %v1953, %v1954
      %v1956 = vsel %vm1912, %v1942, 0.0
      %v1957 = vadd.f32 %v1955, %v1956
      %v1958 = vrot.slane %v1957, 4
      %v1959 = vadd.f32 %v1957, %v1958
      %v1960 = vrot.slane %v1959, 2
      %v1961 = vadd.f32 %v1959, %v1960
      %v1962 = vrot.slane %v1961, 1
      %v1963 = vadd.f32 %v1961, %v1962
      %v1964 = vadd.f32 %v1963, 0.0
      %v1965 = vpack.c.bf16 %v1881, %v1881
      %v1966 = vpack.c.bf16 %v1885, %v1885
      %v1967 = vpack.c.bf16 %v1889, %v1889
      %v1968 = vpack.c.bf16 %v1893, %v1893
      %v1969 = vpack.c.bf16 %v1897, %v1897
      %v1970 = vpack.c.bf16 %v1901, %v1901
      %v1971 = vpack.c.bf16 %v1905, %v1905
      %v1972 = vpack.c.bf16 %v1909, %v1909
      %1973 = vst.msk [vmem:[%s254] sm:$0xf] %vm503, %v1965
      %1974 = vst.msk [vmem:[%s254 + $0x4] sm:$0xf] %vm503, %v1966
      %1975 = vst.msk [vmem:[%s254 + $0x8] sm:$0xf] %vm503, %v1967
      %1976 = vst.msk [vmem:[%s254 + $0xc] sm:$0xf] %vm503, %v1968
      %1977 = vst.msk [vmem:[%s254 + $0x10] sm:$0xf] %vm503, %v1969
      %1978 = vst.msk [vmem:[%s254 + $0x14] sm:$0xf] %vm503, %v1970
      %1979 = vst.msk [vmem:[%s254 + $0x18] sm:$0xf] %vm503, %v1971
      %1980 = vst.msk [vmem:[%s254 + $0x1c] sm:$0xf] %vm503, %v1972
      %v1981 = vld [vmem:[%s259] sm:$0x3]
      %vm1982 = vcmask 1040384
      %v1983 = vsel %vm1982, %v1934, %v1964
      %v1984 = vadd.f32 %v1981, %v1983
      %vm1985 = vcmask 25600
      %1986 = vst.msk [vmem:[%s259] sm:$0x3] %vm1985, %v1984
      %s1987 = sadd.s32 %s21, %s22
      %p1988 = scmp.lt.s32.totalorder %s1987, 1
      %s1989 = scalar_select %p1988, %s1987, 1
      %s1990 = smul.addr %s1989, 8
      %s1991 = smul.addr %s1990, 4
      %s1992 = scalar_lea.vmem %s4, %s1991
      %p1993 = scmp.lt.s32.totalorder %s21, 1
      %s1994 = scalar_select %p1993, %s21, 1
      %s1995 = smul.addr %s1994, 2
      %s1996 = scalar_lea.vmem %s5, %s1995
      // Predicated region
      $region41: #{residual_template_forward.5} parent=35 // pred_check
        %p1997 = pneg %p140
      $region42: #{residual_template_forward.5} parent=35 // pred_check_branch
        %1999 = sbr.rel (%p1997) target = $region44
      $region43: #{residual_template_forward.5} parent=35 // pred_region
        %s2000 = sadd.s32 %s21, %s22
      $region44: #{residual_template_forward.5} parent=35 // pred_fallthru
        _
      // Predicated region
      $region45: #{residual_template_forward.5} parent=35 // pred_check
        %p2001 = pneg %p166
      $region46: #{residual_template_forward.5} parent=35 // pred_check_branch
        %2003 = sbr.rel (%p2001) target = $region48
      $region47: #{residual_template_forward.5} parent=35 // pred_region
        _
      $region48: #{residual_template_forward.5} parent=35 // pred_fallthru
        _
    $region36: #{residual_template_forward.5} parent=5 // pred_fallthru
      _
    %p2004 = scmp.le.s32.totalorder 2, %s12
    // Predicated region
    $region49: #{residual_template_forward.5} parent=5 // pred_check
      %p2005 = pneg %p2004
    $region50: #{residual_template_forward.5} parent=5 // pred_check_branch
      %2007 = sbr.rel (%p2005) target = $region52
    $region51: #{residual_template_forward.5} parent=5 // pred_region
      %s2008 = ssub.s32 %s12, 2
      // Predicated region
      $region53: #{residual_template_forward.5} parent=51 // pred_check
        %p2009 = pneg %p146
      $region54: #{residual_template_forward.5} parent=51 // pred_check_branch
        %2011 = sbr.rel (%p2009) target = $region56
      $region55: #{residual_template_forward.5} parent=51 // pred_region
        %s2012 = sadd.s32 %s23, %s24
        %p2013 = scmp.lt.s32.totalorder %s2012, 1
        %s2014 = scalar_select %p2013, %s2012, 1
        %s2015 = smul.addr %s2014, 8
        %s2016 = smul.addr %s2015, 4
        %s2017 = scalar_lea.vmem %s4, %s2016
      $region56: #{residual_template_forward.5} parent=51 // pred_fallthru
        _
      // Predicated region
      $region57: #{residual_template_forward.5} parent=51 // pred_check
        %p2018 = pneg %p172
      $region58: #{residual_template_forward.5} parent=51 // pred_check_branch
        %2020 = sbr.rel (%p2018) target = $region60
      $region59: #{residual_template_forward.5} parent=51 // pred_region
        %p2021 = scmp.lt.s32.totalorder %s23, 1
        %s2022 = scalar_select %p2021, %s23, 1
        %s2023 = smul.addr %s2022, 2
        %s2024 = scalar_lea.vmem %s5, %s2023
      $region60: #{residual_template_forward.5} parent=51 // pred_fallthru
        _
    $region52: #{residual_template_forward.5} parent=5 // pred_fallthru
      _
  $region6: #{residual_template_forward.5} parent=0 // loop_footer
    %s16 = sadd.s32 1, %s12
  $region7: #{residual_template_forward.5} parent=0 // loop_footer_branch
    %11 = sbr.rel target = $region3
  $region8: #{residual_template_forward.5} parent=0 // loop_exit
    _

</llo_original>
